<compile_context>
chip_gen: v5e
topology: v5e:2x2
jax: 0.10.0
libtpu: 0.0.40
codegen_flags: <defaults>
</compile_context>

<pallas_src>
import jax
import jax.numpy as jnp
from jax import lax
from jax.experimental import pallas as pl
from jax.experimental.pallas import tpu as pltpu

N = 2            # batch
C_IN = 12        # Conv1d in-channels
L_IN = 8         # sequence length (256 * (L_IN + 2) == 2560  ->  L_IN = 8)
C1 = 128         # conv1 out-channels
C2 = 256         # conv2 out-channels
L1 = L_IN + 1    # 9  (k=2, pad=1)
L2 = L1 + 1      # 10 (k=2, pad=1)
FLAT = C2 * L2   # 2560
H = 256
OUT = 2


def _prelu(x, a):
    # PReLU with a single (scalar) parameter, PyTorch default semantics.
    return jnp.where(x >= 0.0, x, a * x)


def embedding_kernel(x_ref,                               # (L1*N, 2*C_IN) im2col, t-major rows
                     w1_ref, b1_ref, a1_ref,              # (2*C_IN, C1) f32, (1,C1), (1,)
                     w2k0_ref, w2k1_ref, b2_ref, a2_ref,  # (C1, C2) bf16 x2, (1,C2), (1,)
                     w3_ref, b3_ref, a3_ref,              # (FLAT, H) bf16, (1,H), (1,)
                     w4_ref, b4_ref, a4_ref,              # (H, H) bf16, (1,H), (1,)
                     w5_ref, b5_ref,                      # (H, OUT) f32, (1,OUT)
                     o_ref,                               # (N, OUT)
                     a_scr, b_scr, flat_scr):             # (L1*N,C2) f32 x2, (N,FLAT) f32
    a1 = a1_ref[0]
    a2 = a2_ref[0]
    a3 = a3_ref[0]
    a4 = a4_ref[0]

    # ---- Conv1d(12 -> 128, k=2, pad=1) + PReLU : ONE im2col matmul ----------
    y1 = _prelu(jnp.dot(x_ref[...], w1_ref[...],
                        preferred_element_type=jnp.float32) + b1_ref[...], a1)   # (18, 128)

    # ---- Conv1d(128 -> 256, k=2, pad=1): two stacked tap matmuls ------------
    y1b = y1.astype(jnp.bfloat16)
    a_scr[...] = jnp.dot(y1b, w2k0_ref[...], preferred_element_type=jnp.float32)  # tap 0
    b_scr[...] = jnp.dot(y1b, w2k1_ref[...], preferred_element_type=jnp.float32)  # tap 1

    b2 = b2_ref[...]                                                     # (1, C2)
    # Shifted add of the two taps + bias + PReLU, written straight into the
    # lane-dense (N, L2*C2) flat buffer ((t, c) flatten order).  a_scr/b_scr
    # rows are t-major (row = t*N + n), so each (N, C2) slab is a contiguous
    # static slice; the conv left/right zero-padding is handled statically.
    flat_scr[:, 0:C2] = _prelu(b_scr[0:N, :] + b2, a2)                   # t2 = 0 (left pad)
    for t2 in range(1, L2 - 1):                                          # t2 = 1 .. 8
        ra = (t2 - 1) * N
        rb = t2 * N
        flat_scr[:, t2 * C2:(t2 + 1) * C2] = _prelu(
            a_scr[ra:ra + N, :] + b_scr[rb:rb + N, :] + b2, a2)
    flat_scr[:, (L2 - 1) * C2:L2 * C2] = _prelu(
        a_scr[(L1 - 1) * N:L1 * N, :] + b2, a2)                          # t2 = 9 (right pad)

    # ---- Linear(2560, 256) + PReLU : single K=2560 matmul (bf16 in, f32 acc) --
    h = _prelu(jnp.dot(flat_scr[...].astype(jnp.bfloat16), w3_ref[...],
                       preferred_element_type=jnp.float32) + b3_ref[...], a3)    # (N, 256)
    # ---- Linear(256, 256) + PReLU --------------------------------------------
    h = _prelu(jnp.dot(h.astype(jnp.bfloat16), w4_ref[...],
                       preferred_element_type=jnp.float32) + b4_ref[...], a4)    # (N, 256)
    # ---- Linear(256, 2) -------------------------------------------------------
    out = jnp.dot(h, w5_ref[...], preferred_element_type=jnp.float32) + b5_ref[...]
    o_ref[...] = out.astype(o_ref.dtype)


def init_params(key):
    keys = jax.random.split(key, 10)

    def uinit(k, shape, fan_in):
        bound = 1.0 / (fan_in ** 0.5)
        return jax.random.uniform(k, shape, jnp.float32, minval=-bound, maxval=bound)

    p = {}
    p['w1'] = uinit(keys[0], (C1, C_IN, 2), C_IN * 2)   # Conv1d(12,128,2)
    p['b1'] = uinit(keys[1], (C1,), C_IN * 2)
    p['a1'] = jnp.float32(0.25)                          # PReLU init
    p['w2'] = uinit(keys[2], (C2, C1, 2), C1 * 2)        # Conv1d(128,256,2)
    p['b2'] = uinit(keys[3], (C2,), C1 * 2)
    p['a2'] = jnp.float32(0.25)
    p['w3'] = uinit(keys[4], (H, FLAT), FLAT)            # Linear(2560,256)
    p['b3'] = uinit(keys[5], (H,), FLAT)
    p['a3'] = jnp.float32(0.25)
    p['w4'] = uinit(keys[6], (H, H), H)                  # Linear(256,256)
    p['b4'] = uinit(keys[7], (H,), H)
    p['a4'] = jnp.float32(0.25)
    p['w5'] = uinit(keys[8], (OUT, H), H)                # Linear(256,2)
    p['b5'] = uinit(keys[9], (OUT,), H)
    return p


@jax.jit
def embedding_net_forward(x_ncw, params):
    # Glue: NCW -> channels-last, zero-pad time (Conv1d padding=1), im2col(k=2),
    # stacked t-major: row = t * N + n.
    x_cl = jnp.transpose(x_ncw, (0, 2, 1)).astype(jnp.float32)          # (N, 8, 12)
    x_pad = jnp.pad(x_cl, ((0, 0), (1, 1), (0, 0)))                     # (N, 10, 12)
    x_win = jnp.concatenate([x_pad[:, :L1, :], x_pad[:, 1:L1 + 1, :]], axis=-1)   # (N, 9, 24)
    x_im2col = jnp.transpose(x_win, (1, 0, 2)).reshape(L1 * N, 2 * C_IN)          # (18, 24)

    # conv1 weight: both taps concatenated along the contraction dim.
    w1_cat = jnp.concatenate([params['w1'][:, :, 0].T,
                              params['w1'][:, :, 1].T], axis=0)         # (24, 128) f32
    # conv2 taps (bf16 to halve their DMA; f32 accumulation in-kernel).
    w2k0 = params['w2'][:, :, 0].T.astype(jnp.bfloat16)                 # (128, 256)
    w2k1 = params['w2'][:, :, 1].T.astype(jnp.bfloat16)                 # (128, 256)
    # PyTorch flattens conv output channel-major (flat index = c*L2 + t); the
    # kernel's flat layout is (t, c)-major, so regroup fc1 weight accordingly
    # into a lane-contiguous (2560, 256) slab, shipped as bf16.
    w3_tc = jnp.transpose(params['w3'].reshape(H, C2, L2), (2, 1, 0)).reshape(FLAT, H)
    w3_tc = w3_tc.astype(jnp.bfloat16)                                  # (2560, 256)
    w4_t = params['w4'].T.astype(jnp.bfloat16)                          # (256, 256)
    w5_t = params['w5'].T                                               # (256, 2) f32

    vmem = pl.BlockSpec(memory_space=pltpu.MemorySpace.VMEM)
    smem = pl.BlockSpec(memory_space=pltpu.MemorySpace.SMEM)

    return pl.pallas_call(
        embedding_kernel,
        out_shape=jax.ShapeDtypeStruct((N, OUT), jnp.float32),
        in_specs=[vmem,
                  vmem, vmem, smem,
                  vmem, vmem, vmem, smem,
                  vmem, vmem, smem,
                  vmem, vmem, smem,
                  vmem, vmem],
        out_specs=vmem,
        scratch_shapes=[pltpu.VMEM((L1 * N, C2), jnp.float32),   # conv2 tap-0 (A)
                        pltpu.VMEM((L1 * N, C2), jnp.float32),   # conv2 tap-1 (B)
                        pltpu.VMEM((N, FLAT), jnp.float32)],     # flat conv2 output
    )(x_im2col,
      w1_cat, params['b1'].reshape(1, C1), params['a1'].reshape(1),
      w2k0, w2k1, params['b2'].reshape(1, C2), params['a2'].reshape(1),
      w3_tc, params['b3'].reshape(1, H), params['a3'].reshape(1),
      w4_t, params['b4'].reshape(1, H), params['a4'].reshape(1),
      w5_t, params['b5'].reshape(1, OUT))


def reference_forward(x_ncw, p):
    """Plain-JAX/XLA reference reproducing the PyTorch forward exactly (f32, HIGHEST)."""
    def prelu(x, a):
        return jnp.where(x >= 0.0, x, a * x)
    dn = ('NCH', 'OIH', 'NCH')
    y = lax.conv_general_dilated(x_ncw, p['w1'], (1,), [(1, 1)],
                                 dimension_numbers=dn,
                                 precision=lax.Precision.HIGHEST)
    y = prelu(y + p['b1'][None, :, None], p['a1'])
    y = lax.conv_general_dilated(y, p['w2'], (1,), [(1, 1)],
                                 dimension_numbers=dn,
                                 precision=lax.Precision.HIGHEST)
    y = prelu(y + p['b2'][None, :, None], p['a2'])
    flat = y.reshape(y.shape[0], -1)                      # channel-major flatten (NCW)
    h = prelu(jnp.dot(flat, p['w3'].T, precision=lax.Precision.HIGHEST) + p['b3'], p['a3'])
    h = prelu(jnp.dot(h, p['w4'].T, precision=lax.Precision.HIGHEST) + p['b4'], p['a4'])
    return jnp.dot(h, p['w5'].T, precision=lax.Precision.HIGHEST) + p['b5']


if __name__ == "__main__":
    key = jax.random.PRNGKey(0)
    pkey, xkey = jax.random.split(key)
    params = init_params(pkey)
    # PyTorch Conv1d layout: (N, C_in, L) = (2, 12, 8)
    x = jax.random.normal(xkey, (N, C_IN, L_IN), dtype=jnp.float32)

    out = embedding_net_forward(x, params)
    out = jax.block_until_ready(out)

    ref = reference_forward(x, params)
    assert out.shape == (N, OUT), out.shape
    max_diff = float(jnp.max(jnp.abs(out - ref)))
    if not jnp.allclose(out, ref, atol=1e-2, rtol=1e-2):
        raise AssertionError(f"Pallas kernel mismatch vs reference, max abs diff = {max_diff}")
    print("KERNEL_OK")
</pallas_src>

<mosaic_0001>
module attributes {stable_mosaic.version = 11 : i64} {
  func.func @embedding_kernel(%arg0: memref<18x24xf32, #tpu.memory_space<vmem>>, %arg1: memref<24x128xf32, #tpu.memory_space<vmem>>, %arg2: memref<1x128xf32, #tpu.memory_space<vmem>>, %arg3: memref<1xf32, #tpu.memory_space<smem>>, %arg4: memref<128x256xbf16, #tpu.memory_space<vmem>>, %arg5: memref<128x256xbf16, #tpu.memory_space<vmem>>, %arg6: memref<1x256xf32, #tpu.memory_space<vmem>>, %arg7: memref<1xf32, #tpu.memory_space<smem>>, %arg8: memref<2560x256xbf16, #tpu.memory_space<vmem>>, %arg9: memref<1x256xf32, #tpu.memory_space<vmem>>, %arg10: memref<1xf32, #tpu.memory_space<smem>>, %arg11: memref<256x256xbf16, #tpu.memory_space<vmem>>, %arg12: memref<1x256xf32, #tpu.memory_space<vmem>>, %arg13: memref<1xf32, #tpu.memory_space<smem>>, %arg14: memref<256x2xf32, #tpu.memory_space<vmem>>, %arg15: memref<1x2xf32, #tpu.memory_space<vmem>>, %arg16: memref<2x2xf32, #tpu.memory_space<vmem>>, %arg17: memref<18x256xf32, #tpu.memory_space<vmem>>, %arg18: memref<18x256xf32, #tpu.memory_space<vmem>>, %arg19: memref<2x2560xf32, #tpu.memory_space<vmem>>) attributes {dimension_semantics = [], scalar_prefetch = 0 : i64, scratch_operands = 3 : i64, tpu.core_type = #tpu.core_type<tc>} {
    %c0 = arith.constant 0 : index
    %0 = memref.load %arg3[%c0] : memref<1xf32, #tpu.memory_space<smem>>
    %c0_0 = arith.constant 0 : index
    %1 = memref.load %arg7[%c0_0] : memref<1xf32, #tpu.memory_space<smem>>
    %c0_1 = arith.constant 0 : index
    %2 = memref.load %arg10[%c0_1] : memref<1xf32, #tpu.memory_space<smem>>
    %c0_2 = arith.constant 0 : index
    %3 = memref.load %arg13[%c0_2] : memref<1xf32, #tpu.memory_space<smem>>
    %c0_3 = arith.constant 0 : index
    %c0_4 = arith.constant 0 : index
    %4 = vector.load %arg0[%c0_3, %c0_4] : memref<18x24xf32, #tpu.memory_space<vmem>>, vector<18x24xf32>
    %c0_5 = arith.constant 0 : index
    %c0_6 = arith.constant 0 : index
    %5 = vector.load %arg1[%c0_5, %c0_6] : memref<24x128xf32, #tpu.memory_space<vmem>>, vector<24x128xf32>
    %cst = arith.constant dense<0.000000e+00> : vector<18x128xf32>
    %6 = tpu.matmul %4, %5, %cst {dimension_numbers = #tpu.dot_dimension_numbers<[1], [0], [0], [1], [0, 0, 1, 1], [], []>} : vector<18x24xf32>, vector<24x128xf32>, vector<18x128xf32> -> vector<18x128xf32>
    %c0_7 = arith.constant 0 : index
    %c0_8 = arith.constant 0 : index
    %7 = vector.load %arg2[%c0_7, %c0_8] : memref<1x128xf32, #tpu.memory_space<vmem>>, vector<1x128xf32>
    %8 = vector.broadcast %7 : vector<1x128xf32> to vector<18x128xf32>
    %9 = arith.addf %6, %8 : vector<18x128xf32>
    %cst_9 = arith.constant 0.000000e+00 : f32
    %10 = vector.broadcast %cst_9 : f32 to vector<18x128xf32>
    %11 = arith.cmpf oge, %9, %10 : vector<18x128xf32>
    %12 = vector.broadcast %0 : f32 to vector<18x128xf32>
    %13 = arith.mulf %12, %9 : vector<18x128xf32>
    %14 = arith.select %11, %9, %13 : vector<18x128xi1>, vector<18x128xf32>
    %15 = arith.truncf %14 : vector<18x128xf32> to vector<18x128xbf16>
    %c0_10 = arith.constant 0 : index
    %c0_11 = arith.constant 0 : index
    %16 = vector.load %arg4[%c0_10, %c0_11] : memref<128x256xbf16, #tpu.memory_space<vmem>>, vector<128x256xbf16>
    %cst_12 = arith.constant dense<0.000000e+00> : vector<18x256xf32>
    %17 = tpu.matmul %15, %16, %cst_12 {dimension_numbers = #tpu.dot_dimension_numbers<[1], [0], [0], [1], [0, 0, 1, 1], [], []>} : vector<18x128xbf16>, vector<128x256xbf16>, vector<18x256xf32> -> vector<18x256xf32>
    %c0_13 = arith.constant 0 : index
    %c0_14 = arith.constant 0 : index
    %18 = vector.load %arg17[%c0_13, %c0_14] : memref<18x256xf32, #tpu.memory_space<vmem>>, vector<18x256xf32>
    tpu.vector_store %arg17[%c0_13, %c0_14], %17 {strides = array<i32>} : memref<18x256xf32, #tpu.memory_space<vmem>>, vector<18x256xf32>,
    %c0_15 = arith.constant 0 : index
    %c0_16 = arith.constant 0 : index
    %19 = vector.load %arg5[%c0_15, %c0_16] : memref<128x256xbf16, #tpu.memory_space<vmem>>, vector<128x256xbf16>
    %cst_17 = arith.constant dense<0.000000e+00> : vector<18x256xf32>
    %20 = tpu.matmul %15, %19, %cst_17 {dimension_numbers = #tpu.dot_dimension_numbers<[1], [0], [0], [1], [0, 0, 1, 1], [], []>} : vector<18x128xbf16>, vector<128x256xbf16>, vector<18x256xf32> -> vector<18x256xf32>
    %c0_18 = arith.constant 0 : index
    %c0_19 = arith.constant 0 : index
    %21 = vector.load %arg18[%c0_18, %c0_19] : memref<18x256xf32, #tpu.memory_space<vmem>>, vector<18x256xf32>
    tpu.vector_store %arg18[%c0_18, %c0_19], %20 {strides = array<i32>} : memref<18x256xf32, #tpu.memory_space<vmem>>, vector<18x256xf32>,
    %c0_20 = arith.constant 0 : index
    %c0_21 = arith.constant 0 : index
    %22 = vector.load %arg6[%c0_20, %c0_21] : memref<1x256xf32, #tpu.memory_space<vmem>>, vector<1x256xf32>
    %c0_22 = arith.constant 0 : index
    %c0_23 = arith.constant 0 : index
    %23 = vector.load %arg18[%c0_22, %c0_23] : memref<18x256xf32, #tpu.memory_space<vmem>>, vector<2x256xf32>
    %24 = vector.broadcast %22 : vector<1x256xf32> to vector<2x256xf32>
    %25 = arith.addf %23, %24 : vector<2x256xf32>
    %cst_24 = arith.constant 0.000000e+00 : f32
    %26 = vector.broadcast %cst_24 : f32 to vector<2x256xf32>
    %27 = arith.cmpf oge, %25, %26 : vector<2x256xf32>
    %28 = vector.broadcast %1 : f32 to vector<2x256xf32>
    %29 = arith.mulf %28, %25 : vector<2x256xf32>
    %30 = arith.select %27, %25, %29 : vector<2x256xi1>, vector<2x256xf32>
    %c0_25 = arith.constant 0 : index
    %c0_26 = arith.constant 0 : index
    %31 = vector.load %arg19[%c0_25, %c0_26] : memref<2x2560xf32, #tpu.memory_space<vmem>>, vector<2x256xf32>
    tpu.vector_store %arg19[%c0_25, %c0_26], %30 {strides = array<i32>} : memref<2x2560xf32, #tpu.memory_space<vmem>>, vector<2x256xf32>,
    %c0_27 = arith.constant 0 : index
    %c0_28 = arith.constant 0 : index
    %32 = vector.load %arg17[%c0_27, %c0_28] : memref<18x256xf32, #tpu.memory_space<vmem>>, vector<2x256xf32>
    %c2 = arith.constant 2 : index
    %c0_29 = arith.constant 0 : index
    %33 = vector.load %arg18[%c2, %c0_29] : memref<18x256xf32, #tpu.memory_space<vmem>>, vector<2x256xf32>
    %34 = arith.addf %32, %33 : vector<2x256xf32>
    %35 = vector.broadcast %22 : vector<1x256xf32> to vector<2x256xf32>
    %36 = arith.addf %34, %35 : vector<2x256xf32>
    %cst_30 = arith.constant 0.000000e+00 : f32
    %37 = vector.broadcast %cst_30 : f32 to vector<2x256xf32>
    %38 = arith.cmpf oge, %36, %37 : vector<2x256xf32>
    %39 = vector.broadcast %1 : f32 to vector<2x256xf32>
    %40 = arith.mulf %39, %36 : vector<2x256xf32>
    %41 = arith.select %38, %36, %40 : vector<2x256xi1>, vector<2x256xf32>
    %c0_31 = arith.constant 0 : index
    %c256 = arith.constant 256 : index
    %42 = vector.load %arg19[%c0_31, %c256] : memref<2x2560xf32, #tpu.memory_space<vmem>>, vector<2x256xf32>
    tpu.vector_store %arg19[%c0_31, %c256], %41 {strides = array<i32>} : memref<2x2560xf32, #tpu.memory_space<vmem>>, vector<2x256xf32>,
    %c2_32 = arith.constant 2 : index
    %c0_33 = arith.constant 0 : index
    %43 = vector.load %arg17[%c2_32, %c0_33] : memref<18x256xf32, #tpu.memory_space<vmem>>, vector<2x256xf32>
    %c4 = arith.constant 4 : index
    %c0_34 = arith.constant 0 : index
    %44 = vector.load %arg18[%c4, %c0_34] : memref<18x256xf32, #tpu.memory_space<vmem>>, vector<2x256xf32>
    %45 = arith.addf %43, %44 : vector<2x256xf32>
    %46 = vector.broadcast %22 : vector<1x256xf32> to vector<2x256xf32>
    %47 = arith.addf %45, %46 : vector<2x256xf32>
    %cst_35 = arith.constant 0.000000e+00 : f32
    %48 = vector.broadcast %cst_35 : f32 to vector<2x256xf32>
    %49 = arith.cmpf oge, %47, %48 : vector<2x256xf32>
    %50 = vector.broadcast %1 : f32 to vector<2x256xf32>
    %51 = arith.mulf %50, %47 : vector<2x256xf32>
    %52 = arith.select %49, %47, %51 : vector<2x256xi1>, vector<2x256xf32>
    %c0_36 = arith.constant 0 : index
    %c512 = arith.constant 512 : index
    %53 = vector.load %arg19[%c0_36, %c512] : memref<2x2560xf32, #tpu.memory_space<vmem>>, vector<2x256xf32>
    tpu.vector_store %arg19[%c0_36, %c512], %52 {strides = array<i32>} : memref<2x2560xf32, #tpu.memory_space<vmem>>, vector<2x256xf32>,
    %c4_37 = arith.constant 4 : index
    %c0_38 = arith.constant 0 : index
    %54 = vector.load %arg17[%c4_37, %c0_38] : memref<18x256xf32, #tpu.memory_space<vmem>>, vector<2x256xf32>
    %c6 = arith.constant 6 : index
    %c0_39 = arith.constant 0 : index
    %55 = vector.load %arg18[%c6, %c0_39] : memref<18x256xf32, #tpu.memory_space<vmem>>, vector<2x256xf32>
    %56 = arith.addf %54, %55 : vector<2x256xf32>
    %57 = vector.broadcast %22 : vector<1x256xf32> to vector<2x256xf32>
    %58 = arith.addf %56, %57 : vector<2x256xf32>
    %cst_40 = arith.constant 0.000000e+00 : f32
    %59 = vector.broadcast %cst_40 : f32 to vector<2x256xf32>
    %60 = arith.cmpf oge, %58, %59 : vector<2x256xf32>
    %61 = vector.broadcast %1 : f32 to vector<2x256xf32>
    %62 = arith.mulf %61, %58 : vector<2x256xf32>
    %63 = arith.select %60, %58, %62 : vector<2x256xi1>, vector<2x256xf32>
    %c0_41 = arith.constant 0 : index
    %c768 = arith.constant 768 : index
    %64 = vector.load %arg19[%c0_41, %c768] : memref<2x2560xf32, #tpu.memory_space<vmem>>, vector<2x256xf32>
    tpu.vector_store %arg19[%c0_41, %c768], %63 {strides = array<i32>} : memref<2x2560xf32, #tpu.memory_space<vmem>>, vector<2x256xf32>,
    %c6_42 = arith.constant 6 : index
    %c0_43 = arith.constant 0 : index
    %65 = vector.load %arg17[%c6_42, %c0_43] : memref<18x256xf32, #tpu.memory_space<vmem>>, vector<2x256xf32>
    %c8 = arith.constant 8 : index
    %c0_44 = arith.constant 0 : index
    %66 = vector.load %arg18[%c8, %c0_44] : memref<18x256xf32, #tpu.memory_space<vmem>>, vector<2x256xf32>
    %67 = arith.addf %65, %66 : vector<2x256xf32>
    %68 = vector.broadcast %22 : vector<1x256xf32> to vector<2x256xf32>
    %69 = arith.addf %67, %68 : vector<2x256xf32>
    %cst_45 = arith.constant 0.000000e+00 : f32
    %70 = vector.broadcast %cst_45 : f32 to vector<2x256xf32>
    %71 = arith.cmpf oge, %69, %70 : vector<2x256xf32>
    %72 = vector.broadcast %1 : f32 to vector<2x256xf32>
    %73 = arith.mulf %72, %69 : vector<2x256xf32>
    %74 = arith.select %71, %69, %73 : vector<2x256xi1>, vector<2x256xf32>
    %c0_46 = arith.constant 0 : index
    %c1024 = arith.constant 1024 : index
    %75 = vector.load %arg19[%c0_46, %c1024] : memref<2x2560xf32, #tpu.memory_space<vmem>>, vector<2x256xf32>
    tpu.vector_store %arg19[%c0_46, %c1024], %74 {strides = array<i32>} : memref<2x2560xf32, #tpu.memory_space<vmem>>, vector<2x256xf32>,
    %c8_47 = arith.constant 8 : index
    %c0_48 = arith.constant 0 : index
    %76 = vector.load %arg17[%c8_47, %c0_48] : memref<18x256xf32, #tpu.memory_space<vmem>>, vector<2x256xf32>
    %c10 = arith.constant 10 : index
    %c0_49 = arith.constant 0 : index
    %77 = vector.load %arg18[%c10, %c0_49] : memref<18x256xf32, #tpu.memory_space<vmem>>, vector<2x256xf32>
    %78 = arith.addf %76, %77 : vector<2x256xf32>
    %79 = vector.broadcast %22 : vector<1x256xf32> to vector<2x256xf32>
    %80 = arith.addf %78, %79 : vector<2x256xf32>
    %cst_50 = arith.constant 0.000000e+00 : f32
    %81 = vector.broadcast %cst_50 : f32 to vector<2x256xf32>
    %82 = arith.cmpf oge, %80, %81 : vector<2x256xf32>
    %83 = vector.broadcast %1 : f32 to vector<2x256xf32>
    %84 = arith.mulf %83, %80 : vector<2x256xf32>
    %85 = arith.select %82, %80, %84 : vector<2x256xi1>, vector<2x256xf32>
    %c0_51 = arith.constant 0 : index
    %c1280 = arith.constant 1280 : index
    %86 = vector.load %arg19[%c0_51, %c1280] : memref<2x2560xf32, #tpu.memory_space<vmem>>, vector<2x256xf32>
    tpu.vector_store %arg19[%c0_51, %c1280], %85 {strides = array<i32>} : memref<2x2560xf32, #tpu.memory_space<vmem>>, vector<2x256xf32>,
    %c10_52 = arith.constant 10 : index
    %c0_53 = arith.constant 0 : index
    %87 = vector.load %arg17[%c10_52, %c0_53] : memref<18x256xf32, #tpu.memory_space<vmem>>, vector<2x256xf32>
    %c12 = arith.constant 12 : index
    %c0_54 = arith.constant 0 : index
    %88 = vector.load %arg18[%c12, %c0_54] : memref<18x256xf32, #tpu.memory_space<vmem>>, vector<2x256xf32>
    %89 = arith.addf %87, %88 : vector<2x256xf32>
    %90 = vector.broadcast %22 : vector<1x256xf32> to vector<2x256xf32>
    %91 = arith.addf %89, %90 : vector<2x256xf32>
    %cst_55 = arith.constant 0.000000e+00 : f32
    %92 = vector.broadcast %cst_55 : f32 to vector<2x256xf32>
    %93 = arith.cmpf oge, %91, %92 : vector<2x256xf32>
    %94 = vector.broadcast %1 : f32 to vector<2x256xf32>
    %95 = arith.mulf %94, %91 : vector<2x256xf32>
    %96 = arith.select %93, %91, %95 : vector<2x256xi1>, vector<2x256xf32>
    %c0_56 = arith.constant 0 : index
    %c1536 = arith.constant 1536 : index
    %97 = vector.load %arg19[%c0_56, %c1536] : memref<2x2560xf32, #tpu.memory_space<vmem>>, vector<2x256xf32>
    tpu.vector_store %arg19[%c0_56, %c1536], %96 {strides = array<i32>} : memref<2x2560xf32, #tpu.memory_space<vmem>>, vector<2x256xf32>,
    %c12_57 = arith.constant 12 : index
    %c0_58 = arith.constant 0 : index
    %98 = vector.load %arg17[%c12_57, %c0_58] : memref<18x256xf32, #tpu.memory_space<vmem>>, vector<2x256xf32>
    %c14 = arith.constant 14 : index
    %c0_59 = arith.constant 0 : index
    %99 = vector.load %arg18[%c14, %c0_59] : memref<18x256xf32, #tpu.memory_space<vmem>>, vector<2x256xf32>
    %100 = arith.addf %98, %99 : vector<2x256xf32>
    %101 = vector.broadcast %22 : vector<1x256xf32> to vector<2x256xf32>
    %102 = arith.addf %100, %101 : vector<2x256xf32>
    %cst_60 = arith.constant 0.000000e+00 : f32
    %103 = vector.broadcast %cst_60 : f32 to vector<2x256xf32>
    %104 = arith.cmpf oge, %102, %103 : vector<2x256xf32>
    %105 = vector.broadcast %1 : f32 to vector<2x256xf32>
    %106 = arith.mulf %105, %102 : vector<2x256xf32>
    %107 = arith.select %104, %102, %106 : vector<2x256xi1>, vector<2x256xf32>
    %c0_61 = arith.constant 0 : index
    %c1792 = arith.constant 1792 : index
    %108 = vector.load %arg19[%c0_61, %c1792] : memref<2x2560xf32, #tpu.memory_space<vmem>>, vector<2x256xf32>
    tpu.vector_store %arg19[%c0_61, %c1792], %107 {strides = array<i32>} : memref<2x2560xf32, #tpu.memory_space<vmem>>, vector<2x256xf32>,
    %c14_62 = arith.constant 14 : index
    %c0_63 = arith.constant 0 : index
    %109 = vector.load %arg17[%c14_62, %c0_63] : memref<18x256xf32, #tpu.memory_space<vmem>>, vector<2x256xf32>
    %c16 = arith.constant 16 : index
    %c0_64 = arith.constant 0 : index
    %110 = vector.load %arg18[%c16, %c0_64] : memref<18x256xf32, #tpu.memory_space<vmem>>, vector<2x256xf32>
    %111 = arith.addf %109, %110 : vector<2x256xf32>
    %112 = vector.broadcast %22 : vector<1x256xf32> to vector<2x256xf32>
    %113 = arith.addf %111, %112 : vector<2x256xf32>
    %cst_65 = arith.constant 0.000000e+00 : f32
    %114 = vector.broadcast %cst_65 : f32 to vector<2x256xf32>
    %115 = arith.cmpf oge, %113, %114 : vector<2x256xf32>
    %116 = vector.broadcast %1 : f32 to vector<2x256xf32>
    %117 = arith.mulf %116, %113 : vector<2x256xf32>
    %118 = arith.select %115, %113, %117 : vector<2x256xi1>, vector<2x256xf32>
    %c0_66 = arith.constant 0 : index
    %c2048 = arith.constant 2048 : index
    %119 = vector.load %arg19[%c0_66, %c2048] : memref<2x2560xf32, #tpu.memory_space<vmem>>, vector<2x256xf32>
    tpu.vector_store %arg19[%c0_66, %c2048], %118 {strides = array<i32>} : memref<2x2560xf32, #tpu.memory_space<vmem>>, vector<2x256xf32>,
    %c16_67 = arith.constant 16 : index
    %c0_68 = arith.constant 0 : index
    %120 = vector.load %arg17[%c16_67, %c0_68] : memref<18x256xf32, #tpu.memory_space<vmem>>, vector<2x256xf32>
    %121 = vector.broadcast %22 : vector<1x256xf32> to vector<2x256xf32>
    %122 = arith.addf %120, %121 : vector<2x256xf32>
    %cst_69 = arith.constant 0.000000e+00 : f32
    %123 = vector.broadcast %cst_69 : f32 to vector<2x256xf32>
    %124 = arith.cmpf oge, %122, %123 : vector<2x256xf32>
    %125 = vector.broadcast %1 : f32 to vector<2x256xf32>
    %126 = arith.mulf %125, %122 : vector<2x256xf32>
    %127 = arith.select %124, %122, %126 : vector<2x256xi1>, vector<2x256xf32>
    %c0_70 = arith.constant 0 : index
    %c2304 = arith.constant 2304 : index
    %128 = vector.load %arg19[%c0_70, %c2304] : memref<2x2560xf32, #tpu.memory_space<vmem>>, vector<2x256xf32>
    tpu.vector_store %arg19[%c0_70, %c2304], %127 {strides = array<i32>} : memref<2x2560xf32, #tpu.memory_space<vmem>>, vector<2x256xf32>,
    %c0_71 = arith.constant 0 : index
    %c0_72 = arith.constant 0 : index
    %129 = vector.load %arg19[%c0_71, %c0_72] : memref<2x2560xf32, #tpu.memory_space<vmem>>, vector<2x2560xf32>
    %130 = arith.truncf %129 : vector<2x2560xf32> to vector<2x2560xbf16>
    %c0_73 = arith.constant 0 : index
    %c0_74 = arith.constant 0 : index
    %131 = vector.load %arg8[%c0_73, %c0_74] : memref<2560x256xbf16, #tpu.memory_space<vmem>>, vector<2560x256xbf16>
    %cst_75 = arith.constant dense<0.000000e+00> : vector<2x256xf32>
    %132 = tpu.matmul %130, %131, %cst_75 {dimension_numbers = #tpu.dot_dimension_numbers<[1], [0], [0], [1], [0, 0, 1, 1], [], []>} : vector<2x2560xbf16>, vector<2560x256xbf16>, vector<2x256xf32> -> vector<2x256xf32>
    %c0_76 = arith.constant 0 : index
    %c0_77 = arith.constant 0 : index
    %133 = vector.load %arg9[%c0_76, %c0_77] : memref<1x256xf32, #tpu.memory_space<vmem>>, vector<1x256xf32>
    %134 = vector.broadcast %133 : vector<1x256xf32> to vector<2x256xf32>
    %135 = arith.addf %132, %134 : vector<2x256xf32>
    %cst_78 = arith.constant 0.000000e+00 : f32
    %136 = vector.broadcast %cst_78 : f32 to vector<2x256xf32>
    %137 = arith.cmpf oge, %135, %136 : vector<2x256xf32>
    %138 = vector.broadcast %2 : f32 to vector<2x256xf32>
    %139 = arith.mulf %138, %135 : vector<2x256xf32>
    %140 = arith.select %137, %135, %139 : vector<2x256xi1>, vector<2x256xf32>
    %141 = arith.truncf %140 : vector<2x256xf32> to vector<2x256xbf16>
    %c0_79 = arith.constant 0 : index
    %c0_80 = arith.constant 0 : index
    %142 = vector.load %arg11[%c0_79, %c0_80] : memref<256x256xbf16, #tpu.memory_space<vmem>>, vector<256x256xbf16>
    %cst_81 = arith.constant dense<0.000000e+00> : vector<2x256xf32>
    %143 = tpu.matmul %141, %142, %cst_81 {dimension_numbers = #tpu.dot_dimension_numbers<[1], [0], [0], [1], [0, 0, 1, 1], [], []>} : vector<2x256xbf16>, vector<256x256xbf16>, vector<2x256xf32> -> vector<2x256xf32>
    %c0_82 = arith.constant 0 : index
    %c0_83 = arith.constant 0 : index
    %144 = vector.load %arg12[%c0_82, %c0_83] : memref<1x256xf32, #tpu.memory_space<vmem>>, vector<1x256xf32>
    %145 = vector.broadcast %144 : vector<1x256xf32> to vector<2x256xf32>
    %146 = arith.addf %143, %145 : vector<2x256xf32>
    %cst_84 = arith.constant 0.000000e+00 : f32
    %147 = vector.broadcast %cst_84 : f32 to vector<2x256xf32>
    %148 = arith.cmpf oge, %146, %147 : vector<2x256xf32>
    %149 = vector.broadcast %3 : f32 to vector<2x256xf32>
    %150 = arith.mulf %149, %146 : vector<2x256xf32>
    %151 = arith.select %148, %146, %150 : vector<2x256xi1>, vector<2x256xf32>
    %c0_85 = arith.constant 0 : index
    %c0_86 = arith.constant 0 : index
    %152 = vector.load %arg14[%c0_85, %c0_86] : memref<256x2xf32, #tpu.memory_space<vmem>>, vector<256x2xf32>
    %cst_87 = arith.constant dense<0.000000e+00> : vector<2x2xf32>
    %153 = tpu.matmul %151, %152, %cst_87 {dimension_numbers = #tpu.dot_dimension_numbers<[1], [0], [0], [1], [0, 0, 1, 1], [], []>} : vector<2x256xf32>, vector<256x2xf32>, vector<2x2xf32> -> vector<2x2xf32>
    %c0_88 = arith.constant 0 : index
    %c0_89 = arith.constant 0 : index
    %154 = vector.load %arg15[%c0_88, %c0_89] : memref<1x2xf32, #tpu.memory_space<vmem>>, vector<1x2xf32>
    %155 = vector.broadcast %154 : vector<1x2xf32> to vector<2x2xf32>
    %156 = arith.addf %153, %155 : vector<2x2xf32>
    %c0_90 = arith.constant 0 : index
    %c0_91 = arith.constant 0 : index
    %157 = vector.load %arg16[%c0_90, %c0_91] : memref<2x2xf32, #tpu.memory_space<vmem>>, vector<2x2xf32>
    tpu.vector_store %arg16[%c0_90, %c0_91], %156 {strides = array<i32>} : memref<2x2xf32, #tpu.memory_space<vmem>>, vector<2x2xf32>,
    return
  }
}

</mosaic_0001>

<llo_original>
// kernel: embedding_net_forward.1
$region0: #{embedding_net_forward.1}
  #allocation0 [shape = 'u32[]', space=smem, size = 0x4, offset = 0x4, fixed_abs, tag = 'smem constant byte address 0x4 - core index']
  #allocation1 [shape = 'u32[72,128]{1,0:T(1,128)}', space=vmem, size = 0x9000, scoped, tag = 'internal scratch']
  #allocation2 [shape = 'f32[18,256]{1,0:T(8,128)}', space=vmem, size = 0x6000, scoped, tag = 'scratch operand']
  #allocation3 [shape = 'f32[18,256]{1,0:T(8,128)}', space=vmem, size = 0x6000, scoped, tag = 'scratch operand']
  #allocation4 [shape = 'f32[2,2560]{1,0:T(2,128)}', space=vmem, size = 0x5000, scoped, tag = 'scratch operand']
  #allocation5 [shape = 'f32[1]{0:T(128)S(6)}', space=smem, size = 0x200, scoped, tag = 'scoped memory for embedding_net_forward.1']
  #allocation6 [shape = 'f32[1]{0:T(128)S(6)}', space=smem, size = 0x200, scoped, tag = 'scoped memory for embedding_net_forward.1']
  #allocation7 [shape = 'f32[1]{0:T(128)S(6)}', space=smem, size = 0x200, scoped, tag = 'scoped memory for embedding_net_forward.1']
  #allocation8 [shape = 'f32[1]{0:T(128)S(6)}', space=smem, size = 0x200, scoped, tag = 'scoped memory for embedding_net_forward.1']
  %s0 = inlined_call_operand.vmem [shape: f32[18,24], index: 0, kind: input, shape index: {}]
  %s1 = inlined_call_operand.vmem [shape: f32[24,128], index: 1, kind: input, shape index: {}]
  %s2 = inlined_call_operand.vmem [shape: f32[1,128], index: 2, kind: input, shape index: {}]
  %s3 = inlined_call_operand.<no memory space> [shape: f32[1], index: 3, kind: input, shape index: {}]
  %s4 = inlined_call_operand.vmem [shape: bf16[128,256], index: 4, kind: input, shape index: {}]
  %s5 = inlined_call_operand.vmem [shape: bf16[128,256], index: 5, kind: input, shape index: {}]
  %s6 = inlined_call_operand.vmem [shape: f32[1,256], index: 6, kind: input, shape index: {}]
  %s7 = inlined_call_operand.<no memory space> [shape: f32[1], index: 7, kind: input, shape index: {}]
  %s8 = inlined_call_operand.vmem [shape: bf16[2560,256], index: 8, kind: input, shape index: {}]
  %s9 = inlined_call_operand.vmem [shape: f32[1,256], index: 9, kind: input, shape index: {}]
  %s10 = inlined_call_operand.<no memory space> [shape: f32[1], index: 10, kind: input, shape index: {}]
  %s11 = inlined_call_operand.vmem [shape: bf16[256,256], index: 11, kind: input, shape index: {}]
  %s12 = inlined_call_operand.vmem [shape: f32[1,256], index: 12, kind: input, shape index: {}]
  %s13 = inlined_call_operand.<no memory space> [shape: f32[1], index: 13, kind: input, shape index: {}]
  %s14 = inlined_call_operand.vmem [shape: f32[256,2], index: 14, kind: input, shape index: {}]
  %s15 = inlined_call_operand.vmem [shape: f32[1,2], index: 15, kind: input, shape index: {}]
  %s16 = inlined_call_operand.hbm [shape: f32[2,2], index: 16, kind: output, shape index: {}]
  %s17 = sld [smem:[#allocation0]]
  $region74: #{embedding_net_forward.1} parent=0
    _
  %s19 = ssub.s32 1, %s17
  %s20 = scalar_select 0, %s19, %s17
  %21 = sst [smem:[#allocation5]] %s3
  %22 = sst [smem:[#allocation6]] %s7
  %23 = sst [smem:[#allocation7]] %s10
  %24 = sst [smem:[#allocation8]] %s13
  $region1: #{embedding_net_forward.1} parent=0
    #allocation9 [shape = 'u8[1024]{0}', space=vmem, size = 0x400, scoped, tag = 'output window, operand 0, single buffered']
    #allocation10 [shape = 's32[1]{0}', space=sflag, size = 0x4, scoped, tag = 'scoped memory for embedding_net_forward.1']
    %25 = vsyncpa [#allocation10], 0
    // Predicated region
    $region2: #{embedding_net_forward.1} parent=1 // pred_check
      _
    $region3: #{embedding_net_forward.1} parent=1 // pred_check_branch
      %27 = sbr.rel (0) target = $region5
    $region4: #{embedding_net_forward.1} parent=1 // pred_region
      _
    $region5: #{embedding_net_forward.1} parent=1 // pred_fallthru
      _
    // Predicated region
    $region6: #{embedding_net_forward.1} parent=1 // pred_check
      _
    $region7: #{embedding_net_forward.1} parent=1 // pred_check_branch
      %29 = sbr.rel (0) target = $region9
    $region8: #{embedding_net_forward.1} parent=1 // pred_region
      _
    $region9: #{embedding_net_forward.1} parent=1 // pred_fallthru
      _
    // Predicated region
    $region10: #{embedding_net_forward.1} parent=1 // pred_check
      _
    $region11: #{embedding_net_forward.1} parent=1 // pred_check_branch
      %31 = sbr.rel (0) target = $region13
    $region12: #{embedding_net_forward.1} parent=1 // pred_region
      _
    $region13: #{embedding_net_forward.1} parent=1 // pred_fallthru
      _
    // Predicated region
    $region14: #{embedding_net_forward.1} parent=1 // pred_check
      _
    $region15: #{embedding_net_forward.1} parent=1 // pred_check_branch
      %33 = sbr.rel (0) target = $region17
    $region16: #{embedding_net_forward.1} parent=1 // pred_region
      _
    $region17: #{embedding_net_forward.1} parent=1 // pred_fallthru
      _
    // Predicated region
    $region18: #{embedding_net_forward.1} parent=1 // pred_check
      _
    $region19: #{embedding_net_forward.1} parent=1 // pred_check_branch
      %35 = sbr.rel (0) target = $region21
    $region20: #{embedding_net_forward.1} parent=1 // pred_region
      _
    $region21: #{embedding_net_forward.1} parent=1 // pred_fallthru
      _
    // Predicated region
    $region22: #{embedding_net_forward.1} parent=1 // pred_check
      _
    $region23: #{embedding_net_forward.1} parent=1 // pred_check_branch
      %37 = sbr.rel (0) target = $region25
    $region24: #{embedding_net_forward.1} parent=1 // pred_region
      _
    $region25: #{embedding_net_forward.1} parent=1 // pred_fallthru
      _
    // Predicated region
    $region26: #{embedding_net_forward.1} parent=1 // pred_check
      _
    $region27: #{embedding_net_forward.1} parent=1 // pred_check_branch
      %39 = sbr.rel (0) target = $region29
    $region28: #{embedding_net_forward.1} parent=1 // pred_region
      _
    $region29: #{embedding_net_forward.1} parent=1 // pred_fallthru
      _
    // Predicated region
    $region30: #{embedding_net_forward.1} parent=1 // pred_check
      _
    $region31: #{embedding_net_forward.1} parent=1 // pred_check_branch
      %41 = sbr.rel (0) target = $region33
    $region32: #{embedding_net_forward.1} parent=1 // pred_region
      _
    $region33: #{embedding_net_forward.1} parent=1 // pred_fallthru
      _
    // Predicated region
    $region34: #{embedding_net_forward.1} parent=1 // pred_check
      _
    $region35: #{embedding_net_forward.1} parent=1 // pred_check_branch
      %43 = sbr.rel (0) target = $region37
    $region36: #{embedding_net_forward.1} parent=1 // pred_region
      _
    $region37: #{embedding_net_forward.1} parent=1 // pred_fallthru
      _
    // Predicated region
    $region38: #{embedding_net_forward.1} parent=1 // pred_check
      _
    $region39: #{embedding_net_forward.1} parent=1 // pred_check_branch
      %45 = sbr.rel (0) target = $region41
    $region40: #{embedding_net_forward.1} parent=1 // pred_region
      _
    $region41: #{embedding_net_forward.1} parent=1 // pred_fallthru
      _
    // Predicated region
    $region42: #{embedding_net_forward.1} parent=1 // pred_check
      _
    $region43: #{embedding_net_forward.1} parent=1 // pred_check_branch
      %47 = sbr.rel (0) target = $region45
    $region44: #{embedding_net_forward.1} parent=1 // pred_region
      _
    $region45: #{embedding_net_forward.1} parent=1 // pred_fallthru
      _
    // Predicated region
    $region46: #{embedding_net_forward.1} parent=1 // pred_check
      _
    $region47: #{embedding_net_forward.1} parent=1 // pred_check_branch
      %49 = sbr.rel (0) target = $region49
    $region48: #{embedding_net_forward.1} parent=1 // pred_region
      _
    $region49: #{embedding_net_forward.1} parent=1 // pred_fallthru
      _
    // Predicated region
    $region50: #{embedding_net_forward.1} parent=1 // pred_check
      _
    $region51: #{embedding_net_forward.1} parent=1 // pred_check_branch
      %51 = sbr.rel (0) target = $region53
    $region52: #{embedding_net_forward.1} parent=1 // pred_region
      _
    $region53: #{embedding_net_forward.1} parent=1 // pred_fallthru
      _
    // Predicated region
    $region54: #{embedding_net_forward.1} parent=1 // pred_check
      _
    $region55: #{embedding_net_forward.1} parent=1 // pred_check_branch
      %53 = sbr.rel (0) target = $region57
    $region56: #{embedding_net_forward.1} parent=1 // pred_region
      _
    $region57: #{embedding_net_forward.1} parent=1 // pred_fallthru
      _
    // Predicated region
    $region58: #{embedding_net_forward.1} parent=1 // pred_check
      _
    $region59: #{embedding_net_forward.1} parent=1 // pred_check_branch
      %55 = sbr.rel (0) target = $region61
    $region60: #{embedding_net_forward.1} parent=1 // pred_region
      _
    $region61: #{embedding_net_forward.1} parent=1 // pred_fallthru
      _
    // Predicated region
    $region62: #{embedding_net_forward.1} parent=1 // pred_check
      _
    $region63: #{embedding_net_forward.1} parent=1 // pred_check_branch
      %57 = sbr.rel (0) target = $region65
    $region64: #{embedding_net_forward.1} parent=1 // pred_region
      _
    $region65: #{embedding_net_forward.1} parent=1 // pred_fallthru
      _
    %s58 = sld [smem:[#allocation5]]
    %s59 = sld [smem:[#allocation6]]
    %s60 = sld [smem:[#allocation7]]
    %s61 = sld [smem:[#allocation8]]
    %v62 = vld [vmem:[%s0] sm:$0xff]
    %v63 = vld [vmem:[%s0 + $0x8] sm:$0xff]
    %v64 = vld [vmem:[%s0 + $0x10] sm:$0x3]
    %v65 = vld [vmem:[%s1] sm:$0xff]
    %v66 = vld [vmem:[%s1 + $0x8] sm:$0xff]
    %v67 = vld [vmem:[%s1 + $0x10] sm:$0xff]
    %v68 = vld [vmem:[%s2] sm:$0x1]
    %v70 = vperm.slane %v68, 0
    %vm72 = vcmask 195584
    %v74 = vsel %vm72, %v62, 0
    %v77 = vsel %vm72, %v63, 0
    %v80 = vsel %vm72, %v64, 0
    %82 = vmatpush.msra.mxu0 0.0
    %83 = vmatpush.msra.mxu0 0.0
    %84 = vmatpush.msra.mxu0 0.0
    %85 = vmatpush.msra.mxu0 0.0
    %86 = vmatpush.msra.mxu0 0.0
    %87 = vmatpush.msra.mxu0 0.0
    %88 = vmatpush.msra.mxu0 0.0
    %89 = vmatpush.msra.mxu0 0.0
    %90 = vmatpush.msra.mxu0 0.0
    %91 = vmatpush.msra.mxu0 0.0
    %92 = vmatpush.msra.mxu0 0.0
    %93 = vmatpush.msra.mxu0 0.0
    %94 = vmatpush.msra.mxu0 0.0
    %95 = vmatpush.msra.mxu0 %v67
    %96 = vmatpush.msra.mxu0 %v66
    %97 = vmatpush.msra.mxu0 %v65
    %98 = vmatmul.f32.gmra.mxu0 %v74
    %v99 = vpop.f32.mrf.mxu0
    %v100 = vadd.f32 %v70, %v99
    %101 = vmatmul.f32.gmra.mxu0 %v77
    %v102 = vpop.f32.mrf.mxu0
    %v103 = vadd.f32 %v70, %v102
    %104 = vmatmul.f32.gmra.mxu0 %v80
    %v105 = vpop.f32.mrf.mxu0
    %v106 = vadd.f32 %v70, %v105
    %107 = vdwg.mxu0
    %vm108 = vcmp.ge.f32.partialorder %v100, 0.0
    %vm109 = vcmp.ge.f32.partialorder %v103, 0.0
    %vm110 = vcmp.ge.f32.partialorder %v106, 0.0
    %v111 = vstv %s58
    %v112 = vmul.f32 %v111, %v100
    %v113 = vmul.f32 %v111, %v103
    %v114 = vmul.f32 %v111, %v106
    %v115 = vsel %vm108, %v100, %v112
    %v116 = vsel %vm109, %v103, %v113
    %v117 = vsel %vm110, %v106, %v114
    %v118 = vpack.c.bf16 %v116, %v115
    %v119 = vpack.c.bf16 %v117, %v117
    %v120 = vld [vmem:[%s4] sm:$0xff]
    %v121 = vld [vmem:[%s4 + $0x8] sm:$0xff]
    %v122 = vld [vmem:[%s4 + $0x10] sm:$0xff]
    %v123 = vld [vmem:[%s4 + $0x18] sm:$0xff]
    %v124 = vld [vmem:[%s4 + $0x20] sm:$0xff]
    %v125 = vld [vmem:[%s4 + $0x28] sm:$0xff]
    %v126 = vld [vmem:[%s4 + $0x30] sm:$0xff]
    %v127 = vld [vmem:[%s4 + $0x38] sm:$0xff]
    %v128 = vld [vmem:[%s4 + $0x40] sm:$0xff]
    %v129 = vld [vmem:[%s4 + $0x48] sm:$0xff]
    %v130 = vld [vmem:[%s4 + $0x50] sm:$0xff]
    %v131 = vld [vmem:[%s4 + $0x58] sm:$0xff]
    %v132 = vld [vmem:[%s4 + $0x60] sm:$0xff]
    %v133 = vld [vmem:[%s4 + $0x68] sm:$0xff]
    %v134 = vld [vmem:[%s4 + $0x70] sm:$0xff]
    %v135 = vld [vmem:[%s4 + $0x78] sm:$0xff]
    %v152 = vunpack.c.l.b16 %v120
    %v153 = vunpack.c.h.b16 %v120
    %v154 = vunpack.c.l.b16 %v121
    %v155 = vunpack.c.h.b16 %v121
    %v156 = vunpack.c.l.b16 %v122
    %v157 = vunpack.c.h.b16 %v122
    %v158 = vunpack.c.l.b16 %v123
    %v159 = vunpack.c.h.b16 %v123
    %v160 = vunpack.c.l.b16 %v124
    %v161 = vunpack.c.h.b16 %v124
    %v162 = vunpack.c.l.b16 %v125
    %v163 = vunpack.c.h.b16 %v125
    %v164 = vunpack.c.l.b16 %v126
    %v165 = vunpack.c.h.b16 %v126
    %v166 = vunpack.c.l.b16 %v127
    %v167 = vunpack.c.h.b16 %v127
    %v168 = vunpack.c.l.b16 %v128
    %v169 = vunpack.c.h.b16 %v128
    %v170 = vunpack.c.l.b16 %v129
    %v171 = vunpack.c.h.b16 %v129
    %v172 = vunpack.c.l.b16 %v130
    %v173 = vunpack.c.h.b16 %v130
    %v174 = vunpack.c.l.b16 %v131
    %v175 = vunpack.c.h.b16 %v131
    %v176 = vunpack.c.l.b16 %v132
    %v177 = vunpack.c.h.b16 %v132
    %v178 = vunpack.c.l.b16 %v133
    %v179 = vunpack.c.h.b16 %v133
    %v180 = vunpack.c.l.b16 %v134
    %v181 = vunpack.c.h.b16 %v134
    %v182 = vunpack.c.l.b16 %v135
    %v183 = vunpack.c.h.b16 %v135
    %v184 = vpack.c.b16 %v154, %v152
    %v185 = vpack.c.b16 %v155, %v153
    %v186 = vpack.c.b16 %v158, %v156
    %v187 = vpack.c.b16 %v159, %v157
    %v188 = vpack.c.b16 %v162, %v160
    %v189 = vpack.c.b16 %v163, %v161
    %v190 = vpack.c.b16 %v166, %v164
    %v191 = vpack.c.b16 %v167, %v165
    %v192 = vpack.c.b16 %v170, %v168
    %v193 = vpack.c.b16 %v171, %v169
    %v194 = vpack.c.b16 %v174, %v172
    %v195 = vpack.c.b16 %v175, %v173
    %v196 = vpack.c.b16 %v178, %v176
    %v197 = vpack.c.b16 %v179, %v177
    %v198 = vpack.c.b16 %v182, %v180
    %v199 = vpack.c.b16 %v183, %v181
    %216 = vmatpush.bf16.msra.mxu0 %v198
    %217 = vmatpush.bf16.msra.mxu0 %v196
    %218 = vmatpush.bf16.msra.mxu0 %v194
    %219 = vmatpush.bf16.msra.mxu0 %v192
    %220 = vmatpush.bf16.msra.mxu0 %v190
    %221 = vmatpush.bf16.msra.mxu0 %v188
    %222 = vmatpush.bf16.msra.mxu0 %v186
    %223 = vmatpush.bf16.msra.mxu0 %v184
    %224 = vmatmul.bf16.gmra.mxu0 %v118
    %v225 = vpop.f32.mrf.mxu0
    %v226 = vadd.f32 0.0, %v225
    %v227 = vpop.f32.mrf.mxu0
    %v228 = vadd.f32 0.0, %v227
    %229 = vmatmul.bf16.gmra.mxu0 %v119
    %v230 = vpop.f32.mrf.mxu0
    %v231 = vadd.f32 0.0, %v230
    %v232 = vpop.f32.mrf.mxu0
    %233 = vdwg.mxu0
    %234 = vmatpush.bf16.msra.mxu0 %v199
    %235 = vmatpush.bf16.msra.mxu0 %v197
    %236 = vmatpush.bf16.msra.mxu0 %v195
    %237 = vmatpush.bf16.msra.mxu0 %v193
    %238 = vmatpush.bf16.msra.mxu0 %v191
    %239 = vmatpush.bf16.msra.mxu0 %v189
    %240 = vmatpush.bf16.msra.mxu0 %v187
    %241 = vmatpush.bf16.msra.mxu0 %v185
    %242 = vmatmul.bf16.gmra.mxu0 %v118
    %v243 = vpop.f32.mrf.mxu0
    %v244 = vadd.f32 0.0, %v243
    %v245 = vpop.f32.mrf.mxu0
    %v246 = vadd.f32 0.0, %v245
    %247 = vmatmul.bf16.gmra.mxu0 %v119
    %v248 = vpop.f32.mrf.mxu0
    %v249 = vadd.f32 0.0, %v248
    %v250 = vpop.f32.mrf.mxu0
    %251 = vdwg.mxu0
    %252 = vst [vmem:[#allocation2] sm:$0xff] %v226
    %253 = vst [vmem:[#allocation2 + $0x8] sm:$0xff] %v244
    %254 = vst [vmem:[#allocation2 + $0x10] sm:$0xff] %v228
    %255 = vst [vmem:[#allocation2 + $0x18] sm:$0xff] %v246
    %256 = vst [vmem:[#allocation2 + $0x20] sm:$0x3] %v231
    %257 = vst [vmem:[#allocation2 + $0x28] sm:$0x3] %v249
    %v258 = vld [vmem:[%s5] sm:$0xff]
    %v259 = vld [vmem:[%s5 + $0x8] sm:$0xff]
    %v260 = vld [vmem:[%s5 + $0x10] sm:$0xff]
    %v261 = vld [vmem:[%s5 + $0x18] sm:$0xff]
    %v262 = vld [vmem:[%s5 + $0x20] sm:$0xff]
    %v263 = vld [vmem:[%s5 + $0x28] sm:$0xff]
    %v264 = vld [vmem:[%s5 + $0x30] sm:$0xff]
    %v265 = vld [vmem:[%s5 + $0x38] sm:$0xff]
    %v266 = vld [vmem:[%s5 + $0x40] sm:$0xff]
    %v267 = vld [vmem:[%s5 + $0x48] sm:$0xff]
    %v268 = vld [vmem:[%s5 + $0x50] sm:$0xff]
    %v269 = vld [vmem:[%s5 + $0x58] sm:$0xff]
    %v270 = vld [vmem:[%s5 + $0x60] sm:$0xff]
    %v271 = vld [vmem:[%s5 + $0x68] sm:$0xff]
    %v272 = vld [vmem:[%s5 + $0x70] sm:$0xff]
    %v273 = vld [vmem:[%s5 + $0x78] sm:$0xff]
    %v290 = vunpack.c.l.b16 %v258
    %v291 = vunpack.c.h.b16 %v258
    %v292 = vunpack.c.l.b16 %v259
    %v293 = vunpack.c.h.b16 %v259
    %v294 = vunpack.c.l.b16 %v260
    %v295 = vunpack.c.h.b16 %v260
    %v296 = vunpack.c.l.b16 %v261
    %v297 = vunpack.c.h.b16 %v261
    %v298 = vunpack.c.l.b16 %v262
    %v299 = vunpack.c.h.b16 %v262
    %v300 = vunpack.c.l.b16 %v263
    %v301 = vunpack.c.h.b16 %v263
    %v302 = vunpack.c.l.b16 %v264
    %v303 = vunpack.c.h.b16 %v264
    %v304 = vunpack.c.l.b16 %v265
    %v305 = vunpack.c.h.b16 %v265
    %v306 = vunpack.c.l.b16 %v266
    %v307 = vunpack.c.h.b16 %v266
    %v308 = vunpack.c.l.b16 %v267
    %v309 = vunpack.c.h.b16 %v267
    %v310 = vunpack.c.l.b16 %v268
    %v311 = vunpack.c.h.b16 %v268
    %v312 = vunpack.c.l.b16 %v269
    %v313 = vunpack.c.h.b16 %v269
    %v314 = vunpack.c.l.b16 %v270
    %v315 = vunpack.c.h.b16 %v270
    %v316 = vunpack.c.l.b16 %v271
    %v317 = vunpack.c.h.b16 %v271
    %v318 = vunpack.c.l.b16 %v272
    %v319 = vunpack.c.h.b16 %v272
    %v320 = vunpack.c.l.b16 %v273
    %v321 = vunpack.c.h.b16 %v273
    %v322 = vpack.c.b16 %v292, %v290
    %v323 = vpack.c.b16 %v293, %v291
    %v324 = vpack.c.b16 %v296, %v294
    %v325 = vpack.c.b16 %v297, %v295
    %v326 = vpack.c.b16 %v300, %v298
    %v327 = vpack.c.b16 %v301, %v299
    %v328 = vpack.c.b16 %v304, %v302
    %v329 = vpack.c.b16 %v305, %v303
    %v330 = vpack.c.b16 %v308, %v306
    %v331 = vpack.c.b16 %v309, %v307
    %v332 = vpack.c.b16 %v312, %v310
    %v333 = vpack.c.b16 %v313, %v311
    %v334 = vpack.c.b16 %v316, %v314
    %v335 = vpack.c.b16 %v317, %v315
    %v336 = vpack.c.b16 %v320, %v318
    %v337 = vpack.c.b16 %v321, %v319
    %354 = vmatpush.bf16.msra.mxu0 %v336
    %355 = vmatpush.bf16.msra.mxu0 %v334
    %356 = vmatpush.bf16.msra.mxu0 %v332
    %357 = vmatpush.bf16.msra.mxu0 %v330
    %358 = vmatpush.bf16.msra.mxu0 %v328
    %359 = vmatpush.bf16.msra.mxu0 %v326
    %360 = vmatpush.bf16.msra.mxu0 %v324
    %361 = vmatpush.bf16.msra.mxu0 %v322
    %362 = vmatmul.bf16.gmra.mxu0 %v118
    %v363 = vpop.f32.mrf.mxu0
    %v364 = vadd.f32 0.0, %v363
    %v365 = vpop.f32.mrf.mxu0
    %v366 = vadd.f32 0.0, %v365
    %367 = vmatmul.bf16.gmra.mxu0 %v119
    %v368 = vpop.f32.mrf.mxu0
    %v369 = vadd.f32 0.0, %v368
    %v370 = vpop.f32.mrf.mxu0
    %371 = vdwg.mxu0
    %372 = vmatpush.bf16.msra.mxu0 %v337
    %373 = vmatpush.bf16.msra.mxu0 %v335
    %374 = vmatpush.bf16.msra.mxu0 %v333
    %375 = vmatpush.bf16.msra.mxu0 %v331
    %376 = vmatpush.bf16.msra.mxu0 %v329
    %377 = vmatpush.bf16.msra.mxu0 %v327
    %378 = vmatpush.bf16.msra.mxu0 %v325
    %379 = vmatpush.bf16.msra.mxu0 %v323
    %380 = vmatmul.bf16.gmra.mxu0 %v118
    %v381 = vpop.f32.mrf.mxu0
    %v382 = vadd.f32 0.0, %v381
    %v383 = vpop.f32.mrf.mxu0
    %v384 = vadd.f32 0.0, %v383
    %385 = vmatmul.bf16.gmra.mxu0 %v119
    %v386 = vpop.f32.mrf.mxu0
    %v387 = vadd.f32 0.0, %v386
    %v388 = vpop.f32.mrf.mxu0
    %389 = vdwg.mxu0
    %390 = vst [vmem:[#allocation3] sm:$0xff] %v364
    %391 = vst [vmem:[#allocation3 + $0x8] sm:$0xff] %v382
    %392 = vst [vmem:[#allocation3 + $0x10] sm:$0xff] %v366
    %393 = vst [vmem:[#allocation3 + $0x18] sm:$0xff] %v384
    %394 = vst [vmem:[#allocation3 + $0x20] sm:$0x3] %v369
    %395 = vst [vmem:[#allocation3 + $0x28] sm:$0x3] %v387
    %v396 = vld [vmem:[%s6] sm:$0x3]
    %v397 = vld [vmem:[#allocation3] sm:$0x3]
    %v398 = vld [vmem:[#allocation3 + $0x8] sm:$0x3]
    %v400 = vperm.slane %v396, 0
    %v401 = vperm.slane %v396, 1
    %v404 = vadd.f32 %v397, %v400
    %v405 = vadd.f32 %v398, %v401
    %vm406 = vcmp.ge.f32.partialorder %v404, 0.0
    %vm407 = vcmp.ge.f32.partialorder %v405, 0.0
    %v408 = vstv %s59
    %v409 = vmul.f32 %v408, %v404
    %v410 = vmul.f32 %v408, %v405
    %v411 = vsel %vm406, %v404, %v409
    %v412 = vsel %vm407, %v405, %v410
    %v415 = vrot.slane %v412, 6
    %vm416 = vcmask 1041408
    %v417 = vsel %vm416, %v411, %v415
    %419 = vst [vmem:[#allocation4] sm:$0xf] %v417
    %v420 = vld [vmem:[#allocation2] sm:$0x3]
    %v421 = vld [vmem:[#allocation2 + $0x8] sm:$0x3]
    %v422 = vld [vmem:[#allocation3] sm:$0xc]
    %v423 = vld [vmem:[#allocation3 + $0x8] sm:$0xc]
    %v426 = vrot.slane %v422, 2
    %v427 = vrot.slane %v423, 2
    %v430 = vadd.f32 %v420, %v426
    %v431 = vadd.f32 %v421, %v427
    %v432 = vadd.f32 %v430, %v400
    %v433 = vadd.f32 %v431, %v401
    %vm434 = vcmp.ge.f32.partialorder %v432, 0.0
    %vm435 = vcmp.ge.f32.partialorder %v433, 0.0
    %v436 = vmul.f32 %v408, %v432
    %v437 = vmul.f32 %v408, %v433
    %v438 = vsel %vm434, %v432, %v436
    %v439 = vsel %vm435, %v433, %v437
    %v442 = vrot.slane %v439, 6
    %v443 = vsel %vm416, %v438, %v442
    %445 = vst [vmem:[#allocation4 + $0x4] sm:$0xf] %v443
    %v446 = vld [vmem:[#allocation2] sm:$0xc]
    %v447 = vld [vmem:[#allocation2 + $0x8] sm:$0xc]
    %v448 = vld [vmem:[#allocation3] sm:$0x30]
    %v449 = vld [vmem:[#allocation3 + $0x8] sm:$0x30]
    %v452 = vrot.slane %v448, 2
    %v453 = vrot.slane %v449, 2
    %v456 = vadd.f32 %v446, %v452
    %v457 = vadd.f32 %v447, %v453
    %v458 = vadd.f32 %v456, %v400
    %v459 = vadd.f32 %v457, %v401
    %vm460 = vcmp.ge.f32.partialorder %v458, 0.0
    %vm461 = vcmp.ge.f32.partialorder %v459, 0.0
    %v462 = vmul.f32 %v408, %v458
    %v463 = vmul.f32 %v408, %v459
    %v464 = vsel %vm460, %v458, %v462
    %v465 = vsel %vm461, %v459, %v463
    %468 = vst.sshfl [vmem:[#allocation1] sm:$0xff pattern:$0x73625140] %v464
    %469 = vst.sshfl [vmem:[#allocation1 + $0x8] sm:$0xff pattern:$0x73625140] %v465
    %s470 = scalar_lea.vmem [#allocation1], 1
    %v471 = vld [vmem:[%s470] ss:$4 sm:$0xff]
    %473 = vst [vmem:[#allocation4 + $0x8] sm:$0xf] %v471
    %v474 = vld [vmem:[#allocation2] sm:$0x30]
    %v475 = vld [vmem:[#allocation2 + $0x8] sm:$0x30]
    %v476 = vld [vmem:[#allocation3] sm:$0xc0]
    %v477 = vld [vmem:[#allocation3 + $0x8] sm:$0xc0]
    %v480 = vrot.slane %v476, 2
    %v481 = vrot.slane %v477, 2
    %v484 = vadd.f32 %v474, %v480
    %v485 = vadd.f32 %v475, %v481
    %v486 = vadd.f32 %v484, %v400
    %v487 = vadd.f32 %v485, %v401
    %vm488 = vcmp.ge.f32.partialorder %v486, 0.0
    %vm489 = vcmp.ge.f32.partialorder %v487, 0.0
    %v490 = vmul.f32 %v408, %v486
    %v491 = vmul.f32 %v408, %v487
    %v492 = vsel %vm488, %v486, %v490
    %v493 = vsel %vm489, %v487, %v491
    %496 = vst.sshfl [vmem:[#allocation1] sm:$0xff pattern:$0x73625140] %v492
    %497 = vst.sshfl [vmem:[#allocation1 + $0x8] sm:$0xff pattern:$0x73625140] %v493
    %s498 = scalar_lea.vmem [#allocation1], 2
    %v499 = vld [vmem:[%s498] ss:$4 sm:$0xff]
    %501 = vst [vmem:[#allocation4 + $0xc] sm:$0xf] %v499
    %v502 = vld [vmem:[#allocation2] sm:$0xc0]
    %v503 = vld [vmem:[#allocation2 + $0x8] sm:$0xc0]
    %v504 = vld [vmem:[#allocation3 + $0x10] sm:$0x3]
    %v505 = vld [vmem:[#allocation3 + $0x18] sm:$0x3]
    %v508 = vrot.slane %v504, 2
    %v509 = vrot.slane %v505, 2
    %v512 = vadd.f32 %v502, %v508
    %v513 = vadd.f32 %v503, %v509
    %v514 = vadd.f32 %v512, %v400
    %v515 = vadd.f32 %v513, %v401
    %vm516 = vcmp.ge.f32.partialorder %v514, 0.0
    %vm517 = vcmp.ge.f32.partialorder %v515, 0.0
    %v518 = vmul.f32 %v408, %v514
    %v519 = vmul.f32 %v408, %v515
    %v520 = vsel %vm516, %v514, %v518
    %v521 = vsel %vm517, %v515, %v519
    %524 = vst.sshfl [vmem:[#allocation1] sm:$0xff pattern:$0x73625140] %v520
    %525 = vst.sshfl [vmem:[#allocation1 + $0x8] sm:$0xff pattern:$0x73625140] %v521
    %s526 = scalar_lea.vmem [#allocation1], 3
    %v527 = vld [vmem:[%s526] ss:$4 sm:$0xff]
    %529 = vst [vmem:[#allocation4 + $0x10] sm:$0xf] %v527
    %v530 = vld [vmem:[#allocation2 + $0x10] sm:$0x3]
    %v531 = vld [vmem:[#allocation2 + $0x18] sm:$0x3]
    %v532 = vld [vmem:[#allocation3 + $0x10] sm:$0xc]
    %v533 = vld [vmem:[#allocation3 + $0x18] sm:$0xc]
    %v536 = vrot.slane %v532, 2
    %v537 = vrot.slane %v533, 2
    %v540 = vadd.f32 %v530, %v536
    %v541 = vadd.f32 %v531, %v537
    %v542 = vadd.f32 %v540, %v400
    %v543 = vadd.f32 %v541, %v401
    %vm544 = vcmp.ge.f32.partialorder %v542, 0.0
    %vm545 = vcmp.ge.f32.partialorder %v543, 0.0
    %v546 = vmul.f32 %v408, %v542
    %v547 = vmul.f32 %v408, %v543
    %v548 = vsel %vm544, %v542, %v546
    %v549 = vsel %vm545, %v543, %v547
    %v552 = vrot.slane %v549, 6
    %v553 = vsel %vm416, %v548, %v552
    %555 = vst [vmem:[#allocation4 + $0x14] sm:$0xf] %v553
    %v556 = vld [vmem:[#allocation2 + $0x10] sm:$0xc]
    %v557 = vld [vmem:[#allocation2 + $0x18] sm:$0xc]
    %v558 = vld [vmem:[#allocation3 + $0x10] sm:$0x30]
    %v559 = vld [vmem:[#allocation3 + $0x18] sm:$0x30]
    %v562 = vrot.slane %v558, 2
    %v563 = vrot.slane %v559, 2
    %v566 = vadd.f32 %v556, %v562
    %v567 = vadd.f32 %v557, %v563
    %v568 = vadd.f32 %v566, %v400
    %v569 = vadd.f32 %v567, %v401
    %vm570 = vcmp.ge.f32.partialorder %v568, 0.0
    %vm571 = vcmp.ge.f32.partialorder %v569, 0.0
    %v572 = vmul.f32 %v408, %v568
    %v573 = vmul.f32 %v408, %v569
    %v574 = vsel %vm570, %v568, %v572
    %v575 = vsel %vm571, %v569, %v573
    %578 = vst.sshfl [vmem:[#allocation1] sm:$0xff pattern:$0x73625140] %v574
    %579 = vst.sshfl [vmem:[#allocation1 + $0x8] sm:$0xff pattern:$0x73625140] %v575
    %s580 = scalar_lea.vmem [#allocation1], 1
    %v581 = vld [vmem:[%s580] ss:$4 sm:$0xff]
    %583 = vst [vmem:[#allocation4 + $0x18] sm:$0xf] %v581
    %v584 = vld [vmem:[#allocation2 + $0x10] sm:$0x30]
    %v585 = vld [vmem:[#allocation2 + $0x18] sm:$0x30]
    %v586 = vld [vmem:[#allocation3 + $0x10] sm:$0xc0]
    %v587 = vld [vmem:[#allocation3 + $0x18] sm:$0xc0]
    %v590 = vrot.slane %v586, 2
    %v591 = vrot.slane %v587, 2
    %v594 = vadd.f32 %v584, %v590
    %v595 = vadd.f32 %v585, %v591
    %v596 = vadd.f32 %v594, %v400
    %v597 = vadd.f32 %v595, %v401
    %vm598 = vcmp.ge.f32.partialorder %v596, 0.0
    %vm599 = vcmp.ge.f32.partialorder %v597, 0.0
    %v600 = vmul.f32 %v408, %v596
    %v601 = vmul.f32 %v408, %v597
    %v602 = vsel %vm598, %v596, %v600
    %v603 = vsel %vm599, %v597, %v601
    %606 = vst.sshfl [vmem:[#allocation1] sm:$0xff pattern:$0x73625140] %v602
    %607 = vst.sshfl [vmem:[#allocation1 + $0x8] sm:$0xff pattern:$0x73625140] %v603
    %s608 = scalar_lea.vmem [#allocation1], 2
    %v609 = vld [vmem:[%s608] ss:$4 sm:$0xff]
    %611 = vst [vmem:[#allocation4 + $0x1c] sm:$0xf] %v609
    %v612 = vld [vmem:[#allocation2 + $0x10] sm:$0xc0]
    %v613 = vld [vmem:[#allocation2 + $0x18] sm:$0xc0]
    %v614 = vld [vmem:[#allocation3 + $0x20] sm:$0x3]
    %v615 = vld [vmem:[#allocation3 + $0x28] sm:$0x3]
    %v618 = vrot.slane %v614, 2
    %v619 = vrot.slane %v615, 2
    %v622 = vadd.f32 %v612, %v618
    %v623 = vadd.f32 %v613, %v619
    %v624 = vadd.f32 %v622, %v400
    %v625 = vadd.f32 %v623, %v401
    %vm626 = vcmp.ge.f32.partialorder %v624, 0.0
    %vm627 = vcmp.ge.f32.partialorder %v625, 0.0
    %v628 = vmul.f32 %v408, %v624
    %v629 = vmul.f32 %v408, %v625
    %v630 = vsel %vm626, %v624, %v628
    %v631 = vsel %vm627, %v625, %v629
    %634 = vst.sshfl [vmem:[#allocation1] sm:$0xff pattern:$0x73625140] %v630
    %635 = vst.sshfl [vmem:[#allocation1 + $0x8] sm:$0xff pattern:$0x73625140] %v631
    %s636 = scalar_lea.vmem [#allocation1], 3
    %v637 = vld [vmem:[%s636] ss:$4 sm:$0xff]
    %639 = vst [vmem:[#allocation4 + $0x20] sm:$0xf] %v637
    %v640 = vld [vmem:[#allocation2 + $0x20] sm:$0x3]
    %v641 = vld [vmem:[#allocation2 + $0x28] sm:$0x3]
    %v642 = vadd.f32 %v640, %v400
    %v643 = vadd.f32 %v641, %v401
    %vm644 = vcmp.ge.f32.partialorder %v642, 0.0
    %vm645 = vcmp.ge.f32.partialorder %v643, 0.0
    %v646 = vmul.f32 %v408, %v642
    %v647 = vmul.f32 %v408, %v643
    %v648 = vsel %vm644, %v642, %v646
    %v649 = vsel %vm645, %v643, %v647
    %v652 = vrot.slane %v649, 6
    %v653 = vsel %vm416, %v648, %v652
    %655 = vst [vmem:[#allocation4 + $0x24] sm:$0xf] %v653
    %v656 = vld [vmem:[#allocation4] sm:$0xff]
    %v657 = vld [vmem:[#allocation4 + $0x8] sm:$0xff]
    %v658 = vld [vmem:[#allocation4 + $0x10] sm:$0xff]
    %v659 = vld [vmem:[#allocation4 + $0x18] sm:$0xff]
    %v660 = vld [vmem:[#allocation4 + $0x20] sm:$0xff]
    %666 = vst [vmem:[#allocation1] ss:$4 sm:$0xff] %v656
    %s667 = scalar_lea.vmem [#allocation1], 32
    %668 = vst [vmem:[%s667] ss:$4 sm:$0xff] %v657
    %v669 = vld.sshfl [vmem:[#allocation1] sm:$0xff pattern:$0x73625140]
    %v670 = vld.sshfl [vmem:[#allocation1 + $0x8] sm:$0xff pattern:$0x73625140]
    %v671 = vld.sshfl [vmem:[#allocation1 + $0x10] sm:$0xff pattern:$0x73625140]
    %v672 = vld.sshfl [vmem:[#allocation1 + $0x18] sm:$0xff pattern:$0x73625140]
    %v673 = vld.sshfl [vmem:[#allocation1 + $0x20] sm:$0xff pattern:$0x73625140]
    %v674 = vld.sshfl [vmem:[#allocation1 + $0x28] sm:$0xff pattern:$0x73625140]
    %v675 = vld.sshfl [vmem:[#allocation1 + $0x30] sm:$0xff pattern:$0x73625140]
    %v676 = vld.sshfl [vmem:[#allocation1 + $0x38] sm:$0xff pattern:$0x73625140]
    %677 = vst [vmem:[#allocation1] ss:$4 sm:$0xff] %v658
    %678 = vst [vmem:[%s667] ss:$4 sm:$0xff] %v659
    %v679 = vld.sshfl [vmem:[#allocation1] sm:$0xff pattern:$0x73625140]
    %v680 = vld.sshfl [vmem:[#allocation1 + $0x8] sm:$0xff pattern:$0x73625140]
    %v681 = vld.sshfl [vmem:[#allocation1 + $0x10] sm:$0xff pattern:$0x73625140]
    %v682 = vld.sshfl [vmem:[#allocation1 + $0x18] sm:$0xff pattern:$0x73625140]
    %v683 = vld.sshfl [vmem:[#allocation1 + $0x20] sm:$0xff pattern:$0x73625140]
    %v684 = vld.sshfl [vmem:[#allocation1 + $0x28] sm:$0xff pattern:$0x73625140]
    %v685 = vld.sshfl [vmem:[#allocation1 + $0x30] sm:$0xff pattern:$0x73625140]
    %v686 = vld.sshfl [vmem:[#allocation1 + $0x38] sm:$0xff pattern:$0x73625140]
    %687 = vst [vmem:[#allocation1] ss:$4 sm:$0xff] %v660
    %v688 = vld.sshfl [vmem:[#allocation1] sm:$0xff pattern:$0x73625140]
    %v689 = vld.sshfl [vmem:[#allocation1 + $0x8] sm:$0xff pattern:$0x73625140]
    %v690 = vld.sshfl [vmem:[#allocation1 + $0x10] sm:$0xff pattern:$0x73625140]
    %v691 = vld.sshfl [vmem:[#allocation1 + $0x18] sm:$0xff pattern:$0x73625140]
    %v712 = vpack.c.bf16 %v669, %v669
    %v713 = vpack.c.bf16 %v670, %v670
    %v714 = vpack.c.bf16 %v671, %v671
    %v715 = vpack.c.bf16 %v672, %v672
    %v716 = vpack.c.bf16 %v673, %v673
    %v717 = vpack.c.bf16 %v674, %v674
    %v718 = vpack.c.bf16 %v675, %v675
    %v719 = vpack.c.bf16 %v676, %v676
    %v720 = vpack.c.bf16 %v679, %v679
    %v721 = vpack.c.bf16 %v680, %v680
    %v722 = vpack.c.bf16 %v681, %v681
    %v723 = vpack.c.bf16 %v682, %v682
    %v724 = vpack.c.bf16 %v683, %v683
    %v725 = vpack.c.bf16 %v684, %v684
    %v726 = vpack.c.bf16 %v685, %v685
    %v727 = vpack.c.bf16 %v686, %v686
    %v728 = vpack.c.bf16 %v688, %v688
    %v729 = vpack.c.bf16 %v689, %v689
    %v730 = vpack.c.bf16 %v690, %v690
    %v731 = vpack.c.bf16 %v691, %v691
    %v732 = vld [vmem:[%s8] sm:$0xff]
    %v733 = vld [vmem:[%s8 + $0x8] sm:$0xff]
    %v734 = vld [vmem:[%s8 + $0x10] sm:$0xff]
    %v735 = vld [vmem:[%s8 + $0x18] sm:$0xff]
    %v736 = vld [vmem:[%s8 + $0x20] sm:$0xff]
    %v737 = vld [vmem:[%s8 + $0x28] sm:$0xff]
    %v738 = vld [vmem:[%s8 + $0x30] sm:$0xff]
    %v739 = vld [vmem:[%s8 + $0x38] sm:$0xff]
    %v740 = vld [vmem:[%s8 + $0x40] sm:$0xff]
    %v741 = vld [vmem:[%s8 + $0x48] sm:$0xff]
    %v742 = vld [vmem:[%s8 + $0x50] sm:$0xff]
    %v743 = vld [vmem:[%s8 + $0x58] sm:$0xff]
    %v744 = vld [vmem:[%s8 + $0x60] sm:$0xff]
    %v745 = vld [vmem:[%s8 + $0x68] sm:$0xff]
    %v746 = vld [vmem:[%s8 + $0x70] sm:$0xff]
    %v747 = vld [vmem:[%s8 + $0x78] sm:$0xff]
    %v748 = vld [vmem:[%s8 + $0x80] sm:$0xff]
    %v749 = vld [vmem:[%s8 + $0x88] sm:$0xff]
    %v750 = vld [vmem:[%s8 + $0x90] sm:$0xff]
    %v751 = vld [vmem:[%s8 + $0x98] sm:$0xff]
    %v752 = vld [vmem:[%s8 + $0xa0] sm:$0xff]
    %v753 = vld [vmem:[%s8 + $0xa8] sm:$0xff]
    %v754 = vld [vmem:[%s8 + $0xb0] sm:$0xff]
    %v755 = vld [vmem:[%s8 + $0xb8] sm:$0xff]
    %v756 = vld [vmem:[%s8 + $0xc0] sm:$0xff]
    %v757 = vld [vmem:[%s8 + $0xc8] sm:$0xff]
    %v758 = vld [vmem:[%s8 + $0xd0] sm:$0xff]
    %v759 = vld [vmem:[%s8 + $0xd8] sm:$0xff]
    %v760 = vld [vmem:[%s8 + $0xe0] sm:$0xff]
    %v761 = vld [vmem:[%s8 + $0xe8] sm:$0xff]
    %v762 = vld [vmem:[%s8 + $0xf0] sm:$0xff]
    %v763 = vld [vmem:[%s8 + $0xf8] sm:$0xff]
    %v764 = vld [vmem:[%s8 + $0x100] sm:$0xff]
    %v765 = vld [vmem:[%s8 + $0x108] sm:$0xff]
    %v766 = vld [vmem:[%s8 + $0x110] sm:$0xff]
    %v767 = vld [vmem:[%s8 + $0x118] sm:$0xff]
    %v768 = vld [vmem:[%s8 + $0x120] sm:$0xff]
    %v769 = vld [vmem:[%s8 + $0x128] sm:$0xff]
    %v770 = vld [vmem:[%s8 + $0x130] sm:$0xff]
    %v771 = vld [vmem:[%s8 + $0x138] sm:$0xff]
    %v772 = vld [vmem:[%s8 + $0x140] sm:$0xff]
    %v773 = vld [vmem:[%s8 + $0x148] sm:$0xff]
    %v774 = vld [vmem:[%s8 + $0x150] sm:$0xff]
    %v775 = vld [vmem:[%s8 + $0x158] sm:$0xff]
    %v776 = vld [vmem:[%s8 + $0x160] sm:$0xff]
    %v777 = vld [vmem:[%s8 + $0x168] sm:$0xff]
    %v778 = vld [vmem:[%s8 + $0x170] sm:$0xff]
    %v779 = vld [vmem:[%s8 + $0x178] sm:$0xff]
    %v780 = vld [vmem:[%s8 + $0x180] sm:$0xff]
    %v781 = vld [vmem:[%s8 + $0x188] sm:$0xff]
    %v782 = vld [vmem:[%s8 + $0x190] sm:$0xff]
    %v783 = vld [vmem:[%s8 + $0x198] sm:$0xff]
    %v784 = vld [vmem:[%s8 + $0x1a0] sm:$0xff]
    %v785 = vld [vmem:[%s8 + $0x1a8] sm:$0xff]
    %v786 = vld [vmem:[%s8 + $0x1b0] sm:$0xff]
    %v787 = vld [vmem:[%s8 + $0x1b8] sm:$0xff]
    %v788 = vld [vmem:[%s8 + $0x1c0] sm:$0xff]
    %v789 = vld [vmem:[%s8 + $0x1c8] sm:$0xff]
    %v790 = vld [vmem:[%s8 + $0x1d0] sm:$0xff]
    %v791 = vld [vmem:[%s8 + $0x1d8] sm:$0xff]
    %v792 = vld [vmem:[%s8 + $0x1e0] sm:$0xff]
    %v793 = vld [vmem:[%s8 + $0x1e8] sm:$0xff]
    %v794 = vld [vmem:[%s8 + $0x1f0] sm:$0xff]
    %v795 = vld [vmem:[%s8 + $0x1f8] sm:$0xff]
    %v796 = vld [vmem:[%s8 + $0x200] sm:$0xff]
    %v797 = vld [vmem:[%s8 + $0x208] sm:$0xff]
    %v798 = vld [vmem:[%s8 + $0x210] sm:$0xff]
    %v799 = vld [vmem:[%s8 + $0x218] sm:$0xff]
    %v800 = vld [vmem:[%s8 + $0x220] sm:$0xff]
    %v801 = vld [vmem:[%s8 + $0x228] sm:$0xff]
    %v802 = vld [vmem:[%s8 + $0x230] sm:$0xff]
    %v803 = vld [vmem:[%s8 + $0x238] sm:$0xff]
    %v804 = vld [vmem:[%s8 + $0x240] sm:$0xff]
    %v805 = vld [vmem:[%s8 + $0x248] sm:$0xff]
    %v806 = vld [vmem:[%s8 + $0x250] sm:$0xff]
    %v807 = vld [vmem:[%s8 + $0x258] sm:$0xff]
    %v808 = vld [vmem:[%s8 + $0x260] sm:$0xff]
    %v809 = vld [vmem:[%s8 + $0x268] sm:$0xff]
    %v810 = vld [vmem:[%s8 + $0x270] sm:$0xff]
    %v811 = vld [vmem:[%s8 + $0x278] sm:$0xff]
    %v812 = vld [vmem:[%s8 + $0x280] sm:$0xff]
    %v813 = vld [vmem:[%s8 + $0x288] sm:$0xff]
    %v814 = vld [vmem:[%s8 + $0x290] sm:$0xff]
    %v815 = vld [vmem:[%s8 + $0x298] sm:$0xff]
    %v816 = vld [vmem:[%s8 + $0x2a0] sm:$0xff]
    %v817 = vld [vmem:[%s8 + $0x2a8] sm:$0xff]
    %v818 = vld [vmem:[%s8 + $0x2b0] sm:$0xff]
    %v819 = vld [vmem:[%s8 + $0x2b8] sm:$0xff]
    %v820 = vld [vmem:[%s8 + $0x2c0] sm:$0xff]
    %v821 = vld [vmem:[%s8 + $0x2c8] sm:$0xff]
    %v822 = vld [vmem:[%s8 + $0x2d0] sm:$0xff]
    %v823 = vld [vmem:[%s8 + $0x2d8] sm:$0xff]
    %v824 = vld [vmem:[%s8 + $0x2e0] sm:$0xff]
    %v825 = vld [vmem:[%s8 + $0x2e8] sm:$0xff]
    %v826 = vld [vmem:[%s8 + $0x2f0] sm:$0xff]
    %v827 = vld [vmem:[%s8 + $0x2f8] sm:$0xff]
    %v828 = vld [vmem:[%s8 + $0x300] sm:$0xff]
    %v829 = vld [vmem:[%s8 + $0x308] sm:$0xff]
    %v830 = vld [vmem:[%s8 + $0x310] sm:$0xff]
    %v831 = vld [vmem:[%s8 + $0x318] sm:$0xff]
    %v832 = vld [vmem:[%s8 + $0x320] sm:$0xff]
    %v833 = vld [vmem:[%s8 + $0x328] sm:$0xff]
    %v834 = vld [vmem:[%s8 + $0x330] sm:$0xff]
    %v835 = vld [vmem:[%s8 + $0x338] sm:$0xff]
    %v836 = vld [vmem:[%s8 + $0x340] sm:$0xff]
    %v837 = vld [vmem:[%s8 + $0x348] sm:$0xff]
    %v838 = vld [vmem:[%s8 + $0x350] sm:$0xff]
    %v839 = vld [vmem:[%s8 + $0x358] sm:$0xff]
    %v840 = vld [vmem:[%s8 + $0x360] sm:$0xff]
    %v841 = vld [vmem:[%s8 + $0x368] sm:$0xff]
    %v842 = vld [vmem:[%s8 + $0x370] sm:$0xff]
    %v843 = vld [vmem:[%s8 + $0x378] sm:$0xff]
    %v844 = vld [vmem:[%s8 + $0x380] sm:$0xff]
    %v845 = vld [vmem:[%s8 + $0x388] sm:$0xff]
    %v846 = vld [vmem:[%s8 + $0x390] sm:$0xff]
    %v847 = vld [vmem:[%s8 + $0x398] sm:$0xff]
    %v848 = vld [vmem:[%s8 + $0x3a0] sm:$0xff]
    %v849 = vld [vmem:[%s8 + $0x3a8] sm:$0xff]
    %v850 = vld [vmem:[%s8 + $0x3b0] sm:$0xff]
    %v851 = vld [vmem:[%s8 + $0x3b8] sm:$0xff]
    %v852 = vld [vmem:[%s8 + $0x3c0] sm:$0xff]
    %v853 = vld [vmem:[%s8 + $0x3c8] sm:$0xff]
    %v854 = vld [vmem:[%s8 + $0x3d0] sm:$0xff]
    %v855 = vld [vmem:[%s8 + $0x3d8] sm:$0xff]
    %v856 = vld [vmem:[%s8 + $0x3e0] sm:$0xff]
    %v857 = vld [vmem:[%s8 + $0x3e8] sm:$0xff]
    %v858 = vld [vmem:[%s8 + $0x3f0] sm:$0xff]
    %v859 = vld [vmem:[%s8 + $0x3f8] sm:$0xff]
    %v860 = vld [vmem:[%s8 + $0x400] sm:$0xff]
    %v861 = vld [vmem:[%s8 + $0x408] sm:$0xff]
    %v862 = vld [vmem:[%s8 + $0x410] sm:$0xff]
    %v863 = vld [vmem:[%s8 + $0x418] sm:$0xff]
    %v864 = vld [vmem:[%s8 + $0x420] sm:$0xff]
    %v865 = vld [vmem:[%s8 + $0x428] sm:$0xff]
    %v866 = vld [vmem:[%s8 + $0x430] sm:$0xff]
    %v867 = vld [vmem:[%s8 + $0x438] sm:$0xff]
    %v868 = vld [vmem:[%s8 + $0x440] sm:$0xff]
    %v869 = vld [vmem:[%s8 + $0x448] sm:$0xff]
    %v870 = vld [vmem:[%s8 + $0x450] sm:$0xff]
    %v871 = vld [vmem:[%s8 + $0x458] sm:$0xff]
    %v872 = vld [vmem:[%s8 + $0x460] sm:$0xff]
    %v873 = vld [vmem:[%s8 + $0x468] sm:$0xff]
    %v874 = vld [vmem:[%s8 + $0x470] sm:$0xff]
    %v875 = vld [vmem:[%s8 + $0x478] sm:$0xff]
    %v876 = vld [vmem:[%s8 + $0x480] sm:$0xff]
    %v877 = vld [vmem:[%s8 + $0x488] sm:$0xff]
    %v878 = vld [vmem:[%s8 + $0x490] sm:$0xff]
    %v879 = vld [vmem:[%s8 + $0x498] sm:$0xff]
    %v880 = vld [vmem:[%s8 + $0x4a0] sm:$0xff]
    %v881 = vld [vmem:[%s8 + $0x4a8] sm:$0xff]
    %v882 = vld [vmem:[%s8 + $0x4b0] sm:$0xff]
    %v883 = vld [vmem:[%s8 + $0x4b8] sm:$0xff]
    %v884 = vld [vmem:[%s8 + $0x4c0] sm:$0xff]
    %v885 = vld [vmem:[%s8 + $0x4c8] sm:$0xff]
    %v886 = vld [vmem:[%s8 + $0x4d0] sm:$0xff]
    %v887 = vld [vmem:[%s8 + $0x4d8] sm:$0xff]
    %v888 = vld [vmem:[%s8 + $0x4e0] sm:$0xff]
    %v889 = vld [vmem:[%s8 + $0x4e8] sm:$0xff]
    %v890 = vld [vmem:[%s8 + $0x4f0] sm:$0xff]
    %v891 = vld [vmem:[%s8 + $0x4f8] sm:$0xff]
    %v892 = vld [vmem:[%s8 + $0x500] sm:$0xff]
    %v893 = vld [vmem:[%s8 + $0x508] sm:$0xff]
    %v894 = vld [vmem:[%s8 + $0x510] sm:$0xff]
    %v895 = vld [vmem:[%s8 + $0x518] sm:$0xff]
    %v896 = vld [vmem:[%s8 + $0x520] sm:$0xff]
    %v897 = vld [vmem:[%s8 + $0x528] sm:$0xff]
    %v898 = vld [vmem:[%s8 + $0x530] sm:$0xff]
    %v899 = vld [vmem:[%s8 + $0x538] sm:$0xff]
    %v900 = vld [vmem:[%s8 + $0x540] sm:$0xff]
    %v901 = vld [vmem:[%s8 + $0x548] sm:$0xff]
    %v902 = vld [vmem:[%s8 + $0x550] sm:$0xff]
    %v903 = vld [vmem:[%s8 + $0x558] sm:$0xff]
    %v904 = vld [vmem:[%s8 + $0x560] sm:$0xff]
    %v905 = vld [vmem:[%s8 + $0x568] sm:$0xff]
    %v906 = vld [vmem:[%s8 + $0x570] sm:$0xff]
    %v907 = vld [vmem:[%s8 + $0x578] sm:$0xff]
    %v908 = vld [vmem:[%s8 + $0x580] sm:$0xff]
    %v909 = vld [vmem:[%s8 + $0x588] sm:$0xff]
    %v910 = vld [vmem:[%s8 + $0x590] sm:$0xff]
    %v911 = vld [vmem:[%s8 + $0x598] sm:$0xff]
    %v912 = vld [vmem:[%s8 + $0x5a0] sm:$0xff]
    %v913 = vld [vmem:[%s8 + $0x5a8] sm:$0xff]
    %v914 = vld [vmem:[%s8 + $0x5b0] sm:$0xff]
    %v915 = vld [vmem:[%s8 + $0x5b8] sm:$0xff]
    %v916 = vld [vmem:[%s8 + $0x5c0] sm:$0xff]
    %v917 = vld [vmem:[%s8 + $0x5c8] sm:$0xff]
    %v918 = vld [vmem:[%s8 + $0x5d0] sm:$0xff]
    %v919 = vld [vmem:[%s8 + $0x5d8] sm:$0xff]
    %v920 = vld [vmem:[%s8 + $0x5e0] sm:$0xff]
    %v921 = vld [vmem:[%s8 + $0x5e8] sm:$0xff]
    %v922 = vld [vmem:[%s8 + $0x5f0] sm:$0xff]
    %v923 = vld [vmem:[%s8 + $0x5f8] sm:$0xff]
    %v924 = vld [vmem:[%s8 + $0x600] sm:$0xff]
    %v925 = vld [vmem:[%s8 + $0x608] sm:$0xff]
    %v926 = vld [vmem:[%s8 + $0x610] sm:$0xff]
    %v927 = vld [vmem:[%s8 + $0x618] sm:$0xff]
    %v928 = vld [vmem:[%s8 + $0x620] sm:$0xff]
    %v929 = vld [vmem:[%s8 + $0x628] sm:$0xff]
    %v930 = vld [vmem:[%s8 + $0x630] sm:$0xff]
    %v931 = vld [vmem:[%s8 + $0x638] sm:$0xff]
    %v932 = vld [vmem:[%s8 + $0x640] sm:$0xff]
    %v933 = vld [vmem:[%s8 + $0x648] sm:$0xff]
    %v934 = vld [vmem:[%s8 + $0x650] sm:$0xff]
    %v935 = vld [vmem:[%s8 + $0x658] sm:$0xff]
    %v936 = vld [vmem:[%s8 + $0x660] sm:$0xff]
    %v937 = vld [vmem:[%s8 + $0x668] sm:$0xff]
    %v938 = vld [vmem:[%s8 + $0x670] sm:$0xff]
    %v939 = vld [vmem:[%s8 + $0x678] sm:$0xff]
    %v940 = vld [vmem:[%s8 + $0x680] sm:$0xff]
    %v941 = vld [vmem:[%s8 + $0x688] sm:$0xff]
    %v942 = vld [vmem:[%s8 + $0x690] sm:$0xff]
    %v943 = vld [vmem:[%s8 + $0x698] sm:$0xff]
    %v944 = vld [vmem:[%s8 + $0x6a0] sm:$0xff]
    %v945 = vld [vmem:[%s8 + $0x6a8] sm:$0xff]
    %v946 = vld [vmem:[%s8 + $0x6b0] sm:$0xff]
    %v947 = vld [vmem:[%s8 + $0x6b8] sm:$0xff]
    %v948 = vld [vmem:[%s8 + $0x6c0] sm:$0xff]
    %v949 = vld [vmem:[%s8 + $0x6c8] sm:$0xff]
    %v950 = vld [vmem:[%s8 + $0x6d0] sm:$0xff]
    %v951 = vld [vmem:[%s8 + $0x6d8] sm:$0xff]
    %v952 = vld [vmem:[%s8 + $0x6e0] sm:$0xff]
    %v953 = vld [vmem:[%s8 + $0x6e8] sm:$0xff]
    %v954 = vld [vmem:[%s8 + $0x6f0] sm:$0xff]
    %v955 = vld [vmem:[%s8 + $0x6f8] sm:$0xff]
    %v956 = vld [vmem:[%s8 + $0x700] sm:$0xff]
    %v957 = vld [vmem:[%s8 + $0x708] sm:$0xff]
    %v958 = vld [vmem:[%s8 + $0x710] sm:$0xff]
    %v959 = vld [vmem:[%s8 + $0x718] sm:$0xff]
    %v960 = vld [vmem:[%s8 + $0x720] sm:$0xff]
    %v961 = vld [vmem:[%s8 + $0x728] sm:$0xff]
    %v962 = vld [vmem:[%s8 + $0x730] sm:$0xff]
    %v963 = vld [vmem:[%s8 + $0x738] sm:$0xff]
    %v964 = vld [vmem:[%s8 + $0x740] sm:$0xff]
    %v965 = vld [vmem:[%s8 + $0x748] sm:$0xff]
    %v966 = vld [vmem:[%s8 + $0x750] sm:$0xff]
    %v967 = vld [vmem:[%s8 + $0x758] sm:$0xff]
    %v968 = vld [vmem:[%s8 + $0x760] sm:$0xff]
    %v969 = vld [vmem:[%s8 + $0x768] sm:$0xff]
    %v970 = vld [vmem:[%s8 + $0x770] sm:$0xff]
    %v971 = vld [vmem:[%s8 + $0x778] sm:$0xff]
    %v972 = vld [vmem:[%s8 + $0x780] sm:$0xff]
    %v973 = vld [vmem:[%s8 + $0x788] sm:$0xff]
    %v974 = vld [vmem:[%s8 + $0x790] sm:$0xff]
    %v975 = vld [vmem:[%s8 + $0x798] sm:$0xff]
    %v976 = vld [vmem:[%s8 + $0x7a0] sm:$0xff]
    %v977 = vld [vmem:[%s8 + $0x7a8] sm:$0xff]
    %v978 = vld [vmem:[%s8 + $0x7b0] sm:$0xff]
    %v979 = vld [vmem:[%s8 + $0x7b8] sm:$0xff]
    %v980 = vld [vmem:[%s8 + $0x7c0] sm:$0xff]
    %v981 = vld [vmem:[%s8 + $0x7c8] sm:$0xff]
    %v982 = vld [vmem:[%s8 + $0x7d0] sm:$0xff]
    %v983 = vld [vmem:[%s8 + $0x7d8] sm:$0xff]
    %v984 = vld [vmem:[%s8 + $0x7e0] sm:$0xff]
    %v985 = vld [vmem:[%s8 + $0x7e8] sm:$0xff]
    %v986 = vld [vmem:[%s8 + $0x7f0] sm:$0xff]
    %v987 = vld [vmem:[%s8 + $0x7f8] sm:$0xff]
    %v988 = vld [vmem:[%s8 + $0x800] sm:$0xff]
    %v989 = vld [vmem:[%s8 + $0x808] sm:$0xff]
    %v990 = vld [vmem:[%s8 + $0x810] sm:$0xff]
    %v991 = vld [vmem:[%s8 + $0x818] sm:$0xff]
    %v992 = vld [vmem:[%s8 + $0x820] sm:$0xff]
    %v993 = vld [vmem:[%s8 + $0x828] sm:$0xff]
    %v994 = vld [vmem:[%s8 + $0x830] sm:$0xff]
    %v995 = vld [vmem:[%s8 + $0x838] sm:$0xff]
    %v996 = vld [vmem:[%s8 + $0x840] sm:$0xff]
    %v997 = vld [vmem:[%s8 + $0x848] sm:$0xff]
    %v998 = vld [vmem:[%s8 + $0x850] sm:$0xff]
    %v999 = vld [vmem:[%s8 + $0x858] sm:$0xff]
    %v1000 = vld [vmem:[%s8 + $0x860] sm:$0xff]
    %v1001 = vld [vmem:[%s8 + $0x868] sm:$0xff]
    %v1002 = vld [vmem:[%s8 + $0x870] sm:$0xff]
    %v1003 = vld [vmem:[%s8 + $0x878] sm:$0xff]
    %v1004 = vld [vmem:[%s8 + $0x880] sm:$0xff]
    %v1005 = vld [vmem:[%s8 + $0x888] sm:$0xff]
    %v1006 = vld [vmem:[%s8 + $0x890] sm:$0xff]
    %v1007 = vld [vmem:[%s8 + $0x898] sm:$0xff]
    %v1008 = vld [vmem:[%s8 + $0x8a0] sm:$0xff]
    %v1009 = vld [vmem:[%s8 + $0x8a8] sm:$0xff]
    %v1010 = vld [vmem:[%s8 + $0x8b0] sm:$0xff]
    %v1011 = vld [vmem:[%s8 + $0x8b8] sm:$0xff]
    %v1012 = vld [vmem:[%s8 + $0x8c0] sm:$0xff]
    %v1013 = vld [vmem:[%s8 + $0x8c8] sm:$0xff]
    %v1014 = vld [vmem:[%s8 + $0x8d0] sm:$0xff]
    %v1015 = vld [vmem:[%s8 + $0x8d8] sm:$0xff]
    %v1016 = vld [vmem:[%s8 + $0x8e0] sm:$0xff]
    %v1017 = vld [vmem:[%s8 + $0x8e8] sm:$0xff]
    %v1018 = vld [vmem:[%s8 + $0x8f0] sm:$0xff]
    %v1019 = vld [vmem:[%s8 + $0x8f8] sm:$0xff]
    %v1020 = vld [vmem:[%s8 + $0x900] sm:$0xff]
    %v1021 = vld [vmem:[%s8 + $0x908] sm:$0xff]
    %v1022 = vld [vmem:[%s8 + $0x910] sm:$0xff]
    %v1023 = vld [vmem:[%s8 + $0x918] sm:$0xff]
    %v1024 = vld [vmem:[%s8 + $0x920] sm:$0xff]
    %v1025 = vld [vmem:[%s8 + $0x928] sm:$0xff]
    %v1026 = vld [vmem:[%s8 + $0x930] sm:$0xff]
    %v1027 = vld [vmem:[%s8 + $0x938] sm:$0xff]
    %v1028 = vld [vmem:[%s8 + $0x940] sm:$0xff]
    %v1029 = vld [vmem:[%s8 + $0x948] sm:$0xff]
    %v1030 = vld [vmem:[%s8 + $0x950] sm:$0xff]
    %v1031 = vld [vmem:[%s8 + $0x958] sm:$0xff]
    %v1032 = vld [vmem:[%s8 + $0x960] sm:$0xff]
    %v1033 = vld [vmem:[%s8 + $0x968] sm:$0xff]
    %v1034 = vld [vmem:[%s8 + $0x970] sm:$0xff]
    %v1035 = vld [vmem:[%s8 + $0x978] sm:$0xff]
    %v1036 = vld [vmem:[%s8 + $0x980] sm:$0xff]
    %v1037 = vld [vmem:[%s8 + $0x988] sm:$0xff]
    %v1038 = vld [vmem:[%s8 + $0x990] sm:$0xff]
    %v1039 = vld [vmem:[%s8 + $0x998] sm:$0xff]
    %v1040 = vld [vmem:[%s8 + $0x9a0] sm:$0xff]
    %v1041 = vld [vmem:[%s8 + $0x9a8] sm:$0xff]
    %v1042 = vld [vmem:[%s8 + $0x9b0] sm:$0xff]
    %v1043 = vld [vmem:[%s8 + $0x9b8] sm:$0xff]
    %v1044 = vld [vmem:[%s8 + $0x9c0] sm:$0xff]
    %v1045 = vld [vmem:[%s8 + $0x9c8] sm:$0xff]
    %v1046 = vld [vmem:[%s8 + $0x9d0] sm:$0xff]
    %v1047 = vld [vmem:[%s8 + $0x9d8] sm:$0xff]
    %v1048 = vld [vmem:[%s8 + $0x9e0] sm:$0xff]
    %v1049 = vld [vmem:[%s8 + $0x9e8] sm:$0xff]
    %v1050 = vld [vmem:[%s8 + $0x9f0] sm:$0xff]
    %v1051 = vld [vmem:[%s8 + $0x9f8] sm:$0xff]
    %v1052 = vld [vmem:[%s9] sm:$0x3]
    %v1054 = vperm.slane %v1052, 0
    %v1055 = vperm.slane %v1052, 1
    %v1378 = vunpack.c.l.b16 %v732
    %v1379 = vunpack.c.h.b16 %v732
    %v1380 = vunpack.c.l.b16 %v733
    %v1381 = vunpack.c.h.b16 %v733
    %v1382 = vunpack.c.l.b16 %v734
    %v1383 = vunpack.c.h.b16 %v734
    %v1384 = vunpack.c.l.b16 %v735
    %v1385 = vunpack.c.h.b16 %v735
    %v1386 = vunpack.c.l.b16 %v736
    %v1387 = vunpack.c.h.b16 %v736
    %v1388 = vunpack.c.l.b16 %v737
    %v1389 = vunpack.c.h.b16 %v737
    %v1390 = vunpack.c.l.b16 %v738
    %v1391 = vunpack.c.h.b16 %v738
    %v1392 = vunpack.c.l.b16 %v739
    %v1393 = vunpack.c.h.b16 %v739
    %v1394 = vunpack.c.l.b16 %v740
    %v1395 = vunpack.c.h.b16 %v740
    %v1396 = vunpack.c.l.b16 %v741
    %v1397 = vunpack.c.h.b16 %v741
    %v1398 = vunpack.c.l.b16 %v742
    %v1399 = vunpack.c.h.b16 %v742
    %v1400 = vunpack.c.l.b16 %v743
    %v1401 = vunpack.c.h.b16 %v743
    %v1402 = vunpack.c.l.b16 %v744
    %v1403 = vunpack.c.h.b16 %v744
    %v1404 = vunpack.c.l.b16 %v745
    %v1405 = vunpack.c.h.b16 %v745
    %v1406 = vunpack.c.l.b16 %v746
    %v1407 = vunpack.c.h.b16 %v746
    %v1408 = vunpack.c.l.b16 %v747
    %v1409 = vunpack.c.h.b16 %v747
    %v1410 = vunpack.c.l.b16 %v748
    %v1411 = vunpack.c.h.b16 %v748
    %v1412 = vunpack.c.l.b16 %v749
    %v1413 = vunpack.c.h.b16 %v749
    %v1414 = vunpack.c.l.b16 %v750
    %v1415 = vunpack.c.h.b16 %v750
    %v1416 = vunpack.c.l.b16 %v751
    %v1417 = vunpack.c.h.b16 %v751
    %v1418 = vunpack.c.l.b16 %v752
    %v1419 = vunpack.c.h.b16 %v752
    %v1420 = vunpack.c.l.b16 %v753
    %v1421 = vunpack.c.h.b16 %v753
    %v1422 = vunpack.c.l.b16 %v754
    %v1423 = vunpack.c.h.b16 %v754
    %v1424 = vunpack.c.l.b16 %v755
    %v1425 = vunpack.c.h.b16 %v755
    %v1426 = vunpack.c.l.b16 %v756
    %v1427 = vunpack.c.h.b16 %v756
    %v1428 = vunpack.c.l.b16 %v757
    %v1429 = vunpack.c.h.b16 %v757
    %v1430 = vunpack.c.l.b16 %v758
    %v1431 = vunpack.c.h.b16 %v758
    %v1432 = vunpack.c.l.b16 %v759
    %v1433 = vunpack.c.h.b16 %v759
    %v1434 = vunpack.c.l.b16 %v760
    %v1435 = vunpack.c.h.b16 %v760
    %v1436 = vunpack.c.l.b16 %v761
    %v1437 = vunpack.c.h.b16 %v761
    %v1438 = vunpack.c.l.b16 %v762
    %v1439 = vunpack.c.h.b16 %v762
    %v1440 = vunpack.c.l.b16 %v763
    %v1441 = vunpack.c.h.b16 %v763
    %v1442 = vunpack.c.l.b16 %v764
    %v1443 = vunpack.c.h.b16 %v764
    %v1444 = vunpack.c.l.b16 %v765
    %v1445 = vunpack.c.h.b16 %v765
    %v1446 = vunpack.c.l.b16 %v766
    %v1447 = vunpack.c.h.b16 %v766
    %v1448 = vunpack.c.l.b16 %v767
    %v1449 = vunpack.c.h.b16 %v767
    %v1450 = vunpack.c.l.b16 %v768
    %v1451 = vunpack.c.h.b16 %v768
    %v1452 = vunpack.c.l.b16 %v769
    %v1453 = vunpack.c.h.b16 %v769
    %v1454 = vunpack.c.l.b16 %v770
    %v1455 = vunpack.c.h.b16 %v770
    %v1456 = vunpack.c.l.b16 %v771
    %v1457 = vunpack.c.h.b16 %v771
    %v1458 = vunpack.c.l.b16 %v772
    %v1459 = vunpack.c.h.b16 %v772
    %v1460 = vunpack.c.l.b16 %v773
    %v1461 = vunpack.c.h.b16 %v773
    %v1462 = vunpack.c.l.b16 %v774
    %v1463 = vunpack.c.h.b16 %v774
    %v1464 = vunpack.c.l.b16 %v775
    %v1465 = vunpack.c.h.b16 %v775
    %v1466 = vunpack.c.l.b16 %v776
    %v1467 = vunpack.c.h.b16 %v776
    %v1468 = vunpack.c.l.b16 %v777
    %v1469 = vunpack.c.h.b16 %v777
    %v1470 = vunpack.c.l.b16 %v778
    %v1471 = vunpack.c.h.b16 %v778
    %v1472 = vunpack.c.l.b16 %v779
    %v1473 = vunpack.c.h.b16 %v779
    %v1474 = vunpack.c.l.b16 %v780
    %v1475 = vunpack.c.h.b16 %v780
    %v1476 = vunpack.c.l.b16 %v781
    %v1477 = vunpack.c.h.b16 %v781
    %v1478 = vunpack.c.l.b16 %v782
    %v1479 = vunpack.c.h.b16 %v782
    %v1480 = vunpack.c.l.b16 %v783
    %v1481 = vunpack.c.h.b16 %v783
    %v1482 = vunpack.c.l.b16 %v784
    %v1483 = vunpack.c.h.b16 %v784
    %v1484 = vunpack.c.l.b16 %v785
    %v1485 = vunpack.c.h.b16 %v785
    %v1486 = vunpack.c.l.b16 %v786
    %v1487 = vunpack.c.h.b16 %v786
    %v1488 = vunpack.c.l.b16 %v787
    %v1489 = vunpack.c.h.b16 %v787
    %v1490 = vunpack.c.l.b16 %v788
    %v1491 = vunpack.c.h.b16 %v788
    %v1492 = vunpack.c.l.b16 %v789
    %v1493 = vunpack.c.h.b16 %v789
    %v1494 = vunpack.c.l.b16 %v790
    %v1495 = vunpack.c.h.b16 %v790
    %v1496 = vunpack.c.l.b16 %v791
    %v1497 = vunpack.c.h.b16 %v791
    %v1498 = vunpack.c.l.b16 %v792
    %v1499 = vunpack.c.h.b16 %v792
    %v1500 = vunpack.c.l.b16 %v793
    %v1501 = vunpack.c.h.b16 %v793
    %v1502 = vunpack.c.l.b16 %v794
    %v1503 = vunpack.c.h.b16 %v794
    %v1504 = vunpack.c.l.b16 %v795
    %v1505 = vunpack.c.h.b16 %v795
    %v1506 = vunpack.c.l.b16 %v796
    %v1507 = vunpack.c.h.b16 %v796
    %v1508 = vunpack.c.l.b16 %v797
    %v1509 = vunpack.c.h.b16 %v797
    %v1510 = vunpack.c.l.b16 %v798
    %v1511 = vunpack.c.h.b16 %v798
    %v1512 = vunpack.c.l.b16 %v799
    %v1513 = vunpack.c.h.b16 %v799
    %v1514 = vunpack.c.l.b16 %v800
    %v1515 = vunpack.c.h.b16 %v800
    %v1516 = vunpack.c.l.b16 %v801
    %v1517 = vunpack.c.h.b16 %v801
    %v1518 = vunpack.c.l.b16 %v802
    %v1519 = vunpack.c.h.b16 %v802
    %v1520 = vunpack.c.l.b16 %v803
    %v1521 = vunpack.c.h.b16 %v803
    %v1522 = vunpack.c.l.b16 %v804
    %v1523 = vunpack.c.h.b16 %v804
    %v1524 = vunpack.c.l.b16 %v805
    %v1525 = vunpack.c.h.b16 %v805
    %v1526 = vunpack.c.l.b16 %v806
    %v1527 = vunpack.c.h.b16 %v806
    %v1528 = vunpack.c.l.b16 %v807
    %v1529 = vunpack.c.h.b16 %v807
    %v1530 = vunpack.c.l.b16 %v808
    %v1531 = vunpack.c.h.b16 %v808
    %v1532 = vunpack.c.l.b16 %v809
    %v1533 = vunpack.c.h.b16 %v809
    %v1534 = vunpack.c.l.b16 %v810
    %v1535 = vunpack.c.h.b16 %v810
    %v1536 = vunpack.c.l.b16 %v811
    %v1537 = vunpack.c.h.b16 %v811
    %v1538 = vunpack.c.l.b16 %v812
    %v1539 = vunpack.c.h.b16 %v812
    %v1540 = vunpack.c.l.b16 %v813
    %v1541 = vunpack.c.h.b16 %v813
    %v1542 = vunpack.c.l.b16 %v814
    %v1543 = vunpack.c.h.b16 %v814
    %v1544 = vunpack.c.l.b16 %v815
    %v1545 = vunpack.c.h.b16 %v815
    %v1546 = vunpack.c.l.b16 %v816
    %v1547 = vunpack.c.h.b16 %v816
    %v1548 = vunpack.c.l.b16 %v817
    %v1549 = vunpack.c.h.b16 %v817
    %v1550 = vunpack.c.l.b16 %v818
    %v1551 = vunpack.c.h.b16 %v818
    %v1552 = vunpack.c.l.b16 %v819
    %v1553 = vunpack.c.h.b16 %v819
    %v1554 = vunpack.c.l.b16 %v820
    %v1555 = vunpack.c.h.b16 %v820
    %v1556 = vunpack.c.l.b16 %v821
    %v1557 = vunpack.c.h.b16 %v821
    %v1558 = vunpack.c.l.b16 %v822
    %v1559 = vunpack.c.h.b16 %v822
    %v1560 = vunpack.c.l.b16 %v823
    %v1561 = vunpack.c.h.b16 %v823
    %v1562 = vunpack.c.l.b16 %v824
    %v1563 = vunpack.c.h.b16 %v824
    %v1564 = vunpack.c.l.b16 %v825
    %v1565 = vunpack.c.h.b16 %v825
    %v1566 = vunpack.c.l.b16 %v826
    %v1567 = vunpack.c.h.b16 %v826
    %v1568 = vunpack.c.l.b16 %v827
    %v1569 = vunpack.c.h.b16 %v827
    %v1570 = vunpack.c.l.b16 %v828
    %v1571 = vunpack.c.h.b16 %v828
    %v1572 = vunpack.c.l.b16 %v829
    %v1573 = vunpack.c.h.b16 %v829
    %v1574 = vunpack.c.l.b16 %v830
    %v1575 = vunpack.c.h.b16 %v830
    %v1576 = vunpack.c.l.b16 %v831
    %v1577 = vunpack.c.h.b16 %v831
    %v1578 = vunpack.c.l.b16 %v832
    %v1579 = vunpack.c.h.b16 %v832
    %v1580 = vunpack.c.l.b16 %v833
    %v1581 = vunpack.c.h.b16 %v833
    %v1582 = vunpack.c.l.b16 %v834
    %v1583 = vunpack.c.h.b16 %v834
    %v1584 = vunpack.c.l.b16 %v835
    %v1585 = vunpack.c.h.b16 %v835
    %v1586 = vunpack.c.l.b16 %v836
    %v1587 = vunpack.c.h.b16 %v836
    %v1588 = vunpack.c.l.b16 %v837
    %v1589 = vunpack.c.h.b16 %v837
    %v1590 = vunpack.c.l.b16 %v838
    %v1591 = vunpack.c.h.b16 %v838
    %v1592 = vunpack.c.l.b16 %v839
    %v1593 = vunpack.c.h.b16 %v839
    %v1594 = vunpack.c.l.b16 %v840
    %v1595 = vunpack.c.h.b16 %v840
    %v1596 = vunpack.c.l.b16 %v841
    %v1597 = vunpack.c.h.b16 %v841
    %v1598 = vunpack.c.l.b16 %v842
    %v1599 = vunpack.c.h.b16 %v842
    %v1600 = vunpack.c.l.b16 %v843
    %v1601 = vunpack.c.h.b16 %v843
    %v1602 = vunpack.c.l.b16 %v844
    %v1603 = vunpack.c.h.b16 %v844
    %v1604 = vunpack.c.l.b16 %v845
    %v1605 = vunpack.c.h.b16 %v845
    %v1606 = vunpack.c.l.b16 %v846
    %v1607 = vunpack.c.h.b16 %v846
    %v1608 = vunpack.c.l.b16 %v847
    %v1609 = vunpack.c.h.b16 %v847
    %v1610 = vunpack.c.l.b16 %v848
    %v1611 = vunpack.c.h.b16 %v848
    %v1612 = vunpack.c.l.b16 %v849
    %v1613 = vunpack.c.h.b16 %v849
    %v1614 = vunpack.c.l.b16 %v850
    %v1615 = vunpack.c.h.b16 %v850
    %v1616 = vunpack.c.l.b16 %v851
    %v1617 = vunpack.c.h.b16 %v851
    %v1618 = vunpack.c.l.b16 %v852
    %v1619 = vunpack.c.h.b16 %v852
    %v1620 = vunpack.c.l.b16 %v853
    %v1621 = vunpack.c.h.b16 %v853
    %v1622 = vunpack.c.l.b16 %v854
    %v1623 = vunpack.c.h.b16 %v854
    %v1624 = vunpack.c.l.b16 %v855
    %v1625 = vunpack.c.h.b16 %v855
    %v1626 = vunpack.c.l.b16 %v856
    %v1627 = vunpack.c.h.b16 %v856
    %v1628 = vunpack.c.l.b16 %v857
    %v1629 = vunpack.c.h.b16 %v857
    %v1630 = vunpack.c.l.b16 %v858
    %v1631 = vunpack.c.h.b16 %v858
    %v1632 = vunpack.c.l.b16 %v859
    %v1633 = vunpack.c.h.b16 %v859
    %v1634 = vunpack.c.l.b16 %v860
    %v1635 = vunpack.c.h.b16 %v860
    %v1636 = vunpack.c.l.b16 %v861
    %v1637 = vunpack.c.h.b16 %v861
    %v1638 = vunpack.c.l.b16 %v862
    %v1639 = vunpack.c.h.b16 %v862
    %v1640 = vunpack.c.l.b16 %v863
    %v1641 = vunpack.c.h.b16 %v863
    %v1642 = vunpack.c.l.b16 %v864
    %v1643 = vunpack.c.h.b16 %v864
    %v1644 = vunpack.c.l.b16 %v865
    %v1645 = vunpack.c.h.b16 %v865
    %v1646 = vunpack.c.l.b16 %v866
    %v1647 = vunpack.c.h.b16 %v866
    %v1648 = vunpack.c.l.b16 %v867
    %v1649 = vunpack.c.h.b16 %v867
    %v1650 = vunpack.c.l.b16 %v868
    %v1651 = vunpack.c.h.b16 %v868
    %v1652 = vunpack.c.l.b16 %v869
    %v1653 = vunpack.c.h.b16 %v869
    %v1654 = vunpack.c.l.b16 %v870
    %v1655 = vunpack.c.h.b16 %v870
    %v1656 = vunpack.c.l.b16 %v871
    %v1657 = vunpack.c.h.b16 %v871
    %v1658 = vunpack.c.l.b16 %v872
    %v1659 = vunpack.c.h.b16 %v872
    %v1660 = vunpack.c.l.b16 %v873
    %v1661 = vunpack.c.h.b16 %v873
    %v1662 = vunpack.c.l.b16 %v874
    %v1663 = vunpack.c.h.b16 %v874
    %v1664 = vunpack.c.l.b16 %v875
    %v1665 = vunpack.c.h.b16 %v875
    %v1666 = vunpack.c.l.b16 %v876
    %v1667 = vunpack.c.h.b16 %v876
    %v1668 = vunpack.c.l.b16 %v877
    %v1669 = vunpack.c.h.b16 %v877
    %v1670 = vunpack.c.l.b16 %v878
    %v1671 = vunpack.c.h.b16 %v878
    %v1672 = vunpack.c.l.b16 %v879
    %v1673 = vunpack.c.h.b16 %v879
    %v1674 = vunpack.c.l.b16 %v880
    %v1675 = vunpack.c.h.b16 %v880
    %v1676 = vunpack.c.l.b16 %v881
    %v1677 = vunpack.c.h.b16 %v881
    %v1678 = vunpack.c.l.b16 %v882
    %v1679 = vunpack.c.h.b16 %v882
    %v1680 = vunpack.c.l.b16 %v883
    %v1681 = vunpack.c.h.b16 %v883
    %v1682 = vunpack.c.l.b16 %v884
    %v1683 = vunpack.c.h.b16 %v884
    %v1684 = vunpack.c.l.b16 %v885
    %v1685 = vunpack.c.h.b16 %v885
    %v1686 = vunpack.c.l.b16 %v886
    %v1687 = vunpack.c.h.b16 %v886
    %v1688 = vunpack.c.l.b16 %v887
    %v1689 = vunpack.c.h.b16 %v887
    %v1690 = vunpack.c.l.b16 %v888
    %v1691 = vunpack.c.h.b16 %v888
    %v1692 = vunpack.c.l.b16 %v889
    %v1693 = vunpack.c.h.b16 %v889
    %v1694 = vunpack.c.l.b16 %v890
    %v1695 = vunpack.c.h.b16 %v890
    %v1696 = vunpack.c.l.b16 %v891
    %v1697 = vunpack.c.h.b16 %v891
    %v1698 = vunpack.c.l.b16 %v892
    %v1699 = vunpack.c.h.b16 %v892
    %v1700 = vunpack.c.l.b16 %v893
    %v1701 = vunpack.c.h.b16 %v893
    %v1702 = vunpack.c.l.b16 %v894
    %v1703 = vunpack.c.h.b16 %v894
    %v1704 = vunpack.c.l.b16 %v895
    %v1705 = vunpack.c.h.b16 %v895
    %v1706 = vunpack.c.l.b16 %v896
    %v1707 = vunpack.c.h.b16 %v896
    %v1708 = vunpack.c.l.b16 %v897
    %v1709 = vunpack.c.h.b16 %v897
    %v1710 = vunpack.c.l.b16 %v898
    %v1711 = vunpack.c.h.b16 %v898
    %v1712 = vunpack.c.l.b16 %v899
    %v1713 = vunpack.c.h.b16 %v899
    %v1714 = vunpack.c.l.b16 %v900
    %v1715 = vunpack.c.h.b16 %v900
    %v1716 = vunpack.c.l.b16 %v901
    %v1717 = vunpack.c.h.b16 %v901
    %v1718 = vunpack.c.l.b16 %v902
    %v1719 = vunpack.c.h.b16 %v902
    %v1720 = vunpack.c.l.b16 %v903
    %v1721 = vunpack.c.h.b16 %v903
    %v1722 = vunpack.c.l.b16 %v904
    %v1723 = vunpack.c.h.b16 %v904
    %v1724 = vunpack.c.l.b16 %v905
    %v1725 = vunpack.c.h.b16 %v905
    %v1726 = vunpack.c.l.b16 %v906
    %v1727 = vunpack.c.h.b16 %v906
    %v1728 = vunpack.c.l.b16 %v907
    %v1729 = vunpack.c.h.b16 %v907
    %v1730 = vunpack.c.l.b16 %v908
    %v1731 = vunpack.c.h.b16 %v908
    %v1732 = vunpack.c.l.b16 %v909
    %v1733 = vunpack.c.h.b16 %v909
    %v1734 = vunpack.c.l.b16 %v910
    %v1735 = vunpack.c.h.b16 %v910
    %v1736 = vunpack.c.l.b16 %v911
    %v1737 = vunpack.c.h.b16 %v911
    %v1738 = vunpack.c.l.b16 %v912
    %v1739 = vunpack.c.h.b16 %v912
    %v1740 = vunpack.c.l.b16 %v913
    %v1741 = vunpack.c.h.b16 %v913
    %v1742 = vunpack.c.l.b16 %v914
    %v1743 = vunpack.c.h.b16 %v914
    %v1744 = vunpack.c.l.b16 %v915
    %v1745 = vunpack.c.h.b16 %v915
    %v1746 = vunpack.c.l.b16 %v916
    %v1747 = vunpack.c.h.b16 %v916
    %v1748 = vunpack.c.l.b16 %v917
    %v1749 = vunpack.c.h.b16 %v917
    %v1750 = vunpack.c.l.b16 %v918
    %v1751 = vunpack.c.h.b16 %v918
    %v1752 = vunpack.c.l.b16 %v919
    %v1753 = vunpack.c.h.b16 %v919
    %v1754 = vunpack.c.l.b16 %v920
    %v1755 = vunpack.c.h.b16 %v920
    %v1756 = vunpack.c.l.b16 %v921
    %v1757 = vunpack.c.h.b16 %v921
    %v1758 = vunpack.c.l.b16 %v922
    %v1759 = vunpack.c.h.b16 %v922
    %v1760 = vunpack.c.l.b16 %v923
    %v1761 = vunpack.c.h.b16 %v923
    %v1762 = vunpack.c.l.b16 %v924
    %v1763 = vunpack.c.h.b16 %v924
    %v1764 = vunpack.c.l.b16 %v925
    %v1765 = vunpack.c.h.b16 %v925
    %v1766 = vunpack.c.l.b16 %v926
    %v1767 = vunpack.c.h.b16 %v926
    %v1768 = vunpack.c.l.b16 %v927
    %v1769 = vunpack.c.h.b16 %v927
    %v1770 = vunpack.c.l.b16 %v928
    %v1771 = vunpack.c.h.b16 %v928
    %v1772 = vunpack.c.l.b16 %v929
    %v1773 = vunpack.c.h.b16 %v929
    %v1774 = vunpack.c.l.b16 %v930
    %v1775 = vunpack.c.h.b16 %v930
    %v1776 = vunpack.c.l.b16 %v931
    %v1777 = vunpack.c.h.b16 %v931
    %v1778 = vunpack.c.l.b16 %v932
    %v1779 = vunpack.c.h.b16 %v932
    %v1780 = vunpack.c.l.b16 %v933
    %v1781 = vunpack.c.h.b16 %v933
    %v1782 = vunpack.c.l.b16 %v934
    %v1783 = vunpack.c.h.b16 %v934
    %v1784 = vunpack.c.l.b16 %v935
    %v1785 = vunpack.c.h.b16 %v935
    %v1786 = vunpack.c.l.b16 %v936
    %v1787 = vunpack.c.h.b16 %v936
    %v1788 = vunpack.c.l.b16 %v937
    %v1789 = vunpack.c.h.b16 %v937
    %v1790 = vunpack.c.l.b16 %v938
    %v1791 = vunpack.c.h.b16 %v938
    %v1792 = vunpack.c.l.b16 %v939
    %v1793 = vunpack.c.h.b16 %v939
    %v1794 = vunpack.c.l.b16 %v940
    %v1795 = vunpack.c.h.b16 %v940
    %v1796 = vunpack.c.l.b16 %v941
    %v1797 = vunpack.c.h.b16 %v941
    %v1798 = vunpack.c.l.b16 %v942
    %v1799 = vunpack.c.h.b16 %v942
    %v1800 = vunpack.c.l.b16 %v943
    %v1801 = vunpack.c.h.b16 %v943
    %v1802 = vunpack.c.l.b16 %v944
    %v1803 = vunpack.c.h.b16 %v944
    %v1804 = vunpack.c.l.b16 %v945
    %v1805 = vunpack.c.h.b16 %v945
    %v1806 = vunpack.c.l.b16 %v946
    %v1807 = vunpack.c.h.b16 %v946
    %v1808 = vunpack.c.l.b16 %v947
    %v1809 = vunpack.c.h.b16 %v947
    %v1810 = vunpack.c.l.b16 %v948
    %v1811 = vunpack.c.h.b16 %v948
    %v1812 = vunpack.c.l.b16 %v949
    %v1813 = vunpack.c.h.b16 %v949
    %v1814 = vunpack.c.l.b16 %v950
    %v1815 = vunpack.c.h.b16 %v950
    %v1816 = vunpack.c.l.b16 %v951
    %v1817 = vunpack.c.h.b16 %v951
    %v1818 = vunpack.c.l.b16 %v952
    %v1819 = vunpack.c.h.b16 %v952
    %v1820 = vunpack.c.l.b16 %v953
    %v1821 = vunpack.c.h.b16 %v953
    %v1822 = vunpack.c.l.b16 %v954
    %v1823 = vunpack.c.h.b16 %v954
    %v1824 = vunpack.c.l.b16 %v955
    %v1825 = vunpack.c.h.b16 %v955
    %v1826 = vunpack.c.l.b16 %v956
    %v1827 = vunpack.c.h.b16 %v956
    %v1828 = vunpack.c.l.b16 %v957
    %v1829 = vunpack.c.h.b16 %v957
    %v1830 = vunpack.c.l.b16 %v958
    %v1831 = vunpack.c.h.b16 %v958
    %v1832 = vunpack.c.l.b16 %v959
    %v1833 = vunpack.c.h.b16 %v959
    %v1834 = vunpack.c.l.b16 %v960
    %v1835 = vunpack.c.h.b16 %v960
    %v1836 = vunpack.c.l.b16 %v961
    %v1837 = vunpack.c.h.b16 %v961
    %v1838 = vunpack.c.l.b16 %v962
    %v1839 = vunpack.c.h.b16 %v962
    %v1840 = vunpack.c.l.b16 %v963
    %v1841 = vunpack.c.h.b16 %v963
    %v1842 = vunpack.c.l.b16 %v964
    %v1843 = vunpack.c.h.b16 %v964
    %v1844 = vunpack.c.l.b16 %v965
    %v1845 = vunpack.c.h.b16 %v965
    %v1846 = vunpack.c.l.b16 %v966
    %v1847 = vunpack.c.h.b16 %v966
    %v1848 = vunpack.c.l.b16 %v967
    %v1849 = vunpack.c.h.b16 %v967
    %v1850 = vunpack.c.l.b16 %v968
    %v1851 = vunpack.c.h.b16 %v968
    %v1852 = vunpack.c.l.b16 %v969
    %v1853 = vunpack.c.h.b16 %v969
    %v1854 = vunpack.c.l.b16 %v970
    %v1855 = vunpack.c.h.b16 %v970
    %v1856 = vunpack.c.l.b16 %v971
    %v1857 = vunpack.c.h.b16 %v971
    %v1858 = vunpack.c.l.b16 %v972
    %v1859 = vunpack.c.h.b16 %v972
    %v1860 = vunpack.c.l.b16 %v973
    %v1861 = vunpack.c.h.b16 %v973
    %v1862 = vunpack.c.l.b16 %v974
    %v1863 = vunpack.c.h.b16 %v974
    %v1864 = vunpack.c.l.b16 %v975
    %v1865 = vunpack.c.h.b16 %v975
    %v1866 = vunpack.c.l.b16 %v976
    %v1867 = vunpack.c.h.b16 %v976
    %v1868 = vunpack.c.l.b16 %v977
    %v1869 = vunpack.c.h.b16 %v977
    %v1870 = vunpack.c.l.b16 %v978
    %v1871 = vunpack.c.h.b16 %v978
    %v1872 = vunpack.c.l.b16 %v979
    %v1873 = vunpack.c.h.b16 %v979
    %v1874 = vunpack.c.l.b16 %v980
    %v1875 = vunpack.c.h.b16 %v980
    %v1876 = vunpack.c.l.b16 %v981
    %v1877 = vunpack.c.h.b16 %v981
    %v1878 = vunpack.c.l.b16 %v982
    %v1879 = vunpack.c.h.b16 %v982
    %v1880 = vunpack.c.l.b16 %v983
    %v1881 = vunpack.c.h.b16 %v983
    %v1882 = vunpack.c.l.b16 %v984
    %v1883 = vunpack.c.h.b16 %v984
    %v1884 = vunpack.c.l.b16 %v985
    %v1885 = vunpack.c.h.b16 %v985
    %v1886 = vunpack.c.l.b16 %v986
    %v1887 = vunpack.c.h.b16 %v986
    %v1888 = vunpack.c.l.b16 %v987
    %v1889 = vunpack.c.h.b16 %v987
    %v1890 = vunpack.c.l.b16 %v988
    %v1891 = vunpack.c.h.b16 %v988
    %v1892 = vunpack.c.l.b16 %v989
    %v1893 = vunpack.c.h.b16 %v989
    %v1894 = vunpack.c.l.b16 %v990
    %v1895 = vunpack.c.h.b16 %v990
    %v1896 = vunpack.c.l.b16 %v991
    %v1897 = vunpack.c.h.b16 %v991
    %v1898 = vunpack.c.l.b16 %v992
    %v1899 = vunpack.c.h.b16 %v992
    %v1900 = vunpack.c.l.b16 %v993
    %v1901 = vunpack.c.h.b16 %v993
    %v1902 = vunpack.c.l.b16 %v994
    %v1903 = vunpack.c.h.b16 %v994
    %v1904 = vunpack.c.l.b16 %v995
    %v1905 = vunpack.c.h.b16 %v995
    %v1906 = vunpack.c.l.b16 %v996
    %v1907 = vunpack.c.h.b16 %v996
    %v1908 = vunpack.c.l.b16 %v997
    %v1909 = vunpack.c.h.b16 %v997
    %v1910 = vunpack.c.l.b16 %v998
    %v1911 = vunpack.c.h.b16 %v998
    %v1912 = vunpack.c.l.b16 %v999
    %v1913 = vunpack.c.h.b16 %v999
    %v1914 = vunpack.c.l.b16 %v1000
    %v1915 = vunpack.c.h.b16 %v1000
    %v1916 = vunpack.c.l.b16 %v1001
    %v1917 = vunpack.c.h.b16 %v1001
    %v1918 = vunpack.c.l.b16 %v1002
    %v1919 = vunpack.c.h.b16 %v1002
    %v1920 = vunpack.c.l.b16 %v1003
    %v1921 = vunpack.c.h.b16 %v1003
    %v1922 = vunpack.c.l.b16 %v1004
    %v1923 = vunpack.c.h.b16 %v1004
    %v1924 = vunpack.c.l.b16 %v1005
    %v1925 = vunpack.c.h.b16 %v1005
    %v1926 = vunpack.c.l.b16 %v1006
    %v1927 = vunpack.c.h.b16 %v1006
    %v1928 = vunpack.c.l.b16 %v1007
    %v1929 = vunpack.c.h.b16 %v1007
    %v1930 = vunpack.c.l.b16 %v1008
    %v1931 = vunpack.c.h.b16 %v1008
    %v1932 = vunpack.c.l.b16 %v1009
    %v1933 = vunpack.c.h.b16 %v1009
    %v1934 = vunpack.c.l.b16 %v1010
    %v1935 = vunpack.c.h.b16 %v1010
    %v1936 = vunpack.c.l.b16 %v1011
    %v1937 = vunpack.c.h.b16 %v1011
    %v1938 = vunpack.c.l.b16 %v1012
    %v1939 = vunpack.c.h.b16 %v1012
    %v1940 = vunpack.c.l.b16 %v1013
    %v1941 = vunpack.c.h.b16 %v1013
    %v1942 = vunpack.c.l.b16 %v1014
    %v1943 = vunpack.c.h.b16 %v1014
    %v1944 = vunpack.c.l.b16 %v1015
    %v1945 = vunpack.c.h.b16 %v1015
    %v1946 = vunpack.c.l.b16 %v1016
    %v1947 = vunpack.c.h.b16 %v1016
    %v1948 = vunpack.c.l.b16 %v1017
    %v1949 = vunpack.c.h.b16 %v1017
    %v1950 = vunpack.c.l.b16 %v1018
    %v1951 = vunpack.c.h.b16 %v1018
    %v1952 = vunpack.c.l.b16 %v1019
    %v1953 = vunpack.c.h.b16 %v1019
    %v1954 = vunpack.c.l.b16 %v1020
    %v1955 = vunpack.c.h.b16 %v1020
    %v1956 = vunpack.c.l.b16 %v1021
    %v1957 = vunpack.c.h.b16 %v1021
    %v1958 = vunpack.c.l.b16 %v1022
    %v1959 = vunpack.c.h.b16 %v1022
    %v1960 = vunpack.c.l.b16 %v1023
    %v1961 = vunpack.c.h.b16 %v1023
    %v1962 = vunpack.c.l.b16 %v1024
    %v1963 = vunpack.c.h.b16 %v1024
    %v1964 = vunpack.c.l.b16 %v1025
    %v1965 = vunpack.c.h.b16 %v1025
    %v1966 = vunpack.c.l.b16 %v1026
    %v1967 = vunpack.c.h.b16 %v1026
    %v1968 = vunpack.c.l.b16 %v1027
    %v1969 = vunpack.c.h.b16 %v1027
    %v1970 = vunpack.c.l.b16 %v1028
    %v1971 = vunpack.c.h.b16 %v1028
    %v1972 = vunpack.c.l.b16 %v1029
    %v1973 = vunpack.c.h.b16 %v1029
    %v1974 = vunpack.c.l.b16 %v1030
    %v1975 = vunpack.c.h.b16 %v1030
    %v1976 = vunpack.c.l.b16 %v1031
    %v1977 = vunpack.c.h.b16 %v1031
    %v1978 = vunpack.c.l.b16 %v1032
    %v1979 = vunpack.c.h.b16 %v1032
    %v1980 = vunpack.c.l.b16 %v1033
    %v1981 = vunpack.c.h.b16 %v1033
    %v1982 = vunpack.c.l.b16 %v1034
    %v1983 = vunpack.c.h.b16 %v1034
    %v1984 = vunpack.c.l.b16 %v1035
    %v1985 = vunpack.c.h.b16 %v1035
    %v1986 = vunpack.c.l.b16 %v1036
    %v1987 = vunpack.c.h.b16 %v1036
    %v1988 = vunpack.c.l.b16 %v1037
    %v1989 = vunpack.c.h.b16 %v1037
    %v1990 = vunpack.c.l.b16 %v1038
    %v1991 = vunpack.c.h.b16 %v1038
    %v1992 = vunpack.c.l.b16 %v1039
    %v1993 = vunpack.c.h.b16 %v1039
    %v1994 = vunpack.c.l.b16 %v1040
    %v1995 = vunpack.c.h.b16 %v1040
    %v1996 = vunpack.c.l.b16 %v1041
    %v1997 = vunpack.c.h.b16 %v1041
    %v1998 = vunpack.c.l.b16 %v1042
    %v1999 = vunpack.c.h.b16 %v1042
    %v2000 = vunpack.c.l.b16 %v1043
    %v2001 = vunpack.c.h.b16 %v1043
    %v2002 = vunpack.c.l.b16 %v1044
    %v2003 = vunpack.c.h.b16 %v1044
    %v2004 = vunpack.c.l.b16 %v1045
    %v2005 = vunpack.c.h.b16 %v1045
    %v2006 = vunpack.c.l.b16 %v1046
    %v2007 = vunpack.c.h.b16 %v1046
    %v2008 = vunpack.c.l.b16 %v1047
    %v2009 = vunpack.c.h.b16 %v1047
    %v2010 = vunpack.c.l.b16 %v1048
    %v2011 = vunpack.c.h.b16 %v1048
    %v2012 = vunpack.c.l.b16 %v1049
    %v2013 = vunpack.c.h.b16 %v1049
    %v2014 = vunpack.c.l.b16 %v1050
    %v2015 = vunpack.c.h.b16 %v1050
    %v2016 = vunpack.c.l.b16 %v1051
    %v2017 = vunpack.c.h.b16 %v1051
    %v2018 = vpack.c.b16 %v1380, %v1378
    %v2019 = vpack.c.b16 %v1381, %v1379
    %v2020 = vpack.c.b16 %v1384, %v1382
    %v2021 = vpack.c.b16 %v1385, %v1383
    %v2022 = vpack.c.b16 %v1388, %v1386
    %v2023 = vpack.c.b16 %v1389, %v1387
    %v2024 = vpack.c.b16 %v1392, %v1390
    %v2025 = vpack.c.b16 %v1393, %v1391
    %v2026 = vpack.c.b16 %v1396, %v1394
    %v2027 = vpack.c.b16 %v1397, %v1395
    %v2028 = vpack.c.b16 %v1400, %v1398
    %v2029 = vpack.c.b16 %v1401, %v1399
    %v2030 = vpack.c.b16 %v1404, %v1402
    %v2031 = vpack.c.b16 %v1405, %v1403
    %v2032 = vpack.c.b16 %v1408, %v1406
    %v2033 = vpack.c.b16 %v1409, %v1407
    %v2034 = vpack.c.b16 %v1412, %v1410
    %v2035 = vpack.c.b16 %v1413, %v1411
    %v2036 = vpack.c.b16 %v1416, %v1414
    %v2037 = vpack.c.b16 %v1417, %v1415
    %v2038 = vpack.c.b16 %v1420, %v1418
    %v2039 = vpack.c.b16 %v1421, %v1419
    %v2040 = vpack.c.b16 %v1424, %v1422
    %v2041 = vpack.c.b16 %v1425, %v1423
    %v2042 = vpack.c.b16 %v1428, %v1426
    %v2043 = vpack.c.b16 %v1429, %v1427
    %v2044 = vpack.c.b16 %v1432, %v1430
    %v2045 = vpack.c.b16 %v1433, %v1431
    %v2046 = vpack.c.b16 %v1436, %v1434
    %v2047 = vpack.c.b16 %v1437, %v1435
    %v2048 = vpack.c.b16 %v1440, %v1438
    %v2049 = vpack.c.b16 %v1441, %v1439
    %v2050 = vpack.c.b16 %v1444, %v1442
    %v2051 = vpack.c.b16 %v1445, %v1443
    %v2052 = vpack.c.b16 %v1448, %v1446
    %v2053 = vpack.c.b16 %v1449, %v1447
    %v2054 = vpack.c.b16 %v1452, %v1450
    %v2055 = vpack.c.b16 %v1453, %v1451
    %v2056 = vpack.c.b16 %v1456, %v1454
    %v2057 = vpack.c.b16 %v1457, %v1455
    %v2058 = vpack.c.b16 %v1460, %v1458
    %v2059 = vpack.c.b16 %v1461, %v1459
    %v2060 = vpack.c.b16 %v1464, %v1462
    %v2061 = vpack.c.b16 %v1465, %v1463
    %v2062 = vpack.c.b16 %v1468, %v1466
    %v2063 = vpack.c.b16 %v1469, %v1467
    %v2064 = vpack.c.b16 %v1472, %v1470
    %v2065 = vpack.c.b16 %v1473, %v1471
    %v2066 = vpack.c.b16 %v1476, %v1474
    %v2067 = vpack.c.b16 %v1477, %v1475
    %v2068 = vpack.c.b16 %v1480, %v1478
    %v2069 = vpack.c.b16 %v1481, %v1479
    %v2070 = vpack.c.b16 %v1484, %v1482
    %v2071 = vpack.c.b16 %v1485, %v1483
    %v2072 = vpack.c.b16 %v1488, %v1486
    %v2073 = vpack.c.b16 %v1489, %v1487
    %v2074 = vpack.c.b16 %v1492, %v1490
    %v2075 = vpack.c.b16 %v1493, %v1491
    %v2076 = vpack.c.b16 %v1496, %v1494
    %v2077 = vpack.c.b16 %v1497, %v1495
    %v2078 = vpack.c.b16 %v1500, %v1498
    %v2079 = vpack.c.b16 %v1501, %v1499
    %v2080 = vpack.c.b16 %v1504, %v1502
    %v2081 = vpack.c.b16 %v1505, %v1503
    %v2082 = vpack.c.b16 %v1508, %v1506
    %v2083 = vpack.c.b16 %v1509, %v1507
    %v2084 = vpack.c.b16 %v1512, %v1510
    %v2085 = vpack.c.b16 %v1513, %v1511
    %v2086 = vpack.c.b16 %v1516, %v1514
    %v2087 = vpack.c.b16 %v1517, %v1515
    %v2088 = vpack.c.b16 %v1520, %v1518
    %v2089 = vpack.c.b16 %v1521, %v1519
    %v2090 = vpack.c.b16 %v1524, %v1522
    %v2091 = vpack.c.b16 %v1525, %v1523
    %v2092 = vpack.c.b16 %v1528, %v1526
    %v2093 = vpack.c.b16 %v1529, %v1527
    %v2094 = vpack.c.b16 %v1532, %v1530
    %v2095 = vpack.c.b16 %v1533, %v1531
    %v2096 = vpack.c.b16 %v1536, %v1534
    %v2097 = vpack.c.b16 %v1537, %v1535
    %v2098 = vpack.c.b16 %v1540, %v1538
    %v2099 = vpack.c.b16 %v1541, %v1539
    %v2100 = vpack.c.b16 %v1544, %v1542
    %v2101 = vpack.c.b16 %v1545, %v1543
    %v2102 = vpack.c.b16 %v1548, %v1546
    %v2103 = vpack.c.b16 %v1549, %v1547
    %v2104 = vpack.c.b16 %v1552, %v1550
    %v2105 = vpack.c.b16 %v1553, %v1551
    %v2106 = vpack.c.b16 %v1556, %v1554
    %v2107 = vpack.c.b16 %v1557, %v1555
    %v2108 = vpack.c.b16 %v1560, %v1558
    %v2109 = vpack.c.b16 %v1561, %v1559
    %v2110 = vpack.c.b16 %v1564, %v1562
    %v2111 = vpack.c.b16 %v1565, %v1563
    %v2112 = vpack.c.b16 %v1568, %v1566
    %v2113 = vpack.c.b16 %v1569, %v1567
    %v2114 = vpack.c.b16 %v1572, %v1570
    %v2115 = vpack.c.b16 %v1573, %v1571
    %v2116 = vpack.c.b16 %v1576, %v1574
    %v2117 = vpack.c.b16 %v1577, %v1575
    %v2118 = vpack.c.b16 %v1580, %v1578
    %v2119 = vpack.c.b16 %v1581, %v1579
    %v2120 = vpack.c.b16 %v1584, %v1582
    %v2121 = vpack.c.b16 %v1585, %v1583
    %v2122 = vpack.c.b16 %v1588, %v1586
    %v2123 = vpack.c.b16 %v1589, %v1587
    %v2124 = vpack.c.b16 %v1592, %v1590
    %v2125 = vpack.c.b16 %v1593, %v1591
    %v2126 = vpack.c.b16 %v1596, %v1594
    %v2127 = vpack.c.b16 %v1597, %v1595
    %v2128 = vpack.c.b16 %v1600, %v1598
    %v2129 = vpack.c.b16 %v1601, %v1599
    %v2130 = vpack.c.b16 %v1604, %v1602
    %v2131 = vpack.c.b16 %v1605, %v1603
    %v2132 = vpack.c.b16 %v1608, %v1606
    %v2133 = vpack.c.b16 %v1609, %v1607
    %v2134 = vpack.c.b16 %v1612, %v1610
    %v2135 = vpack.c.b16 %v1613, %v1611
    %v2136 = vpack.c.b16 %v1616, %v1614
    %v2137 = vpack.c.b16 %v1617, %v1615
    %v2138 = vpack.c.b16 %v1620, %v1618
    %v2139 = vpack.c.b16 %v1621, %v1619
    %v2140 = vpack.c.b16 %v1624, %v1622
    %v2141 = vpack.c.b16 %v1625, %v1623
    %v2142 = vpack.c.b16 %v1628, %v1626
    %v2143 = vpack.c.b16 %v1629, %v1627
    %v2144 = vpack.c.b16 %v1632, %v1630
    %v2145 = vpack.c.b16 %v1633, %v1631
    %v2146 = vpack.c.b16 %v1636, %v1634
    %v2147 = vpack.c.b16 %v1637, %v1635
    %v2148 = vpack.c.b16 %v1640, %v1638
    %v2149 = vpack.c.b16 %v1641, %v1639
    %v2150 = vpack.c.b16 %v1644, %v1642
    %v2151 = vpack.c.b16 %v1645, %v1643
    %v2152 = vpack.c.b16 %v1648, %v1646
    %v2153 = vpack.c.b16 %v1649, %v1647
    %v2154 = vpack.c.b16 %v1652, %v1650
    %v2155 = vpack.c.b16 %v1653, %v1651
    %v2156 = vpack.c.b16 %v1656, %v1654
    %v2157 = vpack.c.b16 %v1657, %v1655
    %v2158 = vpack.c.b16 %v1660, %v1658
    %v2159 = vpack.c.b16 %v1661, %v1659
    %v2160 = vpack.c.b16 %v1664, %v1662
    %v2161 = vpack.c.b16 %v1665, %v1663
    %v2162 = vpack.c.b16 %v1668, %v1666
    %v2163 = vpack.c.b16 %v1669, %v1667
    %v2164 = vpack.c.b16 %v1672, %v1670
    %v2165 = vpack.c.b16 %v1673, %v1671
    %v2166 = vpack.c.b16 %v1676, %v1674
    %v2167 = vpack.c.b16 %v1677, %v1675
    %v2168 = vpack.c.b16 %v1680, %v1678
    %v2169 = vpack.c.b16 %v1681, %v1679
    %v2170 = vpack.c.b16 %v1684, %v1682
    %v2171 = vpack.c.b16 %v1685, %v1683
    %v2172 = vpack.c.b16 %v1688, %v1686
    %v2173 = vpack.c.b16 %v1689, %v1687
    %v2174 = vpack.c.b16 %v1692, %v1690
    %v2175 = vpack.c.b16 %v1693, %v1691
    %v2176 = vpack.c.b16 %v1696, %v1694
    %v2177 = vpack.c.b16 %v1697, %v1695
    %v2178 = vpack.c.b16 %v1700, %v1698
    %v2179 = vpack.c.b16 %v1701, %v1699
    %v2180 = vpack.c.b16 %v1704, %v1702
    %v2181 = vpack.c.b16 %v1705, %v1703
    %v2182 = vpack.c.b16 %v1708, %v1706
    %v2183 = vpack.c.b16 %v1709, %v1707
    %v2184 = vpack.c.b16 %v1712, %v1710
    %v2185 = vpack.c.b16 %v1713, %v1711
    %v2186 = vpack.c.b16 %v1716, %v1714
    %v2187 = vpack.c.b16 %v1717, %v1715
    %v2188 = vpack.c.b16 %v1720, %v1718
    %v2189 = vpack.c.b16 %v1721, %v1719
    %v2190 = vpack.c.b16 %v1724, %v1722
    %v2191 = vpack.c.b16 %v1725, %v1723
    %v2192 = vpack.c.b16 %v1728, %v1726
    %v2193 = vpack.c.b16 %v1729, %v1727
    %v2194 = vpack.c.b16 %v1732, %v1730
    %v2195 = vpack.c.b16 %v1733, %v1731
    %v2196 = vpack.c.b16 %v1736, %v1734
    %v2197 = vpack.c.b16 %v1737, %v1735
    %v2198 = vpack.c.b16 %v1740, %v1738
    %v2199 = vpack.c.b16 %v1741, %v1739
    %v2200 = vpack.c.b16 %v1744, %v1742
    %v2201 = vpack.c.b16 %v1745, %v1743
    %v2202 = vpack.c.b16 %v1748, %v1746
    %v2203 = vpack.c.b16 %v1749, %v1747
    %v2204 = vpack.c.b16 %v1752, %v1750
    %v2205 = vpack.c.b16 %v1753, %v1751
    %v2206 = vpack.c.b16 %v1756, %v1754
    %v2207 = vpack.c.b16 %v1757, %v1755
    %v2208 = vpack.c.b16 %v1760, %v1758
    %v2209 = vpack.c.b16 %v1761, %v1759
    %v2210 = vpack.c.b16 %v1764, %v1762
    %v2211 = vpack.c.b16 %v1765, %v1763
    %v2212 = vpack.c.b16 %v1768, %v1766
    %v2213 = vpack.c.b16 %v1769, %v1767
    %v2214 = vpack.c.b16 %v1772, %v1770
    %v2215 = vpack.c.b16 %v1773, %v1771
    %v2216 = vpack.c.b16 %v1776, %v1774
    %v2217 = vpack.c.b16 %v1777, %v1775
    %v2218 = vpack.c.b16 %v1780, %v1778
    %v2219 = vpack.c.b16 %v1781, %v1779
    %v2220 = vpack.c.b16 %v1784, %v1782
    %v2221 = vpack.c.b16 %v1785, %v1783
    %v2222 = vpack.c.b16 %v1788, %v1786
    %v2223 = vpack.c.b16 %v1789, %v1787
    %v2224 = vpack.c.b16 %v1792, %v1790
    %v2225 = vpack.c.b16 %v1793, %v1791
    %v2226 = vpack.c.b16 %v1796, %v1794
    %v2227 = vpack.c.b16 %v1797, %v1795
    %v2228 = vpack.c.b16 %v1800, %v1798
    %v2229 = vpack.c.b16 %v1801, %v1799
    %v2230 = vpack.c.b16 %v1804, %v1802
    %v2231 = vpack.c.b16 %v1805, %v1803
    %v2232 = vpack.c.b16 %v1808, %v1806
    %v2233 = vpack.c.b16 %v1809, %v1807
    %v2234 = vpack.c.b16 %v1812, %v1810
    %v2235 = vpack.c.b16 %v1813, %v1811
    %v2236 = vpack.c.b16 %v1816, %v1814
    %v2237 = vpack.c.b16 %v1817, %v1815
    %v2238 = vpack.c.b16 %v1820, %v1818
    %v2239 = vpack.c.b16 %v1821, %v1819
    %v2240 = vpack.c.b16 %v1824, %v1822
    %v2241 = vpack.c.b16 %v1825, %v1823
    %v2242 = vpack.c.b16 %v1828, %v1826
    %v2243 = vpack.c.b16 %v1829, %v1827
    %v2244 = vpack.c.b16 %v1832, %v1830
    %v2245 = vpack.c.b16 %v1833, %v1831
    %v2246 = vpack.c.b16 %v1836, %v1834
    %v2247 = vpack.c.b16 %v1837, %v1835
    %v2248 = vpack.c.b16 %v1840, %v1838
    %v2249 = vpack.c.b16 %v1841, %v1839
    %v2250 = vpack.c.b16 %v1844, %v1842
    %v2251 = vpack.c.b16 %v1845, %v1843
    %v2252 = vpack.c.b16 %v1848, %v1846
    %v2253 = vpack.c.b16 %v1849, %v1847
    %v2254 = vpack.c.b16 %v1852, %v1850
    %v2255 = vpack.c.b16 %v1853, %v1851
    %v2256 = vpack.c.b16 %v1856, %v1854
    %v2257 = vpack.c.b16 %v1857, %v1855
    %v2258 = vpack.c.b16 %v1860, %v1858
    %v2259 = vpack.c.b16 %v1861, %v1859
    %v2260 = vpack.c.b16 %v1864, %v1862
    %v2261 = vpack.c.b16 %v1865, %v1863
    %v2262 = vpack.c.b16 %v1868, %v1866
    %v2263 = vpack.c.b16 %v1869, %v1867
    %v2264 = vpack.c.b16 %v1872, %v1870
    %v2265 = vpack.c.b16 %v1873, %v1871
    %v2266 = vpack.c.b16 %v1876, %v1874
    %v2267 = vpack.c.b16 %v1877, %v1875
    %v2268 = vpack.c.b16 %v1880, %v1878
    %v2269 = vpack.c.b16 %v1881, %v1879
    %v2270 = vpack.c.b16 %v1884, %v1882
    %v2271 = vpack.c.b16 %v1885, %v1883
    %v2272 = vpack.c.b16 %v1888, %v1886
    %v2273 = vpack.c.b16 %v1889, %v1887
    %v2274 = vpack.c.b16 %v1892, %v1890
    %v2275 = vpack.c.b16 %v1893, %v1891
    %v2276 = vpack.c.b16 %v1896, %v1894
    %v2277 = vpack.c.b16 %v1897, %v1895
    %v2278 = vpack.c.b16 %v1900, %v1898
    %v2279 = vpack.c.b16 %v1901, %v1899
    %v2280 = vpack.c.b16 %v1904, %v1902
    %v2281 = vpack.c.b16 %v1905, %v1903
    %v2282 = vpack.c.b16 %v1908, %v1906
    %v2283 = vpack.c.b16 %v1909, %v1907
    %v2284 = vpack.c.b16 %v1912, %v1910
    %v2285 = vpack.c.b16 %v1913, %v1911
    %v2286 = vpack.c.b16 %v1916, %v1914
    %v2287 = vpack.c.b16 %v1917, %v1915
    %v2288 = vpack.c.b16 %v1920, %v1918
    %v2289 = vpack.c.b16 %v1921, %v1919
    %v2290 = vpack.c.b16 %v1924, %v1922
    %v2291 = vpack.c.b16 %v1925, %v1923
    %v2292 = vpack.c.b16 %v1928, %v1926
    %v2293 = vpack.c.b16 %v1929, %v1927
    %v2294 = vpack.c.b16 %v1932, %v1930
    %v2295 = vpack.c.b16 %v1933, %v1931
    %v2296 = vpack.c.b16 %v1936, %v1934
    %v2297 = vpack.c.b16 %v1937, %v1935
    %v2298 = vpack.c.b16 %v1940, %v1938
    %v2299 = vpack.c.b16 %v1941, %v1939
    %v2300 = vpack.c.b16 %v1944, %v1942
    %v2301 = vpack.c.b16 %v1945, %v1943
    %v2302 = vpack.c.b16 %v1948, %v1946
    %v2303 = vpack.c.b16 %v1949, %v1947
    %v2304 = vpack.c.b16 %v1952, %v1950
    %v2305 = vpack.c.b16 %v1953, %v1951
    %v2306 = vpack.c.b16 %v1956, %v1954
    %v2307 = vpack.c.b16 %v1957, %v1955
    %v2308 = vpack.c.b16 %v1960, %v1958
    %v2309 = vpack.c.b16 %v1961, %v1959
    %v2310 = vpack.c.b16 %v1964, %v1962
    %v2311 = vpack.c.b16 %v1965, %v1963
    %v2312 = vpack.c.b16 %v1968, %v1966
    %v2313 = vpack.c.b16 %v1969, %v1967
    %v2314 = vpack.c.b16 %v1972, %v1970
    %v2315 = vpack.c.b16 %v1973, %v1971
    %v2316 = vpack.c.b16 %v1976, %v1974
    %v2317 = vpack.c.b16 %v1977, %v1975
    %v2318 = vpack.c.b16 %v1980, %v1978
    %v2319 = vpack.c.b16 %v1981, %v1979
    %v2320 = vpack.c.b16 %v1984, %v1982
    %v2321 = vpack.c.b16 %v1985, %v1983
    %v2322 = vpack.c.b16 %v1988, %v1986
    %v2323 = vpack.c.b16 %v1989, %v1987
    %v2324 = vpack.c.b16 %v1992, %v1990
    %v2325 = vpack.c.b16 %v1993, %v1991
    %v2326 = vpack.c.b16 %v1996, %v1994
    %v2327 = vpack.c.b16 %v1997, %v1995
    %v2328 = vpack.c.b16 %v2000, %v1998
    %v2329 = vpack.c.b16 %v2001, %v1999
    %v2330 = vpack.c.b16 %v2004, %v2002
    %v2331 = vpack.c.b16 %v2005, %v2003
    %v2332 = vpack.c.b16 %v2008, %v2006
    %v2333 = vpack.c.b16 %v2009, %v2007
    %v2334 = vpack.c.b16 %v2012, %v2010
    %v2335 = vpack.c.b16 %v2013, %v2011
    %v2336 = vpack.c.b16 %v2016, %v2014
    %v2337 = vpack.c.b16 %v2017, %v2015
    %2658 = vmatpush.bf16.msra.mxu0 %v2032
    %2659 = vmatpush.bf16.msra.mxu0 %v2030
    %2660 = vmatpush.bf16.msra.mxu0 %v2028
    %2661 = vmatpush.bf16.msra.mxu0 %v2026
    %2662 = vmatpush.bf16.msra.mxu0 %v2024
    %2663 = vmatpush.bf16.msra.mxu0 %v2022
    %2664 = vmatpush.bf16.msra.mxu0 %v2020
    %2665 = vmatpush.bf16.msra.mxu0 %v2018
    %2666 = vmatmul.bf16.gmra.mxu0 %v712
    %v2667 = vpop.f32.mrf.mxu0
    %v2668 = vadd.f32 %v1054, %v2667
    %v2669 = vpop.f32.mrf.mxu0
    %2670 = vdwg.mxu0
    %2671 = vmatpush.bf16.msra.mxu0 %v2048
    %2672 = vmatpush.bf16.msra.mxu0 %v2046
    %2673 = vmatpush.bf16.msra.mxu0 %v2044
    %2674 = vmatpush.bf16.msra.mxu0 %v2042
    %2675 = vmatpush.bf16.msra.mxu0 %v2040
    %2676 = vmatpush.bf16.msra.mxu0 %v2038
    %2677 = vmatpush.bf16.msra.mxu0 %v2036
    %2678 = vmatpush.bf16.msra.mxu0 %v2034
    %2679 = vmatmul.bf16.gmra.mxu0 %v713
    %v2680 = vpop.f32.mrf.mxu0
    %v2681 = vadd.f32 %v2668, %v2680
    %v2682 = vpop.f32.mrf.mxu0
    %2683 = vdwg.mxu0
    %2684 = vmatpush.bf16.msra.mxu0 %v2064
    %2685 = vmatpush.bf16.msra.mxu0 %v2062
    %2686 = vmatpush.bf16.msra.mxu0 %v2060
    %2687 = vmatpush.bf16.msra.mxu0 %v2058
    %2688 = vmatpush.bf16.msra.mxu0 %v2056
    %2689 = vmatpush.bf16.msra.mxu0 %v2054
    %2690 = vmatpush.bf16.msra.mxu0 %v2052
    %2691 = vmatpush.bf16.msra.mxu0 %v2050
    %2692 = vmatmul.bf16.gmra.mxu0 %v714
    %v2693 = vpop.f32.mrf.mxu0
    %v2694 = vadd.f32 %v2681, %v2693
    %v2695 = vpop.f32.mrf.mxu0
    %2696 = vdwg.mxu0
    %2697 = vmatpush.bf16.msra.mxu0 %v2080
    %2698 = vmatpush.bf16.msra.mxu0 %v2078
    %2699 = vmatpush.bf16.msra.mxu0 %v2076
    %2700 = vmatpush.bf16.msra.mxu0 %v2074
    %2701 = vmatpush.bf16.msra.mxu0 %v2072
    %2702 = vmatpush.bf16.msra.mxu0 %v2070
    %2703 = vmatpush.bf16.msra.mxu0 %v2068
    %2704 = vmatpush.bf16.msra.mxu0 %v2066
    %2705 = vmatmul.bf16.gmra.mxu0 %v715
    %v2706 = vpop.f32.mrf.mxu0
    %v2707 = vadd.f32 %v2694, %v2706
    %v2708 = vpop.f32.mrf.mxu0
    %2709 = vdwg.mxu0
    %2710 = vmatpush.bf16.msra.mxu0 %v2096
    %2711 = vmatpush.bf16.msra.mxu0 %v2094
    %2712 = vmatpush.bf16.msra.mxu0 %v2092
    %2713 = vmatpush.bf16.msra.mxu0 %v2090
    %2714 = vmatpush.bf16.msra.mxu0 %v2088
    %2715 = vmatpush.bf16.msra.mxu0 %v2086
    %2716 = vmatpush.bf16.msra.mxu0 %v2084
    %2717 = vmatpush.bf16.msra.mxu0 %v2082
    %2718 = vmatmul.bf16.gmra.mxu0 %v716
    %v2719 = vpop.f32.mrf.mxu0
    %v2720 = vadd.f32 %v2707, %v2719
    %v2721 = vpop.f32.mrf.mxu0
    %2722 = vdwg.mxu0
    %2723 = vmatpush.bf16.msra.mxu0 %v2112
    %2724 = vmatpush.bf16.msra.mxu0 %v2110
    %2725 = vmatpush.bf16.msra.mxu0 %v2108
    %2726 = vmatpush.bf16.msra.mxu0 %v2106
    %2727 = vmatpush.bf16.msra.mxu0 %v2104
    %2728 = vmatpush.bf16.msra.mxu0 %v2102
    %2729 = vmatpush.bf16.msra.mxu0 %v2100
    %2730 = vmatpush.bf16.msra.mxu0 %v2098
    %2731 = vmatmul.bf16.gmra.mxu0 %v717
    %v2732 = vpop.f32.mrf.mxu0
    %v2733 = vadd.f32 %v2720, %v2732
    %v2734 = vpop.f32.mrf.mxu0
    %2735 = vdwg.mxu0
    %2736 = vmatpush.bf16.msra.mxu0 %v2128
    %2737 = vmatpush.bf16.msra.mxu0 %v2126
    %2738 = vmatpush.bf16.msra.mxu0 %v2124
    %2739 = vmatpush.bf16.msra.mxu0 %v2122
    %2740 = vmatpush.bf16.msra.mxu0 %v2120
    %2741 = vmatpush.bf16.msra.mxu0 %v2118
    %2742 = vmatpush.bf16.msra.mxu0 %v2116
    %2743 = vmatpush.bf16.msra.mxu0 %v2114
    %2744 = vmatmul.bf16.gmra.mxu0 %v718
    %v2745 = vpop.f32.mrf.mxu0
    %v2746 = vadd.f32 %v2733, %v2745
    %v2747 = vpop.f32.mrf.mxu0
    %2748 = vdwg.mxu0
    %2749 = vmatpush.bf16.msra.mxu0 %v2144
    %2750 = vmatpush.bf16.msra.mxu0 %v2142
    %2751 = vmatpush.bf16.msra.mxu0 %v2140
    %2752 = vmatpush.bf16.msra.mxu0 %v2138
    %2753 = vmatpush.bf16.msra.mxu0 %v2136
    %2754 = vmatpush.bf16.msra.mxu0 %v2134
    %2755 = vmatpush.bf16.msra.mxu0 %v2132
    %2756 = vmatpush.bf16.msra.mxu0 %v2130
    %2757 = vmatmul.bf16.gmra.mxu0 %v719
    %v2758 = vpop.f32.mrf.mxu0
    %v2759 = vadd.f32 %v2746, %v2758
    %v2760 = vpop.f32.mrf.mxu0
    %2761 = vdwg.mxu0
    %2762 = vmatpush.bf16.msra.mxu0 %v2160
    %2763 = vmatpush.bf16.msra.mxu0 %v2158
    %2764 = vmatpush.bf16.msra.mxu0 %v2156
    %2765 = vmatpush.bf16.msra.mxu0 %v2154
    %2766 = vmatpush.bf16.msra.mxu0 %v2152
    %2767 = vmatpush.bf16.msra.mxu0 %v2150
    %2768 = vmatpush.bf16.msra.mxu0 %v2148
    %2769 = vmatpush.bf16.msra.mxu0 %v2146
    %2770 = vmatmul.bf16.gmra.mxu0 %v720
    %v2771 = vpop.f32.mrf.mxu0
    %v2772 = vadd.f32 %v2759, %v2771
    %v2773 = vpop.f32.mrf.mxu0
    %2774 = vdwg.mxu0
    %2775 = vmatpush.bf16.msra.mxu0 %v2176
    %2776 = vmatpush.bf16.msra.mxu0 %v2174
    %2777 = vmatpush.bf16.msra.mxu0 %v2172
    %2778 = vmatpush.bf16.msra.mxu0 %v2170
    %2779 = vmatpush.bf16.msra.mxu0 %v2168
    %2780 = vmatpush.bf16.msra.mxu0 %v2166
    %2781 = vmatpush.bf16.msra.mxu0 %v2164
    %2782 = vmatpush.bf16.msra.mxu0 %v2162
    %2783 = vmatmul.bf16.gmra.mxu0 %v721
    %v2784 = vpop.f32.mrf.mxu0
    %v2785 = vadd.f32 %v2772, %v2784
    %v2786 = vpop.f32.mrf.mxu0
    %2787 = vdwg.mxu0
    %2788 = vmatpush.bf16.msra.mxu0 %v2192
    %2789 = vmatpush.bf16.msra.mxu0 %v2190
    %2790 = vmatpush.bf16.msra.mxu0 %v2188
    %2791 = vmatpush.bf16.msra.mxu0 %v2186
    %2792 = vmatpush.bf16.msra.mxu0 %v2184
    %2793 = vmatpush.bf16.msra.mxu0 %v2182
    %2794 = vmatpush.bf16.msra.mxu0 %v2180
    %2795 = vmatpush.bf16.msra.mxu0 %v2178
    %2796 = vmatmul.bf16.gmra.mxu0 %v722
    %v2797 = vpop.f32.mrf.mxu0
    %v2798 = vadd.f32 %v2785, %v2797
    %v2799 = vpop.f32.mrf.mxu0
    %2800 = vdwg.mxu0
    %2801 = vmatpush.bf16.msra.mxu0 %v2208
    %2802 = vmatpush.bf16.msra.mxu0 %v2206
    %2803 = vmatpush.bf16.msra.mxu0 %v2204
    %2804 = vmatpush.bf16.msra.mxu0 %v2202
    %2805 = vmatpush.bf16.msra.mxu0 %v2200
    %2806 = vmatpush.bf16.msra.mxu0 %v2198
    %2807 = vmatpush.bf16.msra.mxu0 %v2196
    %2808 = vmatpush.bf16.msra.mxu0 %v2194
    %2809 = vmatmul.bf16.gmra.mxu0 %v723
    %v2810 = vpop.f32.mrf.mxu0
    %v2811 = vadd.f32 %v2798, %v2810
    %v2812 = vpop.f32.mrf.mxu0
    %2813 = vdwg.mxu0
    %2814 = vmatpush.bf16.msra.mxu0 %v2224
    %2815 = vmatpush.bf16.msra.mxu0 %v2222
    %2816 = vmatpush.bf16.msra.mxu0 %v2220
    %2817 = vmatpush.bf16.msra.mxu0 %v2218
    %2818 = vmatpush.bf16.msra.mxu0 %v2216
    %2819 = vmatpush.bf16.msra.mxu0 %v2214
    %2820 = vmatpush.bf16.msra.mxu0 %v2212
    %2821 = vmatpush.bf16.msra.mxu0 %v2210
    %2822 = vmatmul.bf16.gmra.mxu0 %v724
    %v2823 = vpop.f32.mrf.mxu0
    %v2824 = vadd.f32 %v2811, %v2823
    %v2825 = vpop.f32.mrf.mxu0
    %2826 = vdwg.mxu0
    %2827 = vmatpush.bf16.msra.mxu0 %v2240
    %2828 = vmatpush.bf16.msra.mxu0 %v2238
    %2829 = vmatpush.bf16.msra.mxu0 %v2236
    %2830 = vmatpush.bf16.msra.mxu0 %v2234
    %2831 = vmatpush.bf16.msra.mxu0 %v2232
    %2832 = vmatpush.bf16.msra.mxu0 %v2230
    %2833 = vmatpush.bf16.msra.mxu0 %v2228
    %2834 = vmatpush.bf16.msra.mxu0 %v2226
    %2835 = vmatmul.bf16.gmra.mxu0 %v725
    %v2836 = vpop.f32.mrf.mxu0
    %v2837 = vadd.f32 %v2824, %v2836
    %v2838 = vpop.f32.mrf.mxu0
    %2839 = vdwg.mxu0
    %2840 = vmatpush.bf16.msra.mxu0 %v2256
    %2841 = vmatpush.bf16.msra.mxu0 %v2254
    %2842 = vmatpush.bf16.msra.mxu0 %v2252
    %2843 = vmatpush.bf16.msra.mxu0 %v2250
    %2844 = vmatpush.bf16.msra.mxu0 %v2248
    %2845 = vmatpush.bf16.msra.mxu0 %v2246
    %2846 = vmatpush.bf16.msra.mxu0 %v2244
    %2847 = vmatpush.bf16.msra.mxu0 %v2242
    %2848 = vmatmul.bf16.gmra.mxu0 %v726
    %v2849 = vpop.f32.mrf.mxu0
    %v2850 = vadd.f32 %v2837, %v2849
    %v2851 = vpop.f32.mrf.mxu0
    %2852 = vdwg.mxu0
    %2853 = vmatpush.bf16.msra.mxu0 %v2272
    %2854 = vmatpush.bf16.msra.mxu0 %v2270
    %2855 = vmatpush.bf16.msra.mxu0 %v2268
    %2856 = vmatpush.bf16.msra.mxu0 %v2266
    %2857 = vmatpush.bf16.msra.mxu0 %v2264
    %2858 = vmatpush.bf16.msra.mxu0 %v2262
    %2859 = vmatpush.bf16.msra.mxu0 %v2260
    %2860 = vmatpush.bf16.msra.mxu0 %v2258
    %2861 = vmatmul.bf16.gmra.mxu0 %v727
    %v2862 = vpop.f32.mrf.mxu0
    %v2863 = vadd.f32 %v2850, %v2862
    %v2864 = vpop.f32.mrf.mxu0
    %2865 = vdwg.mxu0
    %2866 = vmatpush.bf16.msra.mxu0 %v2288
    %2867 = vmatpush.bf16.msra.mxu0 %v2286
    %2868 = vmatpush.bf16.msra.mxu0 %v2284
    %2869 = vmatpush.bf16.msra.mxu0 %v2282
    %2870 = vmatpush.bf16.msra.mxu0 %v2280
    %2871 = vmatpush.bf16.msra.mxu0 %v2278
    %2872 = vmatpush.bf16.msra.mxu0 %v2276
    %2873 = vmatpush.bf16.msra.mxu0 %v2274
    %2874 = vmatmul.bf16.gmra.mxu0 %v728
    %v2875 = vpop.f32.mrf.mxu0
    %v2876 = vadd.f32 %v2863, %v2875
    %v2877 = vpop.f32.mrf.mxu0
    %2878 = vdwg.mxu0
    %2879 = vmatpush.bf16.msra.mxu0 %v2304
    %2880 = vmatpush.bf16.msra.mxu0 %v2302
    %2881 = vmatpush.bf16.msra.mxu0 %v2300
    %2882 = vmatpush.bf16.msra.mxu0 %v2298
    %2883 = vmatpush.bf16.msra.mxu0 %v2296
    %2884 = vmatpush.bf16.msra.mxu0 %v2294
    %2885 = vmatpush.bf16.msra.mxu0 %v2292
    %2886 = vmatpush.bf16.msra.mxu0 %v2290
    %2887 = vmatmul.bf16.gmra.mxu0 %v729
    %v2888 = vpop.f32.mrf.mxu0
    %v2889 = vadd.f32 %v2876, %v2888
    %v2890 = vpop.f32.mrf.mxu0
    %2891 = vdwg.mxu0
    %2892 = vmatpush.bf16.msra.mxu0 %v2320
    %2893 = vmatpush.bf16.msra.mxu0 %v2318
    %2894 = vmatpush.bf16.msra.mxu0 %v2316
    %2895 = vmatpush.bf16.msra.mxu0 %v2314
    %2896 = vmatpush.bf16.msra.mxu0 %v2312
    %2897 = vmatpush.bf16.msra.mxu0 %v2310
    %2898 = vmatpush.bf16.msra.mxu0 %v2308
    %2899 = vmatpush.bf16.msra.mxu0 %v2306
    %2900 = vmatmul.bf16.gmra.mxu0 %v730
    %v2901 = vpop.f32.mrf.mxu0
    %v2902 = vadd.f32 %v2889, %v2901
    %v2903 = vpop.f32.mrf.mxu0
    %2904 = vdwg.mxu0
    %2905 = vmatpush.bf16.msra.mxu0 %v2336
    %2906 = vmatpush.bf16.msra.mxu0 %v2334
    %2907 = vmatpush.bf16.msra.mxu0 %v2332
    %2908 = vmatpush.bf16.msra.mxu0 %v2330
    %2909 = vmatpush.bf16.msra.mxu0 %v2328
    %2910 = vmatpush.bf16.msra.mxu0 %v2326
    %2911 = vmatpush.bf16.msra.mxu0 %v2324
    %2912 = vmatpush.bf16.msra.mxu0 %v2322
    %2913 = vmatmul.bf16.gmra.mxu0 %v731
    %v2914 = vpop.f32.mrf.mxu0
    %v2915 = vadd.f32 %v2902, %v2914
    %v2916 = vpop.f32.mrf.mxu0
    %2917 = vdwg.mxu0
    %2918 = vmatpush.bf16.msra.mxu0 %v2033
    %2919 = vmatpush.bf16.msra.mxu0 %v2031
    %2920 = vmatpush.bf16.msra.mxu0 %v2029
    %2921 = vmatpush.bf16.msra.mxu0 %v2027
    %2922 = vmatpush.bf16.msra.mxu0 %v2025
    %2923 = vmatpush.bf16.msra.mxu0 %v2023
    %2924 = vmatpush.bf16.msra.mxu0 %v2021
    %2925 = vmatpush.bf16.msra.mxu0 %v2019
    %2926 = vmatmul.bf16.gmra.mxu0 %v712
    %v2927 = vpop.f32.mrf.mxu0
    %v2928 = vadd.f32 %v1055, %v2927
    %v2929 = vpop.f32.mrf.mxu0
    %2930 = vdwg.mxu0
    %2931 = vmatpush.bf16.msra.mxu0 %v2049
    %2932 = vmatpush.bf16.msra.mxu0 %v2047
    %2933 = vmatpush.bf16.msra.mxu0 %v2045
    %2934 = vmatpush.bf16.msra.mxu0 %v2043
    %2935 = vmatpush.bf16.msra.mxu0 %v2041
    %2936 = vmatpush.bf16.msra.mxu0 %v2039
    %2937 = vmatpush.bf16.msra.mxu0 %v2037
    %2938 = vmatpush.bf16.msra.mxu0 %v2035
    %2939 = vmatmul.bf16.gmra.mxu0 %v713
    %v2940 = vpop.f32.mrf.mxu0
    %v2941 = vadd.f32 %v2928, %v2940
    %v2942 = vpop.f32.mrf.mxu0
    %2943 = vdwg.mxu0
    %2944 = vmatpush.bf16.msra.mxu0 %v2065
    %2945 = vmatpush.bf16.msra.mxu0 %v2063
    %2946 = vmatpush.bf16.msra.mxu0 %v2061
    %2947 = vmatpush.bf16.msra.mxu0 %v2059
    %2948 = vmatpush.bf16.msra.mxu0 %v2057
    %2949 = vmatpush.bf16.msra.mxu0 %v2055
    %2950 = vmatpush.bf16.msra.mxu0 %v2053
    %2951 = vmatpush.bf16.msra.mxu0 %v2051
    %2952 = vmatmul.bf16.gmra.mxu0 %v714
    %v2953 = vpop.f32.mrf.mxu0
    %v2954 = vadd.f32 %v2941, %v2953
    %v2955 = vpop.f32.mrf.mxu0
    %2956 = vdwg.mxu0
    %2957 = vmatpush.bf16.msra.mxu0 %v2081
    %2958 = vmatpush.bf16.msra.mxu0 %v2079
    %2959 = vmatpush.bf16.msra.mxu0 %v2077
    %2960 = vmatpush.bf16.msra.mxu0 %v2075
    %2961 = vmatpush.bf16.msra.mxu0 %v2073
    %2962 = vmatpush.bf16.msra.mxu0 %v2071
    %2963 = vmatpush.bf16.msra.mxu0 %v2069
    %2964 = vmatpush.bf16.msra.mxu0 %v2067
    %2965 = vmatmul.bf16.gmra.mxu0 %v715
    %v2966 = vpop.f32.mrf.mxu0
    %v2967 = vadd.f32 %v2954, %v2966
    %v2968 = vpop.f32.mrf.mxu0
    %2969 = vdwg.mxu0
    %2970 = vmatpush.bf16.msra.mxu0 %v2097
    %2971 = vmatpush.bf16.msra.mxu0 %v2095
    %2972 = vmatpush.bf16.msra.mxu0 %v2093
    %2973 = vmatpush.bf16.msra.mxu0 %v2091
    %2974 = vmatpush.bf16.msra.mxu0 %v2089
    %2975 = vmatpush.bf16.msra.mxu0 %v2087
    %2976 = vmatpush.bf16.msra.mxu0 %v2085
    %2977 = vmatpush.bf16.msra.mxu0 %v2083
    %2978 = vmatmul.bf16.gmra.mxu0 %v716
    %v2979 = vpop.f32.mrf.mxu0
    %v2980 = vadd.f32 %v2967, %v2979
    %v2981 = vpop.f32.mrf.mxu0
    %2982 = vdwg.mxu0
    %2983 = vmatpush.bf16.msra.mxu0 %v2113
    %2984 = vmatpush.bf16.msra.mxu0 %v2111
    %2985 = vmatpush.bf16.msra.mxu0 %v2109
    %2986 = vmatpush.bf16.msra.mxu0 %v2107
    %2987 = vmatpush.bf16.msra.mxu0 %v2105
    %2988 = vmatpush.bf16.msra.mxu0 %v2103
    %2989 = vmatpush.bf16.msra.mxu0 %v2101
    %2990 = vmatpush.bf16.msra.mxu0 %v2099
    %2991 = vmatmul.bf16.gmra.mxu0 %v717
    %v2992 = vpop.f32.mrf.mxu0
    %v2993 = vadd.f32 %v2980, %v2992
    %v2994 = vpop.f32.mrf.mxu0
    %2995 = vdwg.mxu0
    %2996 = vmatpush.bf16.msra.mxu0 %v2129
    %2997 = vmatpush.bf16.msra.mxu0 %v2127
    %2998 = vmatpush.bf16.msra.mxu0 %v2125
    %2999 = vmatpush.bf16.msra.mxu0 %v2123
    %3000 = vmatpush.bf16.msra.mxu0 %v2121
    %3001 = vmatpush.bf16.msra.mxu0 %v2119
    %3002 = vmatpush.bf16.msra.mxu0 %v2117
    %3003 = vmatpush.bf16.msra.mxu0 %v2115
    %3004 = vmatmul.bf16.gmra.mxu0 %v718
    %v3005 = vpop.f32.mrf.mxu0
    %v3006 = vadd.f32 %v2993, %v3005
    %v3007 = vpop.f32.mrf.mxu0
    %3008 = vdwg.mxu0
    %3009 = vmatpush.bf16.msra.mxu0 %v2145
    %3010 = vmatpush.bf16.msra.mxu0 %v2143
    %3011 = vmatpush.bf16.msra.mxu0 %v2141
    %3012 = vmatpush.bf16.msra.mxu0 %v2139
    %3013 = vmatpush.bf16.msra.mxu0 %v2137
    %3014 = vmatpush.bf16.msra.mxu0 %v2135
    %3015 = vmatpush.bf16.msra.mxu0 %v2133
    %3016 = vmatpush.bf16.msra.mxu0 %v2131
    %3017 = vmatmul.bf16.gmra.mxu0 %v719
    %v3018 = vpop.f32.mrf.mxu0
    %v3019 = vadd.f32 %v3006, %v3018
    %v3020 = vpop.f32.mrf.mxu0
    %3021 = vdwg.mxu0
    %3022 = vmatpush.bf16.msra.mxu0 %v2161
    %3023 = vmatpush.bf16.msra.mxu0 %v2159
    %3024 = vmatpush.bf16.msra.mxu0 %v2157
    %3025 = vmatpush.bf16.msra.mxu0 %v2155
    %3026 = vmatpush.bf16.msra.mxu0 %v2153
    %3027 = vmatpush.bf16.msra.mxu0 %v2151
    %3028 = vmatpush.bf16.msra.mxu0 %v2149
    %3029 = vmatpush.bf16.msra.mxu0 %v2147
    %3030 = vmatmul.bf16.gmra.mxu0 %v720
    %v3031 = vpop.f32.mrf.mxu0
    %v3032 = vadd.f32 %v3019, %v3031
    %v3033 = vpop.f32.mrf.mxu0
    %3034 = vdwg.mxu0
    %3035 = vmatpush.bf16.msra.mxu0 %v2177
    %3036 = vmatpush.bf16.msra.mxu0 %v2175
    %3037 = vmatpush.bf16.msra.mxu0 %v2173
    %3038 = vmatpush.bf16.msra.mxu0 %v2171
    %3039 = vmatpush.bf16.msra.mxu0 %v2169
    %3040 = vmatpush.bf16.msra.mxu0 %v2167
    %3041 = vmatpush.bf16.msra.mxu0 %v2165
    %3042 = vmatpush.bf16.msra.mxu0 %v2163
    %3043 = vmatmul.bf16.gmra.mxu0 %v721
    %v3044 = vpop.f32.mrf.mxu0
    %v3045 = vadd.f32 %v3032, %v3044
    %v3046 = vpop.f32.mrf.mxu0
    %3047 = vdwg.mxu0
    %3048 = vmatpush.bf16.msra.mxu0 %v2193
    %3049 = vmatpush.bf16.msra.mxu0 %v2191
    %3050 = vmatpush.bf16.msra.mxu0 %v2189
    %3051 = vmatpush.bf16.msra.mxu0 %v2187
    %3052 = vmatpush.bf16.msra.mxu0 %v2185
    %3053 = vmatpush.bf16.msra.mxu0 %v2183
    %3054 = vmatpush.bf16.msra.mxu0 %v2181
    %3055 = vmatpush.bf16.msra.mxu0 %v2179
    %3056 = vmatmul.bf16.gmra.mxu0 %v722
    %v3057 = vpop.f32.mrf.mxu0
    %v3058 = vadd.f32 %v3045, %v3057
    %v3059 = vpop.f32.mrf.mxu0
    %3060 = vdwg.mxu0
    %3061 = vmatpush.bf16.msra.mxu0 %v2209
    %3062 = vmatpush.bf16.msra.mxu0 %v2207
    %3063 = vmatpush.bf16.msra.mxu0 %v2205
    %3064 = vmatpush.bf16.msra.mxu0 %v2203
    %3065 = vmatpush.bf16.msra.mxu0 %v2201
    %3066 = vmatpush.bf16.msra.mxu0 %v2199
    %3067 = vmatpush.bf16.msra.mxu0 %v2197
    %3068 = vmatpush.bf16.msra.mxu0 %v2195
    %3069 = vmatmul.bf16.gmra.mxu0 %v723
    %v3070 = vpop.f32.mrf.mxu0
    %v3071 = vadd.f32 %v3058, %v3070
    %v3072 = vpop.f32.mrf.mxu0
    %3073 = vdwg.mxu0
    %3074 = vmatpush.bf16.msra.mxu0 %v2225
    %3075 = vmatpush.bf16.msra.mxu0 %v2223
    %3076 = vmatpush.bf16.msra.mxu0 %v2221
    %3077 = vmatpush.bf16.msra.mxu0 %v2219
    %3078 = vmatpush.bf16.msra.mxu0 %v2217
    %3079 = vmatpush.bf16.msra.mxu0 %v2215
    %3080 = vmatpush.bf16.msra.mxu0 %v2213
    %3081 = vmatpush.bf16.msra.mxu0 %v2211
    %3082 = vmatmul.bf16.gmra.mxu0 %v724
    %v3083 = vpop.f32.mrf.mxu0
    %v3084 = vadd.f32 %v3071, %v3083
    %v3085 = vpop.f32.mrf.mxu0
    %3086 = vdwg.mxu0
    %3087 = vmatpush.bf16.msra.mxu0 %v2241
    %3088 = vmatpush.bf16.msra.mxu0 %v2239
    %3089 = vmatpush.bf16.msra.mxu0 %v2237
    %3090 = vmatpush.bf16.msra.mxu0 %v2235
    %3091 = vmatpush.bf16.msra.mxu0 %v2233
    %3092 = vmatpush.bf16.msra.mxu0 %v2231
    %3093 = vmatpush.bf16.msra.mxu0 %v2229
    %3094 = vmatpush.bf16.msra.mxu0 %v2227
    %3095 = vmatmul.bf16.gmra.mxu0 %v725
    %v3096 = vpop.f32.mrf.mxu0
    %v3097 = vadd.f32 %v3084, %v3096
    %v3098 = vpop.f32.mrf.mxu0
    %3099 = vdwg.mxu0
    %3100 = vmatpush.bf16.msra.mxu0 %v2257
    %3101 = vmatpush.bf16.msra.mxu0 %v2255
    %3102 = vmatpush.bf16.msra.mxu0 %v2253
    %3103 = vmatpush.bf16.msra.mxu0 %v2251
    %3104 = vmatpush.bf16.msra.mxu0 %v2249
    %3105 = vmatpush.bf16.msra.mxu0 %v2247
    %3106 = vmatpush.bf16.msra.mxu0 %v2245
    %3107 = vmatpush.bf16.msra.mxu0 %v2243
    %3108 = vmatmul.bf16.gmra.mxu0 %v726
    %v3109 = vpop.f32.mrf.mxu0
    %v3110 = vadd.f32 %v3097, %v3109
    %v3111 = vpop.f32.mrf.mxu0
    %3112 = vdwg.mxu0
    %3113 = vmatpush.bf16.msra.mxu0 %v2273
    %3114 = vmatpush.bf16.msra.mxu0 %v2271
    %3115 = vmatpush.bf16.msra.mxu0 %v2269
    %3116 = vmatpush.bf16.msra.mxu0 %v2267
    %3117 = vmatpush.bf16.msra.mxu0 %v2265
    %3118 = vmatpush.bf16.msra.mxu0 %v2263
    %3119 = vmatpush.bf16.msra.mxu0 %v2261
    %3120 = vmatpush.bf16.msra.mxu0 %v2259
    %3121 = vmatmul.bf16.gmra.mxu0 %v727
    %v3122 = vpop.f32.mrf.mxu0
    %v3123 = vadd.f32 %v3110, %v3122
    %v3124 = vpop.f32.mrf.mxu0
    %3125 = vdwg.mxu0
    %3126 = vmatpush.bf16.msra.mxu0 %v2289
    %3127 = vmatpush.bf16.msra.mxu0 %v2287
    %3128 = vmatpush.bf16.msra.mxu0 %v2285
    %3129 = vmatpush.bf16.msra.mxu0 %v2283
    %3130 = vmatpush.bf16.msra.mxu0 %v2281
    %3131 = vmatpush.bf16.msra.mxu0 %v2279
    %3132 = vmatpush.bf16.msra.mxu0 %v2277
    %3133 = vmatpush.bf16.msra.mxu0 %v2275
    %3134 = vmatmul.bf16.gmra.mxu0 %v728
    %v3135 = vpop.f32.mrf.mxu0
    %v3136 = vadd.f32 %v3123, %v3135
    %v3137 = vpop.f32.mrf.mxu0
    %3138 = vdwg.mxu0
    %3139 = vmatpush.bf16.msra.mxu0 %v2305
    %3140 = vmatpush.bf16.msra.mxu0 %v2303
    %3141 = vmatpush.bf16.msra.mxu0 %v2301
    %3142 = vmatpush.bf16.msra.mxu0 %v2299
    %3143 = vmatpush.bf16.msra.mxu0 %v2297
    %3144 = vmatpush.bf16.msra.mxu0 %v2295
    %3145 = vmatpush.bf16.msra.mxu0 %v2293
    %3146 = vmatpush.bf16.msra.mxu0 %v2291
    %3147 = vmatmul.bf16.gmra.mxu0 %v729
    %v3148 = vpop.f32.mrf.mxu0
    %v3149 = vadd.f32 %v3136, %v3148
    %v3150 = vpop.f32.mrf.mxu0
    %3151 = vdwg.mxu0
    %3152 = vmatpush.bf16.msra.mxu0 %v2321
    %3153 = vmatpush.bf16.msra.mxu0 %v2319
    %3154 = vmatpush.bf16.msra.mxu0 %v2317
    %3155 = vmatpush.bf16.msra.mxu0 %v2315
    %3156 = vmatpush.bf16.msra.mxu0 %v2313
    %3157 = vmatpush.bf16.msra.mxu0 %v2311
    %3158 = vmatpush.bf16.msra.mxu0 %v2309
    %3159 = vmatpush.bf16.msra.mxu0 %v2307
    %3160 = vmatmul.bf16.gmra.mxu0 %v730
    %v3161 = vpop.f32.mrf.mxu0
    %v3162 = vadd.f32 %v3149, %v3161
    %v3163 = vpop.f32.mrf.mxu0
    %3164 = vdwg.mxu0
    %3165 = vmatpush.bf16.msra.mxu0 %v2337
    %3166 = vmatpush.bf16.msra.mxu0 %v2335
    %3167 = vmatpush.bf16.msra.mxu0 %v2333
    %3168 = vmatpush.bf16.msra.mxu0 %v2331
    %3169 = vmatpush.bf16.msra.mxu0 %v2329
    %3170 = vmatpush.bf16.msra.mxu0 %v2327
    %3171 = vmatpush.bf16.msra.mxu0 %v2325
    %3172 = vmatpush.bf16.msra.mxu0 %v2323
    %3173 = vmatmul.bf16.gmra.mxu0 %v731
    %v3174 = vpop.f32.mrf.mxu0
    %v3175 = vadd.f32 %v3162, %v3174
    %v3176 = vpop.f32.mrf.mxu0
    %3177 = vdwg.mxu0
    %vm3178 = vcmp.ge.f32.partialorder %v2915, 0.0
    %vm3179 = vcmp.ge.f32.partialorder %v3175, 0.0
    %v3180 = vstv %s60
    %v3181 = vmul.f32 %v3180, %v2915
    %v3182 = vmul.f32 %v3180, %v3175
    %v3183 = vsel %vm3178, %v2915, %v3181
    %v3184 = vsel %vm3179, %v3175, %v3182
    %v3185 = vpack.c.bf16 %v3183, %v3183
    %v3186 = vpack.c.bf16 %v3184, %v3184
    %v3187 = vld [vmem:[%s11] sm:$0xff]
    %v3188 = vld [vmem:[%s11 + $0x8] sm:$0xff]
    %v3189 = vld [vmem:[%s11 + $0x10] sm:$0xff]
    %v3190 = vld [vmem:[%s11 + $0x18] sm:$0xff]
    %v3191 = vld [vmem:[%s11 + $0x20] sm:$0xff]
    %v3192 = vld [vmem:[%s11 + $0x28] sm:$0xff]
    %v3193 = vld [vmem:[%s11 + $0x30] sm:$0xff]
    %v3194 = vld [vmem:[%s11 + $0x38] sm:$0xff]
    %v3195 = vld [vmem:[%s11 + $0x40] sm:$0xff]
    %v3196 = vld [vmem:[%s11 + $0x48] sm:$0xff]
    %v3197 = vld [vmem:[%s11 + $0x50] sm:$0xff]
    %v3198 = vld [vmem:[%s11 + $0x58] sm:$0xff]
    %v3199 = vld [vmem:[%s11 + $0x60] sm:$0xff]
    %v3200 = vld [vmem:[%s11 + $0x68] sm:$0xff]
    %v3201 = vld [vmem:[%s11 + $0x70] sm:$0xff]
    %v3202 = vld [vmem:[%s11 + $0x78] sm:$0xff]
    %v3203 = vld [vmem:[%s11 + $0x80] sm:$0xff]
    %v3204 = vld [vmem:[%s11 + $0x88] sm:$0xff]
    %v3205 = vld [vmem:[%s11 + $0x90] sm:$0xff]
    %v3206 = vld [vmem:[%s11 + $0x98] sm:$0xff]
    %v3207 = vld [vmem:[%s11 + $0xa0] sm:$0xff]
    %v3208 = vld [vmem:[%s11 + $0xa8] sm:$0xff]
    %v3209 = vld [vmem:[%s11 + $0xb0] sm:$0xff]
    %v3210 = vld [vmem:[%s11 + $0xb8] sm:$0xff]
    %v3211 = vld [vmem:[%s11 + $0xc0] sm:$0xff]
    %v3212 = vld [vmem:[%s11 + $0xc8] sm:$0xff]
    %v3213 = vld [vmem:[%s11 + $0xd0] sm:$0xff]
    %v3214 = vld [vmem:[%s11 + $0xd8] sm:$0xff]
    %v3215 = vld [vmem:[%s11 + $0xe0] sm:$0xff]
    %v3216 = vld [vmem:[%s11 + $0xe8] sm:$0xff]
    %v3217 = vld [vmem:[%s11 + $0xf0] sm:$0xff]
    %v3218 = vld [vmem:[%s11 + $0xf8] sm:$0xff]
    %v3219 = vld [vmem:[%s12] sm:$0x3]
    %v3221 = vperm.slane %v3219, 0
    %v3222 = vperm.slane %v3219, 1
    %v3257 = vunpack.c.l.b16 %v3187
    %v3258 = vunpack.c.h.b16 %v3187
    %v3259 = vunpack.c.l.b16 %v3188
    %v3260 = vunpack.c.h.b16 %v3188
    %v3261 = vunpack.c.l.b16 %v3189
    %v3262 = vunpack.c.h.b16 %v3189
    %v3263 = vunpack.c.l.b16 %v3190
    %v3264 = vunpack.c.h.b16 %v3190
    %v3265 = vunpack.c.l.b16 %v3191
    %v3266 = vunpack.c.h.b16 %v3191
    %v3267 = vunpack.c.l.b16 %v3192
    %v3268 = vunpack.c.h.b16 %v3192
    %v3269 = vunpack.c.l.b16 %v3193
    %v3270 = vunpack.c.h.b16 %v3193
    %v3271 = vunpack.c.l.b16 %v3194
    %v3272 = vunpack.c.h.b16 %v3194
    %v3273 = vunpack.c.l.b16 %v3195
    %v3274 = vunpack.c.h.b16 %v3195
    %v3275 = vunpack.c.l.b16 %v3196
    %v3276 = vunpack.c.h.b16 %v3196
    %v3277 = vunpack.c.l.b16 %v3197
    %v3278 = vunpack.c.h.b16 %v3197
    %v3279 = vunpack.c.l.b16 %v3198
    %v3280 = vunpack.c.h.b16 %v3198
    %v3281 = vunpack.c.l.b16 %v3199
    %v3282 = vunpack.c.h.b16 %v3199
    %v3283 = vunpack.c.l.b16 %v3200
    %v3284 = vunpack.c.h.b16 %v3200
    %v3285 = vunpack.c.l.b16 %v3201
    %v3286 = vunpack.c.h.b16 %v3201
    %v3287 = vunpack.c.l.b16 %v3202
    %v3288 = vunpack.c.h.b16 %v3202
    %v3289 = vunpack.c.l.b16 %v3203
    %v3290 = vunpack.c.h.b16 %v3203
    %v3291 = vunpack.c.l.b16 %v3204
    %v3292 = vunpack.c.h.b16 %v3204
    %v3293 = vunpack.c.l.b16 %v3205
    %v3294 = vunpack.c.h.b16 %v3205
    %v3295 = vunpack.c.l.b16 %v3206
    %v3296 = vunpack.c.h.b16 %v3206
    %v3297 = vunpack.c.l.b16 %v3207
    %v3298 = vunpack.c.h.b16 %v3207
    %v3299 = vunpack.c.l.b16 %v3208
    %v3300 = vunpack.c.h.b16 %v3208
    %v3301 = vunpack.c.l.b16 %v3209
    %v3302 = vunpack.c.h.b16 %v3209
    %v3303 = vunpack.c.l.b16 %v3210
    %v3304 = vunpack.c.h.b16 %v3210
    %v3305 = vunpack.c.l.b16 %v3211
    %v3306 = vunpack.c.h.b16 %v3211
    %v3307 = vunpack.c.l.b16 %v3212
    %v3308 = vunpack.c.h.b16 %v3212
    %v3309 = vunpack.c.l.b16 %v3213
    %v3310 = vunpack.c.h.b16 %v3213
    %v3311 = vunpack.c.l.b16 %v3214
    %v3312 = vunpack.c.h.b16 %v3214
    %v3313 = vunpack.c.l.b16 %v3215
    %v3314 = vunpack.c.h.b16 %v3215
    %v3315 = vunpack.c.l.b16 %v3216
    %v3316 = vunpack.c.h.b16 %v3216
    %v3317 = vunpack.c.l.b16 %v3217
    %v3318 = vunpack.c.h.b16 %v3217
    %v3319 = vunpack.c.l.b16 %v3218
    %v3320 = vunpack.c.h.b16 %v3218
    %v3321 = vpack.c.b16 %v3259, %v3257
    %v3322 = vpack.c.b16 %v3260, %v3258
    %v3323 = vpack.c.b16 %v3263, %v3261
    %v3324 = vpack.c.b16 %v3264, %v3262
    %v3325 = vpack.c.b16 %v3267, %v3265
    %v3326 = vpack.c.b16 %v3268, %v3266
    %v3327 = vpack.c.b16 %v3271, %v3269
    %v3328 = vpack.c.b16 %v3272, %v3270
    %v3329 = vpack.c.b16 %v3275, %v3273
    %v3330 = vpack.c.b16 %v3276, %v3274
    %v3331 = vpack.c.b16 %v3279, %v3277
    %v3332 = vpack.c.b16 %v3280, %v3278
    %v3333 = vpack.c.b16 %v3283, %v3281
    %v3334 = vpack.c.b16 %v3284, %v3282
    %v3335 = vpack.c.b16 %v3287, %v3285
    %v3336 = vpack.c.b16 %v3288, %v3286
    %v3337 = vpack.c.b16 %v3291, %v3289
    %v3338 = vpack.c.b16 %v3292, %v3290
    %v3339 = vpack.c.b16 %v3295, %v3293
    %v3340 = vpack.c.b16 %v3296, %v3294
    %v3341 = vpack.c.b16 %v3299, %v3297
    %v3342 = vpack.c.b16 %v3300, %v3298
    %v3343 = vpack.c.b16 %v3303, %v3301
    %v3344 = vpack.c.b16 %v3304, %v3302
    %v3345 = vpack.c.b16 %v3307, %v3305
    %v3346 = vpack.c.b16 %v3308, %v3306
    %v3347 = vpack.c.b16 %v3311, %v3309
    %v3348 = vpack.c.b16 %v3312, %v3310
    %v3349 = vpack.c.b16 %v3315, %v3313
    %v3350 = vpack.c.b16 %v3316, %v3314
    %v3351 = vpack.c.b16 %v3319, %v3317
    %v3352 = vpack.c.b16 %v3320, %v3318
    %3385 = vmatpush.bf16.msra.mxu0 %v3335
    %3386 = vmatpush.bf16.msra.mxu0 %v3333
    %3387 = vmatpush.bf16.msra.mxu0 %v3331
    %3388 = vmatpush.bf16.msra.mxu0 %v3329
    %3389 = vmatpush.bf16.msra.mxu0 %v3327
    %3390 = vmatpush.bf16.msra.mxu0 %v3325
    %3391 = vmatpush.bf16.msra.mxu0 %v3323
    %3392 = vmatpush.bf16.msra.mxu0 %v3321
    %3393 = vmatmul.bf16.gmra.mxu0 %v3185
    %v3394 = vpop.f32.mrf.mxu0
    %v3395 = vadd.f32 %v3221, %v3394
    %v3396 = vpop.f32.mrf.mxu0
    %3397 = vdwg.mxu0
    %3398 = vmatpush.bf16.msra.mxu0 %v3351
    %3399 = vmatpush.bf16.msra.mxu0 %v3349
    %3400 = vmatpush.bf16.msra.mxu0 %v3347
    %3401 = vmatpush.bf16.msra.mxu0 %v3345
    %3402 = vmatpush.bf16.msra.mxu0 %v3343
    %3403 = vmatpush.bf16.msra.mxu0 %v3341
    %3404 = vmatpush.bf16.msra.mxu0 %v3339
    %3405 = vmatpush.bf16.msra.mxu0 %v3337
    %3406 = vmatmul.bf16.gmra.mxu0 %v3186
    %v3407 = vpop.f32.mrf.mxu0
    %v3408 = vadd.f32 %v3395, %v3407
    %v3409 = vpop.f32.mrf.mxu0
    %3410 = vdwg.mxu0
    %3411 = vmatpush.bf16.msra.mxu0 %v3336
    %3412 = vmatpush.bf16.msra.mxu0 %v3334
    %3413 = vmatpush.bf16.msra.mxu0 %v3332
    %3414 = vmatpush.bf16.msra.mxu0 %v3330
    %3415 = vmatpush.bf16.msra.mxu0 %v3328
    %3416 = vmatpush.bf16.msra.mxu0 %v3326
    %3417 = vmatpush.bf16.msra.mxu0 %v3324
    %3418 = vmatpush.bf16.msra.mxu0 %v3322
    %3419 = vmatmul.bf16.gmra.mxu0 %v3185
    %v3420 = vpop.f32.mrf.mxu0
    %v3421 = vadd.f32 %v3222, %v3420
    %v3422 = vpop.f32.mrf.mxu0
    %3423 = vdwg.mxu0
    %3424 = vmatpush.bf16.msra.mxu0 %v3352
    %3425 = vmatpush.bf16.msra.mxu0 %v3350
    %3426 = vmatpush.bf16.msra.mxu0 %v3348
    %3427 = vmatpush.bf16.msra.mxu0 %v3346
    %3428 = vmatpush.bf16.msra.mxu0 %v3344
    %3429 = vmatpush.bf16.msra.mxu0 %v3342
    %3430 = vmatpush.bf16.msra.mxu0 %v3340
    %3431 = vmatpush.bf16.msra.mxu0 %v3338
    %3432 = vmatmul.bf16.gmra.mxu0 %v3186
    %v3433 = vpop.f32.mrf.mxu0
    %v3434 = vadd.f32 %v3421, %v3433
    %v3435 = vpop.f32.mrf.mxu0
    %3436 = vdwg.mxu0
    %vm3437 = vcmp.ge.f32.partialorder %v3408, 0.0
    %vm3438 = vcmp.ge.f32.partialorder %v3434, 0.0
    %v3439 = vstv %s61
    %v3440 = vmul.f32 %v3439, %v3408
    %v3441 = vmul.f32 %v3439, %v3434
    %v3442 = vsel %vm3437, %v3408, %v3440
    %v3443 = vsel %vm3438, %v3434, %v3441
    %v3444 = vld [vmem:[%s14] sm:$0xff]
    %v3445 = vld [vmem:[%s14 + $0x8] sm:$0xff]
    %v3446 = vld [vmem:[%s14 + $0x10] sm:$0xff]
    %v3447 = vld [vmem:[%s14 + $0x18] sm:$0xff]
    %v3448 = vld [vmem:[%s14 + $0x20] sm:$0xff]
    %v3449 = vld [vmem:[%s14 + $0x28] sm:$0xff]
    %v3450 = vld [vmem:[%s14 + $0x30] sm:$0xff]
    %v3451 = vld [vmem:[%s14 + $0x38] sm:$0xff]
    %v3452 = vld [vmem:[%s14 + $0x40] sm:$0xff]
    %v3453 = vld [vmem:[%s14 + $0x48] sm:$0xff]
    %v3454 = vld [vmem:[%s14 + $0x50] sm:$0xff]
    %v3455 = vld [vmem:[%s14 + $0x58] sm:$0xff]
    %v3456 = vld [vmem:[%s14 + $0x60] sm:$0xff]
    %v3457 = vld [vmem:[%s14 + $0x68] sm:$0xff]
    %v3458 = vld [vmem:[%s14 + $0x70] sm:$0xff]
    %v3459 = vld [vmem:[%s14 + $0x78] sm:$0xff]
    %v3460 = vld [vmem:[%s14 + $0x80] sm:$0xff]
    %v3461 = vld [vmem:[%s14 + $0x88] sm:$0xff]
    %v3462 = vld [vmem:[%s14 + $0x90] sm:$0xff]
    %v3463 = vld [vmem:[%s14 + $0x98] sm:$0xff]
    %v3464 = vld [vmem:[%s14 + $0xa0] sm:$0xff]
    %v3465 = vld [vmem:[%s14 + $0xa8] sm:$0xff]
    %v3466 = vld [vmem:[%s14 + $0xb0] sm:$0xff]
    %v3467 = vld [vmem:[%s14 + $0xb8] sm:$0xff]
    %v3468 = vld [vmem:[%s14 + $0xc0] sm:$0xff]
    %v3469 = vld [vmem:[%s14 + $0xc8] sm:$0xff]
    %v3470 = vld [vmem:[%s14 + $0xd0] sm:$0xff]
    %v3471 = vld [vmem:[%s14 + $0xd8] sm:$0xff]
    %v3472 = vld [vmem:[%s14 + $0xe0] sm:$0xff]
    %v3473 = vld [vmem:[%s14 + $0xe8] sm:$0xff]
    %v3474 = vld [vmem:[%s14 + $0xf0] sm:$0xff]
    %v3475 = vld [vmem:[%s14 + $0xf8] sm:$0xff]
    %v3476 = vld [vmem:[%s15] sm:$0x1]
    %v3478 = vperm.slane %v3476, 0
    %3480 = vmatpush.msra.mxu0 %v3459
    %3481 = vmatpush.msra.mxu0 %v3458
    %3482 = vmatpush.msra.mxu0 %v3457
    %3483 = vmatpush.msra.mxu0 %v3456
    %3484 = vmatpush.msra.mxu0 %v3455
    %3485 = vmatpush.msra.mxu0 %v3454
    %3486 = vmatpush.msra.mxu0 %v3453
    %3487 = vmatpush.msra.mxu0 %v3452
    %3488 = vmatpush.msra.mxu0 %v3451
    %3489 = vmatpush.msra.mxu0 %v3450
    %3490 = vmatpush.msra.mxu0 %v3449
    %3491 = vmatpush.msra.mxu0 %v3448
    %3492 = vmatpush.msra.mxu0 %v3447
    %3493 = vmatpush.msra.mxu0 %v3446
    %3494 = vmatpush.msra.mxu0 %v3445
    %3495 = vmatpush.msra.mxu0 %v3444
    %3496 = vmatmul.f32.gmra.mxu0 %v3442
    %v3497 = vpop.f32.mrf.mxu0
    %v3498 = vadd.f32 %v3478, %v3497
    %3499 = vdwg.mxu0
    %3500 = vmatpush.msra.mxu0 %v3475
    %3501 = vmatpush.msra.mxu0 %v3474
    %3502 = vmatpush.msra.mxu0 %v3473
    %3503 = vmatpush.msra.mxu0 %v3472
    %3504 = vmatpush.msra.mxu0 %v3471
    %3505 = vmatpush.msra.mxu0 %v3470
    %3506 = vmatpush.msra.mxu0 %v3469
    %3507 = vmatpush.msra.mxu0 %v3468
    %3508 = vmatpush.msra.mxu0 %v3467
    %3509 = vmatpush.msra.mxu0 %v3466
    %3510 = vmatpush.msra.mxu0 %v3465
    %3511 = vmatpush.msra.mxu0 %v3464
    %3512 = vmatpush.msra.mxu0 %v3463
    %3513 = vmatpush.msra.mxu0 %v3462
    %3514 = vmatpush.msra.mxu0 %v3461
    %3515 = vmatpush.msra.mxu0 %v3460
    %3516 = vmatmul.f32.gmra.mxu0 %v3443
    %v3517 = vpop.f32.mrf.mxu0
    %v3518 = vadd.f32 %v3498, %v3517
    %3519 = vdwg.mxu0
    %vm3520 = vcmask 9216
    %3521 = vst.msk [vmem:[#allocation9] sm:$0x3] %vm3520, %v3518
    // Predicated region
    $region66: #{embedding_net_forward.1} parent=1 // pred_check
      _
    $region67: #{embedding_net_forward.1} parent=1 // pred_check_branch
      %3523 = sbr.rel (0) target = $region69
    $region68: #{embedding_net_forward.1} parent=1 // pred_region
      %3525 = vsyncadd [#allocation10], 0
      %s3527 = sshll.u32 [#allocation9], 4
      %s3528 = int_to_ptr.vmem [resolvable:$true] %s3527
      %s3529 = sshll.u32 %s16, 4
      %s3530 = int_to_ptr.hbm [resolvable:$true] %s3529
      %3532 = dma.vmem_to_hbm [thread:$0]  %s3528, 32, %s3530, [#allocation10]
    $region69: #{embedding_net_forward.1} parent=1 // pred_fallthru
      _
    // Predicated region
    $region70: #{embedding_net_forward.1} parent=1 // pred_check
      _
    $region71: #{embedding_net_forward.1} parent=1 // pred_check_branch
      %3534 = sbr.rel (0) target = $region73
    $region72: #{embedding_net_forward.1} parent=1 // pred_region
      %3536 = dma.done [#allocation10], 32
    $region73: #{embedding_net_forward.1} parent=1 // pred_fallthru
      _
    %3537 = vsyncpa [#allocation10], 1

</llo_original>
